<compile_context>
chip_gen: v6e
topology: v6e:2x2x1
jax: 0.10.0
libtpu: 0.0.40
codegen_flags: <defaults>
</compile_context>

<pallas_src>
import functools

import jax
import jax.numpy as jnp
from jax import lax
from jax.experimental import pallas as pl
from jax.experimental.pallas import tpu as pltpu

BN_EPS = 1e-5
LEAKY_SLOPE = 0.01            # PyTorch nn.LeakyReLU default negative_slope
LANE = 128
VMEM_LIMIT = 32 * 1024 * 1024  # explicit scoped-VMEM budget (safe on v5e/v6e/v7x)


def _round_up(x, m):
    return ((x + m - 1) // m) * m


def _make_conv_stats_kernel(kh, kw, oh, ow, cin, cout_p, stride, dilation):
    """Pass 1: conv as KH*KW statically-unrolled shifted matmuls + per-image stats."""
    n_taps = kh * kw

    def kernel(x_ref, w_ref, y_ref, stats_ref, acc_ref):
        # x_ref:     (PH, PW, Cin)          one padded NHWC image
        # w_ref:     (KH*KW, Cin, Cout_p)   all per-tap weight slabs (tiny)
        # y_ref:     (OH, OW, Cout_p)       conv output for this image
        # stats_ref: (2, Cout_p)            [sum; sum of squares] for this image
        # acc_ref:   (OH*OW, Cout_p) f32    VMEM accumulator scratch
        acc_ref[...] = jnp.zeros_like(acc_ref)
        for t in range(n_taps):           # static unroll: tap offsets are constants
            r0 = (t // kw) * dilation
            c0 = (t % kw) * dilation
            if stride == 1:
                window = x_ref[pl.ds(r0, oh), pl.ds(c0, ow), :]
            else:
                window = x_ref[pl.ds(r0, oh, stride), pl.ds(c0, ow, stride), :]
            acc_ref[...] += jnp.dot(window.reshape(oh * ow, cin), w_ref[t],
                                    preferred_element_type=jnp.float32)
        acc = acc_ref[...]
        y_ref[...] = acc.reshape(oh, ow, cout_p)
        s = jnp.sum(acc, axis=0, keepdims=True)              # (1, Cout_p)
        ss = jnp.sum(acc * acc, axis=0, keepdims=True)        # (1, Cout_p)
        stats_ref[...] = jnp.concatenate([s, ss], axis=0)

    return kernel


def _bn_act_kernel(y_ref, scale_ref, bias_ref, o_ref):
    """Pass 2: streaming y*scale + bias followed by LeakyReLU (lane-dense)."""
    z = y_ref[...] * scale_ref[...] + bias_ref[...]
    o_ref[...] = jnp.where(z >= 0, z, LEAKY_SLOPE * z)


@functools.partial(jax.jit,
                   static_argnames=("stride", "padding", "dilation", "compute_dtype"))
def basic_conv2d(x_nchw, w_oihw, gamma, beta, *, stride=1, padding=0, dilation=1,
                 compute_dtype=jnp.bfloat16):
    """Forward pass of BasicConv2d. Input/output are NCHW float32."""
    n, cin, h, w = x_nchw.shape
    cout, cin_w, kh, kw = w_oihw.shape
    assert cin == cin_w

    oh = (h + 2 * padding - dilation * (kh - 1) - 1) // stride + 1
    ow = (w + 2 * padding - dilation * (kw - 1) - 1) // stride + 1
    ph, pw = h + 2 * padding, w + 2 * padding
    cout_p = _round_up(cout, LANE)
    m_total = n * oh * ow

    # --- XLA glue (single layout pass): NCHW -> padded NHWC, cast for the MXU.
    x_nhwc = jnp.transpose(x_nchw, (0, 2, 3, 1))
    x_pad = jnp.pad(x_nhwc, ((0, 0), (padding, padding), (padding, padding), (0, 0)))
    x_pad = x_pad.astype(compute_dtype)

    # Weights: (Cout, Cin, KH, KW) -> (KH*KW, Cin, Cout_padded), zero-padded lanes.
    w_t = jnp.transpose(w_oihw, (2, 3, 1, 0)).reshape(kh * kw, cin, cout)
    w_t = jnp.pad(w_t, ((0, 0), (0, 0), (0, cout_p - cout))).astype(compute_dtype)

    itemsize = jnp.dtype(compute_dtype).itemsize
    cost1 = pl.CostEstimate(
        flops=2 * m_total * kh * kw * cin * cout_p,
        transcendentals=0,
        bytes_accessed=(n * ph * pw * cin * itemsize
                        + n * kh * kw * cin * cout_p * itemsize
                        + m_total * cout_p * 4 + n * 2 * cout_p * 4),
    )

    conv_kernel = _make_conv_stats_kernel(kh, kw, oh, ow, cin, cout_p, stride, dilation)
    y_conv, stats = pl.pallas_call(
        conv_kernel,
        out_shape=(jax.ShapeDtypeStruct((n, oh, ow, cout_p), jnp.float32),
                   jax.ShapeDtypeStruct((n, 2, cout_p), jnp.float32)),
        grid=(n,),
        in_specs=[
            pl.BlockSpec((None, ph, pw, cin), lambda b: (b, 0, 0, 0)),
            pl.BlockSpec((kh * kw, cin, cout_p), lambda b: (0, 0, 0)),
        ],
        out_specs=(
            pl.BlockSpec((None, oh, ow, cout_p), lambda b: (b, 0, 0, 0)),
            pl.BlockSpec((None, 2, cout_p), lambda b: (b, 0, 0)),
        ),
        scratch_shapes=[pltpu.VMEM((oh * ow, cout_p), jnp.float32)],
        compiler_params=pltpu.CompilerParams(
            dimension_semantics=("parallel",),
            vmem_limit_bytes=VMEM_LIMIT),
        cost_estimate=cost1,
    )(x_pad, w_t)

    # --- BN scale/bias from global batch statistics (tiny; real channels only,
    # biased variance, as PyTorch uses for normalization in training mode).
    stats_sum = jnp.sum(stats, axis=0)                       # (2, Cout_p)
    mean = stats_sum[0, :cout] / m_total
    var = jnp.maximum(stats_sum[1, :cout] / m_total - mean * mean, 0.0)
    scale = gamma.astype(jnp.float32) * lax.rsqrt(var + BN_EPS)
    bias = beta.astype(jnp.float32) - mean * scale
    scale_p = jnp.pad(scale, (0, cout_p - cout)).reshape(1, 1, cout_p)
    bias_p = jnp.pad(bias, (0, cout_p - cout)).reshape(1, 1, cout_p)

    cost2 = pl.CostEstimate(
        flops=3 * m_total * cout_p,
        transcendentals=0,
        bytes_accessed=2 * m_total * cout_p * 4 + 2 * 2 * cout_p * 4,
    )
    y_act = pl.pallas_call(
        _bn_act_kernel,
        out_shape=jax.ShapeDtypeStruct((n, oh, ow, cout_p), jnp.float32),
        grid=(n,),
        in_specs=[
            pl.BlockSpec((None, oh, ow, cout_p), lambda b: (b, 0, 0, 0)),
            pl.BlockSpec((1, 1, cout_p), lambda b: (0, 0, 0)),
            pl.BlockSpec((1, 1, cout_p), lambda b: (0, 0, 0)),
        ],
        out_specs=pl.BlockSpec((None, oh, ow, cout_p), lambda b: (b, 0, 0, 0)),
        compiler_params=pltpu.CompilerParams(
            dimension_semantics=("parallel",),
            vmem_limit_bytes=VMEM_LIMIT),
        cost_estimate=cost2,
    )(y_conv, scale_p, bias_p)

    # Drop padded channels; single transpose back to NCHW (PyTorch layout).
    return jnp.transpose(y_act[..., :cout], (0, 3, 1, 2))


def _reference(x_nchw, w_oihw, gamma, beta, *, stride, padding, dilation):
    """Plain-JAX f32 reference (conv -> train-mode BN -> LeakyReLU)."""
    y = lax.conv_general_dilated(
        x_nchw, w_oihw,
        window_strides=(stride, stride),
        padding=[(padding, padding), (padding, padding)],
        rhs_dilation=(dilation, dilation),
        dimension_numbers=("NCHW", "OIHW", "NCHW"),
    )
    mean = jnp.mean(y, axis=(0, 2, 3), keepdims=True)
    var = jnp.mean((y - mean) ** 2, axis=(0, 2, 3), keepdims=True)
    yn = (y - mean) * lax.rsqrt(var + BN_EPS)
    yn = yn * gamma.reshape(1, -1, 1, 1) + beta.reshape(1, -1, 1, 1)
    return jnp.where(yn >= 0, yn, LEAKY_SLOPE * yn)


if __name__ == "__main__":
    # BasicConv2d(in_planes=4, out_planes=8, kernel_size=3, stride=1, padding=1)
    in_planes, out_planes = 4, 8
    ksize, stride, padding, dilation = 3, 1, 1, 1

    key = jax.random.PRNGKey(0)
    kx, kw_key = jax.random.split(key)
    x = jax.random.normal(kx, (2, in_planes, 16, 16), dtype=jnp.float32)
    conv_w = (jax.random.normal(kw_key, (out_planes, in_planes, ksize, ksize),
                                dtype=jnp.float32) * 0.1)
    bn_gamma = jnp.ones((out_planes,), dtype=jnp.float32)   # BN weight default
    bn_beta = jnp.zeros((out_planes,), dtype=jnp.float32)   # BN bias default

    ref = _reference(x, conv_w, bn_gamma, bn_beta,
                     stride=stride, padding=padding, dilation=dilation)

    # Default path: bf16 MXU operands, f32 accumulator / BN / activation.
    out_bf16 = basic_conv2d(x, conv_w, bn_gamma, bn_beta,
                            stride=stride, padding=padding, dilation=dilation)
    out_bf16 = jax.block_until_ready(out_bf16)
    assert out_bf16.shape == ref.shape == (2, out_planes, 16, 16)
    assert jnp.allclose(out_bf16, ref, atol=3e-2, rtol=3e-2)

    # Full-f32 path: validates the kernel structure against the reference tightly.
    out_f32 = basic_conv2d(x, conv_w, bn_gamma, bn_beta,
                           stride=stride, padding=padding, dilation=dilation,
                           compute_dtype=jnp.float32)
    out_f32 = jax.block_until_ready(out_f32)
    assert jnp.allclose(out_f32, ref, atol=1e-4, rtol=1e-4)

    # TODO(synk): BatchNorm running_mean/running_var buffer updates (training
    # side effect) are not produced; they do not affect the forward output.
    print("KERNEL_OK")
</pallas_src>

<mosaic_0001>
module attributes {stable_mosaic.version = 11 : i64} {
  func.func @kernel(%arg0: i32, %arg1: memref<1x18x18x4xbf16, #tpu.memory_space<vmem>>, %arg2: memref<9x4x128xbf16, #tpu.memory_space<vmem>>, %arg3: memref<1x16x16x128xf32, #tpu.memory_space<vmem>>, %arg4: memref<1x2x128xf32, #tpu.memory_space<vmem>>, %arg5: memref<256x128xf32, #tpu.memory_space<vmem>>) attributes {dimension_semantics = [#tpu.dimension_semantics<parallel>], iteration_bounds = array<i64: 2>, scalar_prefetch = 0 : i64, scratch_operands = 1 : i64, tpu.core_type = #tpu.core_type<tc>, window_params = [{transform_indices = @transform_0, window_bounds = array<i64: 1, 18, 18, 4>}, {pipeline_mode = #tpu.pipeline_mode<synchronous>, transform_indices = @transform_1, window_bounds = array<i64: 9, 4, 128>}, {transform_indices = @transform_2, window_bounds = array<i64: 1, 16, 16, 128>}, {transform_indices = @transform_3, window_bounds = array<i64: 1, 2, 128>}]} {
    %cst = arith.constant 0.000000e+00 : f32
    %0 = vector.broadcast %cst : f32 to vector<256x128xf32>
    %c0 = arith.constant 0 : index
    %c0_0 = arith.constant 0 : index
    %1 = vector.load %arg5[%c0, %c0_0] : memref<256x128xf32, #tpu.memory_space<vmem>>, vector<256x128xf32>
    tpu.vector_store %arg5[%c0, %c0_0], %0 {strides = array<i32>} : memref<256x128xf32, #tpu.memory_space<vmem>>, vector<256x128xf32>,
    %c0_1 = arith.constant 0 : index
    %c0_2 = arith.constant 0 : index
    %c0_3 = arith.constant 0 : index
    %c0_4 = arith.constant 0 : index
    %2 = vector.load %arg1[%c0_1, %c0_2, %c0_3, %c0_4] : memref<1x18x18x4xbf16, #tpu.memory_space<vmem>>, vector<1x16x16x4xbf16>
    %3 = vector.shape_cast %2 : vector<1x16x16x4xbf16> to vector<16x16x4xbf16>
    %c0_5 = arith.constant 0 : index
    %c0_6 = arith.constant 0 : index
    %4 = vector.load %arg5[%c0_5, %c0_6] : memref<256x128xf32, #tpu.memory_space<vmem>>, vector<256x128xf32>
    %5 = vector.shape_cast %3 : vector<16x16x4xbf16> to vector<256x4xbf16>
    %c0_7 = arith.constant 0 : index
    %c0_8 = arith.constant 0 : index
    %c0_9 = arith.constant 0 : index
    %6 = vector.load %arg2[%c0_7, %c0_8, %c0_9] : memref<9x4x128xbf16, #tpu.memory_space<vmem>>, vector<1x4x128xbf16>
    %7 = vector.shape_cast %6 : vector<1x4x128xbf16> to vector<4x128xbf16>
    %cst_10 = arith.constant dense<0.000000e+00> : vector<256x128xf32>
    %8 = tpu.matmul %5, %7, %cst_10 {dimension_numbers = #tpu.dot_dimension_numbers<[1], [0], [0], [1], [0, 0, 1, 1], [], []>} : vector<256x4xbf16>, vector<4x128xbf16>, vector<256x128xf32> -> vector<256x128xf32>
    %9 = arith.addf %4, %8 : vector<256x128xf32>
    %c0_11 = arith.constant 0 : index
    %c0_12 = arith.constant 0 : index
    %10 = vector.load %arg5[%c0_11, %c0_12] : memref<256x128xf32, #tpu.memory_space<vmem>>, vector<256x128xf32>
    tpu.vector_store %arg5[%c0_11, %c0_12], %9 {strides = array<i32>} : memref<256x128xf32, #tpu.memory_space<vmem>>, vector<256x128xf32>,
    %c0_13 = arith.constant 0 : index
    %c0_14 = arith.constant 0 : index
    %c1 = arith.constant 1 : index
    %c0_15 = arith.constant 0 : index
    %11 = vector.load %arg1[%c0_13, %c0_14, %c1, %c0_15] : memref<1x18x18x4xbf16, #tpu.memory_space<vmem>>, vector<1x16x16x4xbf16>
    %12 = vector.shape_cast %11 : vector<1x16x16x4xbf16> to vector<16x16x4xbf16>
    %c0_16 = arith.constant 0 : index
    %c0_17 = arith.constant 0 : index
    %13 = vector.load %arg5[%c0_16, %c0_17] : memref<256x128xf32, #tpu.memory_space<vmem>>, vector<256x128xf32>
    %14 = vector.shape_cast %12 : vector<16x16x4xbf16> to vector<256x4xbf16>
    %c1_18 = arith.constant 1 : index
    %c0_19 = arith.constant 0 : index
    %c0_20 = arith.constant 0 : index
    %15 = vector.load %arg2[%c1_18, %c0_19, %c0_20] : memref<9x4x128xbf16, #tpu.memory_space<vmem>>, vector<1x4x128xbf16>
    %16 = vector.shape_cast %15 : vector<1x4x128xbf16> to vector<4x128xbf16>
    %cst_21 = arith.constant dense<0.000000e+00> : vector<256x128xf32>
    %17 = tpu.matmul %14, %16, %cst_21 {dimension_numbers = #tpu.dot_dimension_numbers<[1], [0], [0], [1], [0, 0, 1, 1], [], []>} : vector<256x4xbf16>, vector<4x128xbf16>, vector<256x128xf32> -> vector<256x128xf32>
    %18 = arith.addf %13, %17 : vector<256x128xf32>
    %c0_22 = arith.constant 0 : index
    %c0_23 = arith.constant 0 : index
    %19 = vector.load %arg5[%c0_22, %c0_23] : memref<256x128xf32, #tpu.memory_space<vmem>>, vector<256x128xf32>
    tpu.vector_store %arg5[%c0_22, %c0_23], %18 {strides = array<i32>} : memref<256x128xf32, #tpu.memory_space<vmem>>, vector<256x128xf32>,
    %c0_24 = arith.constant 0 : index
    %c0_25 = arith.constant 0 : index
    %c2 = arith.constant 2 : index
    %c0_26 = arith.constant 0 : index
    %20 = vector.load %arg1[%c0_24, %c0_25, %c2, %c0_26] : memref<1x18x18x4xbf16, #tpu.memory_space<vmem>>, vector<1x16x16x4xbf16>
    %21 = vector.shape_cast %20 : vector<1x16x16x4xbf16> to vector<16x16x4xbf16>
    %c0_27 = arith.constant 0 : index
    %c0_28 = arith.constant 0 : index
    %22 = vector.load %arg5[%c0_27, %c0_28] : memref<256x128xf32, #tpu.memory_space<vmem>>, vector<256x128xf32>
    %23 = vector.shape_cast %21 : vector<16x16x4xbf16> to vector<256x4xbf16>
    %c2_29 = arith.constant 2 : index
    %c0_30 = arith.constant 0 : index
    %c0_31 = arith.constant 0 : index
    %24 = vector.load %arg2[%c2_29, %c0_30, %c0_31] : memref<9x4x128xbf16, #tpu.memory_space<vmem>>, vector<1x4x128xbf16>
    %25 = vector.shape_cast %24 : vector<1x4x128xbf16> to vector<4x128xbf16>
    %cst_32 = arith.constant dense<0.000000e+00> : vector<256x128xf32>
    %26 = tpu.matmul %23, %25, %cst_32 {dimension_numbers = #tpu.dot_dimension_numbers<[1], [0], [0], [1], [0, 0, 1, 1], [], []>} : vector<256x4xbf16>, vector<4x128xbf16>, vector<256x128xf32> -> vector<256x128xf32>
    %27 = arith.addf %22, %26 : vector<256x128xf32>
    %c0_33 = arith.constant 0 : index
    %c0_34 = arith.constant 0 : index
    %28 = vector.load %arg5[%c0_33, %c0_34] : memref<256x128xf32, #tpu.memory_space<vmem>>, vector<256x128xf32>
    tpu.vector_store %arg5[%c0_33, %c0_34], %27 {strides = array<i32>} : memref<256x128xf32, #tpu.memory_space<vmem>>, vector<256x128xf32>,
    %c0_35 = arith.constant 0 : index
    %c1_36 = arith.constant 1 : index
    %c0_37 = arith.constant 0 : index
    %c0_38 = arith.constant 0 : index
    %29 = vector.load %arg1[%c0_35, %c1_36, %c0_37, %c0_38] : memref<1x18x18x4xbf16, #tpu.memory_space<vmem>>, vector<1x16x16x4xbf16>
    %30 = vector.shape_cast %29 : vector<1x16x16x4xbf16> to vector<16x16x4xbf16>
    %c0_39 = arith.constant 0 : index
    %c0_40 = arith.constant 0 : index
    %31 = vector.load %arg5[%c0_39, %c0_40] : memref<256x128xf32, #tpu.memory_space<vmem>>, vector<256x128xf32>
    %32 = vector.shape_cast %30 : vector<16x16x4xbf16> to vector<256x4xbf16>
    %c3 = arith.constant 3 : index
    %c0_41 = arith.constant 0 : index
    %c0_42 = arith.constant 0 : index
    %33 = vector.load %arg2[%c3, %c0_41, %c0_42] : memref<9x4x128xbf16, #tpu.memory_space<vmem>>, vector<1x4x128xbf16>
    %34 = vector.shape_cast %33 : vector<1x4x128xbf16> to vector<4x128xbf16>
    %cst_43 = arith.constant dense<0.000000e+00> : vector<256x128xf32>
    %35 = tpu.matmul %32, %34, %cst_43 {dimension_numbers = #tpu.dot_dimension_numbers<[1], [0], [0], [1], [0, 0, 1, 1], [], []>} : vector<256x4xbf16>, vector<4x128xbf16>, vector<256x128xf32> -> vector<256x128xf32>
    %36 = arith.addf %31, %35 : vector<256x128xf32>
    %c0_44 = arith.constant 0 : index
    %c0_45 = arith.constant 0 : index
    %37 = vector.load %arg5[%c0_44, %c0_45] : memref<256x128xf32, #tpu.memory_space<vmem>>, vector<256x128xf32>
    tpu.vector_store %arg5[%c0_44, %c0_45], %36 {strides = array<i32>} : memref<256x128xf32, #tpu.memory_space<vmem>>, vector<256x128xf32>,
    %c0_46 = arith.constant 0 : index
    %c1_47 = arith.constant 1 : index
    %c1_48 = arith.constant 1 : index
    %c0_49 = arith.constant 0 : index
    %38 = vector.load %arg1[%c0_46, %c1_47, %c1_48, %c0_49] : memref<1x18x18x4xbf16, #tpu.memory_space<vmem>>, vector<1x16x16x4xbf16>
    %39 = vector.shape_cast %38 : vector<1x16x16x4xbf16> to vector<16x16x4xbf16>
    %c0_50 = arith.constant 0 : index
    %c0_51 = arith.constant 0 : index
    %40 = vector.load %arg5[%c0_50, %c0_51] : memref<256x128xf32, #tpu.memory_space<vmem>>, vector<256x128xf32>
    %41 = vector.shape_cast %39 : vector<16x16x4xbf16> to vector<256x4xbf16>
    %c4 = arith.constant 4 : index
    %c0_52 = arith.constant 0 : index
    %c0_53 = arith.constant 0 : index
    %42 = vector.load %arg2[%c4, %c0_52, %c0_53] : memref<9x4x128xbf16, #tpu.memory_space<vmem>>, vector<1x4x128xbf16>
    %43 = vector.shape_cast %42 : vector<1x4x128xbf16> to vector<4x128xbf16>
    %cst_54 = arith.constant dense<0.000000e+00> : vector<256x128xf32>
    %44 = tpu.matmul %41, %43, %cst_54 {dimension_numbers = #tpu.dot_dimension_numbers<[1], [0], [0], [1], [0, 0, 1, 1], [], []>} : vector<256x4xbf16>, vector<4x128xbf16>, vector<256x128xf32> -> vector<256x128xf32>
    %45 = arith.addf %40, %44 : vector<256x128xf32>
    %c0_55 = arith.constant 0 : index
    %c0_56 = arith.constant 0 : index
    %46 = vector.load %arg5[%c0_55, %c0_56] : memref<256x128xf32, #tpu.memory_space<vmem>>, vector<256x128xf32>
    tpu.vector_store %arg5[%c0_55, %c0_56], %45 {strides = array<i32>} : memref<256x128xf32, #tpu.memory_space<vmem>>, vector<256x128xf32>,
    %c0_57 = arith.constant 0 : index
    %c1_58 = arith.constant 1 : index
    %c2_59 = arith.constant 2 : index
    %c0_60 = arith.constant 0 : index
    %47 = vector.load %arg1[%c0_57, %c1_58, %c2_59, %c0_60] : memref<1x18x18x4xbf16, #tpu.memory_space<vmem>>, vector<1x16x16x4xbf16>
    %48 = vector.shape_cast %47 : vector<1x16x16x4xbf16> to vector<16x16x4xbf16>
    %c0_61 = arith.constant 0 : index
    %c0_62 = arith.constant 0 : index
    %49 = vector.load %arg5[%c0_61, %c0_62] : memref<256x128xf32, #tpu.memory_space<vmem>>, vector<256x128xf32>
    %50 = vector.shape_cast %48 : vector<16x16x4xbf16> to vector<256x4xbf16>
    %c5 = arith.constant 5 : index
    %c0_63 = arith.constant 0 : index
    %c0_64 = arith.constant 0 : index
    %51 = vector.load %arg2[%c5, %c0_63, %c0_64] : memref<9x4x128xbf16, #tpu.memory_space<vmem>>, vector<1x4x128xbf16>
    %52 = vector.shape_cast %51 : vector<1x4x128xbf16> to vector<4x128xbf16>
    %cst_65 = arith.constant dense<0.000000e+00> : vector<256x128xf32>
    %53 = tpu.matmul %50, %52, %cst_65 {dimension_numbers = #tpu.dot_dimension_numbers<[1], [0], [0], [1], [0, 0, 1, 1], [], []>} : vector<256x4xbf16>, vector<4x128xbf16>, vector<256x128xf32> -> vector<256x128xf32>
    %54 = arith.addf %49, %53 : vector<256x128xf32>
    %c0_66 = arith.constant 0 : index
    %c0_67 = arith.constant 0 : index
    %55 = vector.load %arg5[%c0_66, %c0_67] : memref<256x128xf32, #tpu.memory_space<vmem>>, vector<256x128xf32>
    tpu.vector_store %arg5[%c0_66, %c0_67], %54 {strides = array<i32>} : memref<256x128xf32, #tpu.memory_space<vmem>>, vector<256x128xf32>,
    %c0_68 = arith.constant 0 : index
    %c2_69 = arith.constant 2 : index
    %c0_70 = arith.constant 0 : index
    %c0_71 = arith.constant 0 : index
    %56 = vector.load %arg1[%c0_68, %c2_69, %c0_70, %c0_71] : memref<1x18x18x4xbf16, #tpu.memory_space<vmem>>, vector<1x16x16x4xbf16>
    %57 = vector.shape_cast %56 : vector<1x16x16x4xbf16> to vector<16x16x4xbf16>
    %c0_72 = arith.constant 0 : index
    %c0_73 = arith.constant 0 : index
    %58 = vector.load %arg5[%c0_72, %c0_73] : memref<256x128xf32, #tpu.memory_space<vmem>>, vector<256x128xf32>
    %59 = vector.shape_cast %57 : vector<16x16x4xbf16> to vector<256x4xbf16>
    %c6 = arith.constant 6 : index
    %c0_74 = arith.constant 0 : index
    %c0_75 = arith.constant 0 : index
    %60 = vector.load %arg2[%c6, %c0_74, %c0_75] : memref<9x4x128xbf16, #tpu.memory_space<vmem>>, vector<1x4x128xbf16>
    %61 = vector.shape_cast %60 : vector<1x4x128xbf16> to vector<4x128xbf16>
    %cst_76 = arith.constant dense<0.000000e+00> : vector<256x128xf32>
    %62 = tpu.matmul %59, %61, %cst_76 {dimension_numbers = #tpu.dot_dimension_numbers<[1], [0], [0], [1], [0, 0, 1, 1], [], []>} : vector<256x4xbf16>, vector<4x128xbf16>, vector<256x128xf32> -> vector<256x128xf32>
    %63 = arith.addf %58, %62 : vector<256x128xf32>
    %c0_77 = arith.constant 0 : index
    %c0_78 = arith.constant 0 : index
    %64 = vector.load %arg5[%c0_77, %c0_78] : memref<256x128xf32, #tpu.memory_space<vmem>>, vector<256x128xf32>
    tpu.vector_store %arg5[%c0_77, %c0_78], %63 {strides = array<i32>} : memref<256x128xf32, #tpu.memory_space<vmem>>, vector<256x128xf32>,
    %c0_79 = arith.constant 0 : index
    %c2_80 = arith.constant 2 : index
    %c1_81 = arith.constant 1 : index
    %c0_82 = arith.constant 0 : index
    %65 = vector.load %arg1[%c0_79, %c2_80, %c1_81, %c0_82] : memref<1x18x18x4xbf16, #tpu.memory_space<vmem>>, vector<1x16x16x4xbf16>
    %66 = vector.shape_cast %65 : vector<1x16x16x4xbf16> to vector<16x16x4xbf16>
    %c0_83 = arith.constant 0 : index
    %c0_84 = arith.constant 0 : index
    %67 = vector.load %arg5[%c0_83, %c0_84] : memref<256x128xf32, #tpu.memory_space<vmem>>, vector<256x128xf32>
    %68 = vector.shape_cast %66 : vector<16x16x4xbf16> to vector<256x4xbf16>
    %c7 = arith.constant 7 : index
    %c0_85 = arith.constant 0 : index
    %c0_86 = arith.constant 0 : index
    %69 = vector.load %arg2[%c7, %c0_85, %c0_86] : memref<9x4x128xbf16, #tpu.memory_space<vmem>>, vector<1x4x128xbf16>
    %70 = vector.shape_cast %69 : vector<1x4x128xbf16> to vector<4x128xbf16>
    %cst_87 = arith.constant dense<0.000000e+00> : vector<256x128xf32>
    %71 = tpu.matmul %68, %70, %cst_87 {dimension_numbers = #tpu.dot_dimension_numbers<[1], [0], [0], [1], [0, 0, 1, 1], [], []>} : vector<256x4xbf16>, vector<4x128xbf16>, vector<256x128xf32> -> vector<256x128xf32>
    %72 = arith.addf %67, %71 : vector<256x128xf32>
    %c0_88 = arith.constant 0 : index
    %c0_89 = arith.constant 0 : index
    %73 = vector.load %arg5[%c0_88, %c0_89] : memref<256x128xf32, #tpu.memory_space<vmem>>, vector<256x128xf32>
    tpu.vector_store %arg5[%c0_88, %c0_89], %72 {strides = array<i32>} : memref<256x128xf32, #tpu.memory_space<vmem>>, vector<256x128xf32>,
    %c0_90 = arith.constant 0 : index
    %c2_91 = arith.constant 2 : index
    %c2_92 = arith.constant 2 : index
    %c0_93 = arith.constant 0 : index
    %74 = vector.load %arg1[%c0_90, %c2_91, %c2_92, %c0_93] : memref<1x18x18x4xbf16, #tpu.memory_space<vmem>>, vector<1x16x16x4xbf16>
    %75 = vector.shape_cast %74 : vector<1x16x16x4xbf16> to vector<16x16x4xbf16>
    %c0_94 = arith.constant 0 : index
    %c0_95 = arith.constant 0 : index
    %76 = vector.load %arg5[%c0_94, %c0_95] : memref<256x128xf32, #tpu.memory_space<vmem>>, vector<256x128xf32>
    %77 = vector.shape_cast %75 : vector<16x16x4xbf16> to vector<256x4xbf16>
    %c8 = arith.constant 8 : index
    %c0_96 = arith.constant 0 : index
    %c0_97 = arith.constant 0 : index
    %78 = vector.load %arg2[%c8, %c0_96, %c0_97] : memref<9x4x128xbf16, #tpu.memory_space<vmem>>, vector<1x4x128xbf16>
    %79 = vector.shape_cast %78 : vector<1x4x128xbf16> to vector<4x128xbf16>
    %cst_98 = arith.constant dense<0.000000e+00> : vector<256x128xf32>
    %80 = tpu.matmul %77, %79, %cst_98 {dimension_numbers = #tpu.dot_dimension_numbers<[1], [0], [0], [1], [0, 0, 1, 1], [], []>} : vector<256x4xbf16>, vector<4x128xbf16>, vector<256x128xf32> -> vector<256x128xf32>
    %81 = arith.addf %76, %80 : vector<256x128xf32>
    %c0_99 = arith.constant 0 : index
    %c0_100 = arith.constant 0 : index
    %82 = vector.load %arg5[%c0_99, %c0_100] : memref<256x128xf32, #tpu.memory_space<vmem>>, vector<256x128xf32>
    tpu.vector_store %arg5[%c0_99, %c0_100], %81 {strides = array<i32>} : memref<256x128xf32, #tpu.memory_space<vmem>>, vector<256x128xf32>,
    %c0_101 = arith.constant 0 : index
    %c0_102 = arith.constant 0 : index
    %83 = vector.load %arg5[%c0_101, %c0_102] : memref<256x128xf32, #tpu.memory_space<vmem>>, vector<256x128xf32>
    %84 = vector.shape_cast %83 : vector<256x128xf32> to vector<16x16x128xf32>
    %c0_103 = arith.constant 0 : index
    %c0_104 = arith.constant 0 : index
    %c0_105 = arith.constant 0 : index
    %c0_106 = arith.constant 0 : index
    %85 = vector.load %arg3[%c0_103, %c0_104, %c0_105, %c0_106] : memref<1x16x16x128xf32, #tpu.memory_space<vmem>>, vector<1x16x16x128xf32>
    %86 = vector.shape_cast %85 : vector<1x16x16x128xf32> to vector<16x16x128xf32>
    %87 = vector.shape_cast %84 : vector<16x16x128xf32> to vector<1x16x16x128xf32>
    tpu.vector_store %arg3[%c0_103, %c0_104, %c0_105, %c0_106], %87 {strides = array<i32>} : memref<1x16x16x128xf32, #tpu.memory_space<vmem>>, vector<1x16x16x128xf32>,
    %cst_107 = arith.constant dense<0.000000e+00> : vector<128xf32>
    %88 = vector.multi_reduction <add>, %83, %cst_107 [0] : vector<256x128xf32> to vector<128xf32>
    %89 = vector.shape_cast %88 : vector<128xf32> to vector<1x128xf32>
    %90 = arith.mulf %83, %83 : vector<256x128xf32>
    %cst_108 = arith.constant dense<0.000000e+00> : vector<128xf32>
    %91 = vector.multi_reduction <add>, %90, %cst_108 [0] : vector<256x128xf32> to vector<128xf32>
    %92 = vector.shape_cast %91 : vector<128xf32> to vector<1x128xf32>
    %93 = tpu.concatenate %89, %92 in 0 : vector<1x128xf32>, vector<1x128xf32> -> vector<2x128xf32>
    %c0_109 = arith.constant 0 : index
    %c0_110 = arith.constant 0 : index
    %c0_111 = arith.constant 0 : index
    %94 = vector.load %arg4[%c0_109, %c0_110, %c0_111] : memref<1x2x128xf32, #tpu.memory_space<vmem>>, vector<1x2x128xf32>
    %95 = vector.shape_cast %94 : vector<1x2x128xf32> to vector<2x128xf32>
    %96 = vector.shape_cast %93 : vector<2x128xf32> to vector<1x2x128xf32>
    tpu.vector_store %arg4[%c0_109, %c0_110, %c0_111], %96 {strides = array<i32>} : memref<1x2x128xf32, #tpu.memory_space<vmem>>, vector<1x2x128xf32>,
    return
  }
  func.func @transform_0(%arg0: i32) -> (i32, i32, i32, i32) {
    %c0_i32 = arith.constant 0 : i32
    %c0_i32_0 = arith.constant 0 : i32
    %c0_i32_1 = arith.constant 0 : i32
    %c0_i32_2 = arith.constant 0 : i32
    return %arg0, %c0_i32, %c0_i32_0, %c0_i32_1 : i32, i32, i32, i32
  }
  func.func @transform_1(%arg0: i32) -> (i32, i32, i32) {
    %c0_i32 = arith.constant 0 : i32
    %c0_i32_0 = arith.constant 0 : i32
    %c0_i32_1 = arith.constant 0 : i32
    %c0_i32_2 = arith.constant 0 : i32
    return %c0_i32, %c0_i32_0, %c0_i32_1 : i32, i32, i32
  }
  func.func @transform_2(%arg0: i32) -> (i32, i32, i32, i32) {
    %c0_i32 = arith.constant 0 : i32
    %c0_i32_0 = arith.constant 0 : i32
    %c0_i32_1 = arith.constant 0 : i32
    %c0_i32_2 = arith.constant 0 : i32
    return %arg0, %c0_i32, %c0_i32_0, %c0_i32_1 : i32, i32, i32, i32
  }
  func.func @transform_3(%arg0: i32) -> (i32, i32, i32) {
    %c0_i32 = arith.constant 0 : i32
    %c0_i32_0 = arith.constant 0 : i32
    %c0_i32_1 = arith.constant 0 : i32
    return %arg0, %c0_i32, %c0_i32_0 : i32, i32, i32
  }
}

module attributes {stable_mosaic.version = 11 : i64} {
  func.func @_bn_act_kernel(%arg0: i32, %arg1: memref<1x16x16x128xf32, #tpu.memory_space<vmem>>, %arg2: memref<1x1x128xf32, #tpu.memory_space<vmem>>, %arg3: memref<1x1x128xf32, #tpu.memory_space<vmem>>, %arg4: memref<1x16x16x128xf32, #tpu.memory_space<vmem>>) attributes {dimension_semantics = [#tpu.dimension_semantics<parallel>], iteration_bounds = array<i64: 2>, scalar_prefetch = 0 : i64, scratch_operands = 0 : i64, tpu.core_type = #tpu.core_type<tc>, window_params = [{transform_indices = @transform_0, window_bounds = array<i64: 1, 16, 16, 128>}, {pipeline_mode = #tpu.pipeline_mode<synchronous>, transform_indices = @transform_1, window_bounds = array<i64: 1, 1, 128>}, {pipeline_mode = #tpu.pipeline_mode<synchronous>, transform_indices = @transform_2, window_bounds = array<i64: 1, 1, 128>}, {transform_indices = @transform_3, window_bounds = array<i64: 1, 16, 16, 128>}]} {
    %c0 = arith.constant 0 : index
    %c0_0 = arith.constant 0 : index
    %c0_1 = arith.constant 0 : index
    %c0_2 = arith.constant 0 : index
    %0 = vector.load %arg1[%c0, %c0_0, %c0_1, %c0_2] : memref<1x16x16x128xf32, #tpu.memory_space<vmem>>, vector<1x16x16x128xf32>
    %1 = vector.shape_cast %0 : vector<1x16x16x128xf32> to vector<16x16x128xf32>
    %c0_3 = arith.constant 0 : index
    %c0_4 = arith.constant 0 : index
    %c0_5 = arith.constant 0 : index
    %2 = vector.load %arg2[%c0_3, %c0_4, %c0_5] : memref<1x1x128xf32, #tpu.memory_space<vmem>>, vector<1x1x128xf32>
    %3 = vector.broadcast %2 : vector<1x1x128xf32> to vector<16x16x128xf32>
    %4 = arith.mulf %1, %3 : vector<16x16x128xf32>
    %c0_6 = arith.constant 0 : index
    %c0_7 = arith.constant 0 : index
    %c0_8 = arith.constant 0 : index
    %5 = vector.load %arg3[%c0_6, %c0_7, %c0_8] : memref<1x1x128xf32, #tpu.memory_space<vmem>>, vector<1x1x128xf32>
    %6 = vector.broadcast %5 : vector<1x1x128xf32> to vector<16x16x128xf32>
    %7 = arith.addf %4, %6 : vector<16x16x128xf32>
    %cst = arith.constant 0.000000e+00 : f32
    %8 = vector.broadcast %cst : f32 to vector<16x16x128xf32>
    %9 = arith.cmpf oge, %7, %8 : vector<16x16x128xf32>
    %cst_9 = arith.constant 0.00999999977 : f32
    %10 = vector.broadcast %cst_9 : f32 to vector<16x16x128xf32>
    %11 = arith.mulf %10, %7 : vector<16x16x128xf32>
    %12 = arith.select %9, %7, %11 : vector<16x16x128xi1>, vector<16x16x128xf32>
    %c0_10 = arith.constant 0 : index
    %c0_11 = arith.constant 0 : index
    %c0_12 = arith.constant 0 : index
    %c0_13 = arith.constant 0 : index
    %13 = vector.load %arg4[%c0_10, %c0_11, %c0_12, %c0_13] : memref<1x16x16x128xf32, #tpu.memory_space<vmem>>, vector<1x16x16x128xf32>
    %14 = vector.shape_cast %13 : vector<1x16x16x128xf32> to vector<16x16x128xf32>
    %15 = vector.shape_cast %12 : vector<16x16x128xf32> to vector<1x16x16x128xf32>
    tpu.vector_store %arg4[%c0_10, %c0_11, %c0_12, %c0_13], %15 {strides = array<i32>} : memref<1x16x16x128xf32, #tpu.memory_space<vmem>>, vector<1x16x16x128xf32>,
    return
  }
  func.func @transform_0(%arg0: i32) -> (i32, i32, i32, i32) {
    %c0_i32 = arith.constant 0 : i32
    %c0_i32_0 = arith.constant 0 : i32
    %c0_i32_1 = arith.constant 0 : i32
    %c0_i32_2 = arith.constant 0 : i32
    return %arg0, %c0_i32, %c0_i32_0, %c0_i32_1 : i32, i32, i32, i32
  }
  func.func @transform_1(%arg0: i32) -> (i32, i32, i32) {
    %c0_i32 = arith.constant 0 : i32
    %c0_i32_0 = arith.constant 0 : i32
    %c0_i32_1 = arith.constant 0 : i32
    %c0_i32_2 = arith.constant 0 : i32
    return %c0_i32, %c0_i32_0, %c0_i32_1 : i32, i32, i32
  }
  func.func @transform_2(%arg0: i32) -> (i32, i32, i32) {
    %c0_i32 = arith.constant 0 : i32
    %c0_i32_0 = arith.constant 0 : i32
    %c0_i32_1 = arith.constant 0 : i32
    %c0_i32_2 = arith.constant 0 : i32
    return %c0_i32, %c0_i32_0, %c0_i32_1 : i32, i32, i32
  }
  func.func @transform_3(%arg0: i32) -> (i32, i32, i32, i32) {
    %c0_i32 = arith.constant 0 : i32
    %c0_i32_0 = arith.constant 0 : i32
    %c0_i32_1 = arith.constant 0 : i32
    %c0_i32_2 = arith.constant 0 : i32
    return %arg0, %c0_i32, %c0_i32_0, %c0_i32_1 : i32, i32, i32, i32
  }
}

</mosaic_0001>

<llo_original>
// kernel: basic_conv2d.3
$region0: #{basic_conv2d.3}
  #allocation0 [shape = 'u32[]', space=smem, size = 0x4, offset = 0x4, fixed_abs, tag = 'smem constant byte address 0x4 - core index']
  #allocation1 [shape = 'u32[144,128]{1,0:T(1,128)}', space=vmem, size = 0x12000, scoped, tag = 'internal scratch']
  %s0 = inlined_call_operand.vmem [shape: f32[2,16,16,128], index: 0, kind: input, shape index: {}]
  %s1 = inlined_call_operand.vmem [shape: f32[1,1,128], index: 1, kind: input, shape index: {}]
  %s2 = inlined_call_operand.vmem [shape: f32[1,1,128], index: 2, kind: input, shape index: {}]
  %s3 = inlined_call_operand.vmem [shape: f32[2,16,16,128], index: 3, kind: output, shape index: {}]
  %s4 = sld [smem:[#allocation0]]
  $region45: #{basic_conv2d.3} parent=0
    _
  %s6 = ssub.s32 1, %s4
  %s7 = scalar_select 0, %s6, %s4
  loop: start=0, step=1, limit=4
  $region2: #{basic_conv2d.3} parent=0 // loop_pre_header
    _
  $region3: #{basic_conv2d.3} parent=0 // loop_header
    %s9 = sphi 0, %s13
    %p10 = scmp.ge.s32.totalorder %s9, 4
    %s19 = sphi 0, %s21
    %s22 = sphi 0, %s19
    %s23 = sphi 0, %s22
    %s39 = sphi 0, %s23
    %s43 = sphi 0, %s43
    %s45 = sphi 0, %s43
    %s46 = sphi 0, %s45
    %s60 = sphi 0, %s46
    %s64 = sphi 0, %s64
    %s66 = sphi 0, %s64
    %s67 = sphi 0, %s66
    %s81 = sphi 0, %s67
    %s87 = sphi 0, %s89
    %s90 = sphi 0, %s87
    %s91 = sphi 0, %s90
    %s107 = sphi 0, %s91
  $region4: #{basic_conv2d.3} parent=0 // loop_header_branch
    %12 = sbr.rel (%p10) target = $region8
  $region5: #{basic_conv2d.3} parent=0 // loop_body
    %s14 = ssub.s32 %s9, 1
    %s15 = ssub.s32 %s9, 2
    %s16 = sadd.s32 %s9, 1
    %s17 = ssub.s32 %s9, %s16
    %p18 = scmp.eq.s32.totalorder %s17, 0
    %s20 = sadd.s32 %s19, 1
    %s21 = scalar_select %p18, %s19, %s20
    %p24 = pneg %p18
    %p25 = scmp.eq.s32.totalorder %s9, 1
    %p26 = por %p24, %p25
    %p27 = scmp.ne.s32.totalorder %s19, %s22
    %p28 = scmp.eq.s32.totalorder %s9, 0
    %p29 = por %p27, %p28
    %p30 = scmp.ne.s32.totalorder %s19, %s22
    %p31 = scmp.eq.s32.totalorder %s14, 1
    %p32 = por %p30, %p31
    %p33 = scmp.ne.s32.totalorder %s22, %s23
    %p34 = scmp.eq.s32.totalorder %s14, 0
    %p35 = por %p33, %p34
    %p36 = scmp.ne.s32.totalorder %s22, %s23
    %p37 = scmp.eq.s32.totalorder %s15, 1
    %p38 = por %p36, %p37
    %p40 = scmp.ne.s32.totalorder %s23, %s39
    %p41 = scmp.eq.s32.totalorder %s15, 0
    %p42 = por %p40, %p41
    %s44 = sadd.s32 %s43, 1
    %p47 = scmp.eq.s32.totalorder %s9, 1
    %p48 = scmp.ne.s32.totalorder %s43, %s45
    %p49 = scmp.eq.s32.totalorder %s9, 0
    %p50 = por %p48, %p49
    %p51 = scmp.ne.s32.totalorder %s43, %s45
    %p52 = scmp.eq.s32.totalorder %s14, 1
    %p53 = por %p51, %p52
    %p54 = scmp.ne.s32.totalorder %s45, %s46
    %p55 = scmp.eq.s32.totalorder %s14, 0
    %p56 = por %p54, %p55
    %p57 = scmp.ne.s32.totalorder %s45, %s46
    %p58 = scmp.eq.s32.totalorder %s15, 1
    %p59 = por %p57, %p58
    %p61 = scmp.ne.s32.totalorder %s46, %s60
    %p62 = scmp.eq.s32.totalorder %s15, 0
    %p63 = por %p61, %p62
    %s65 = sadd.s32 %s64, 1
    %p68 = scmp.eq.s32.totalorder %s9, 1
    %p69 = scmp.ne.s32.totalorder %s64, %s66
    %p70 = scmp.eq.s32.totalorder %s9, 0
    %p71 = por %p69, %p70
    %p72 = scmp.ne.s32.totalorder %s64, %s66
    %p73 = scmp.eq.s32.totalorder %s14, 1
    %p74 = por %p72, %p73
    %p75 = scmp.ne.s32.totalorder %s66, %s67
    %p76 = scmp.eq.s32.totalorder %s14, 0
    %p77 = por %p75, %p76
    %p78 = scmp.ne.s32.totalorder %s66, %s67
    %p79 = scmp.eq.s32.totalorder %s15, 1
    %p80 = por %p78, %p79
    %p82 = scmp.ne.s32.totalorder %s67, %s81
    %p83 = scmp.eq.s32.totalorder %s15, 0
    %p84 = por %p82, %p83
    %s85 = ssub.s32 %s9, %s16
    %p86 = scmp.eq.s32.totalorder %s85, 0
    %s88 = sadd.s32 %s87, 1
    %s89 = scalar_select %p86, %s87, %s88
    %p92 = pneg %p86
    %p93 = scmp.eq.s32.totalorder %s9, 1
    %p94 = por %p92, %p93
    %p95 = scmp.ne.s32.totalorder %s87, %s90
    %p96 = scmp.eq.s32.totalorder %s9, 0
    %p97 = por %p95, %p96
    %p98 = scmp.ne.s32.totalorder %s87, %s90
    %p99 = scmp.eq.s32.totalorder %s14, 1
    %p100 = por %p98, %p99
    %p101 = scmp.ne.s32.totalorder %s90, %s91
    %p102 = scmp.eq.s32.totalorder %s14, 0
    %p103 = por %p101, %p102
    %p104 = scmp.ne.s32.totalorder %s90, %s91
    %p105 = scmp.eq.s32.totalorder %s15, 1
    %p106 = por %p104, %p105
    %p108 = scmp.ne.s32.totalorder %s91, %s107
    %p109 = scmp.eq.s32.totalorder %s15, 0
    %p110 = por %p108, %p109
    %p111 = scmp.le.s32.totalorder 1, %s9
    %p112 = scmp.lt.s32.totalorder %s9, 3
    %p113 = pnand %p111, %p112
    %p114 = pneg %p113
    // Predicated region
    $region9: #{basic_conv2d.3} parent=5 // pred_check
      _
    $region10: #{basic_conv2d.3} parent=5 // pred_check_branch
      %116 = sbr.rel (%p113) target = $region12
    $region11: #{basic_conv2d.3} parent=5 // pred_region
      %s117 = ssub.s32 %s9, 1
      // Predicated region
      $region13: #{basic_conv2d.3} parent=11 // pred_check
        %p118 = pneg %p56
      $region14: #{basic_conv2d.3} parent=11 // pred_check_branch
        %120 = sbr.rel (%p118) target = $region16
      $region15: #{basic_conv2d.3} parent=11 // pred_region
        _
      $region16: #{basic_conv2d.3} parent=11 // pred_fallthru
        _
      // Predicated region
      $region17: #{basic_conv2d.3} parent=11 // pred_check
        %p121 = pneg %p77
      $region18: #{basic_conv2d.3} parent=11 // pred_check_branch
        %123 = sbr.rel (%p121) target = $region20
      $region19: #{basic_conv2d.3} parent=11 // pred_region
        _
      $region20: #{basic_conv2d.3} parent=11 // pred_fallthru
        _
    $region12: #{basic_conv2d.3} parent=5 // pred_fallthru
      _
    %p124 = scmp.lt.s32.totalorder %s9, 2
    // Predicated region
    $region21: #{basic_conv2d.3} parent=5 // pred_check
      %p125 = pneg %p124
    $region22: #{basic_conv2d.3} parent=5 // pred_check_branch
      %127 = sbr.rel (%p125) target = $region24
    $region23: #{basic_conv2d.3} parent=5 // pred_region
      // Predicated region
      $region25: #{basic_conv2d.3} parent=23 // pred_check
        %p128 = pneg %p29
      $region26: #{basic_conv2d.3} parent=23 // pred_check_branch
        %130 = sbr.rel (%p128) target = $region28
      $region27: #{basic_conv2d.3} parent=23 // pred_region
        %p131 = scmp.lt.s32.totalorder %s9, 1
        %s132 = scalar_select %p131, %s9, 1
        %s133 = smul.addr %s132, 32
        %s134 = smul.addr %s133, 8
        %s135 = scalar_lea.vmem %s0, %s134
      $region28: #{basic_conv2d.3} parent=23 // pred_fallthru
        _
    $region24: #{basic_conv2d.3} parent=5 // pred_fallthru
      _
    %p136 = scmp.le.s32.totalorder 1, %s9
    %p137 = scmp.lt.s32.totalorder %s9, 3
    %p138 = pnand %p136, %p137
    %p139 = pneg %p138
    // Predicated region
    $region29: #{basic_conv2d.3} parent=5 // pred_check
      _
    $region30: #{basic_conv2d.3} parent=5 // pred_check_branch
      %141 = sbr.rel (%p138) target = $region32
    $region31: #{basic_conv2d.3} parent=5 // pred_region
      %s142 = ssub.s32 %s9, 1
      %p143 = scmp.lt.s32.totalorder %s14, 1
      %s144 = scalar_select %p143, %s14, 1
      %s145 = smul.addr %s144, 32
      %s146 = smul.addr %s145, 8
      %s147 = scalar_lea.vmem %s0, %s146
      %p148 = pneg %p35
      %p149 = pneg %p32
      %p150 = pneg %p56
      %p151 = pneg %p53
      %p152 = pneg %p77
      %p153 = pneg %p74
      %p154 = pneg %p103
      %p155 = pneg %p100
      %p156 = scmp.lt.s32.totalorder %s14, 1
      %s157 = scalar_select %p156, %s14, 1
      %s158 = smul.addr %s157, 32
      %s159 = smul.addr %s158, 8
      %s160 = scalar_lea.vmem %s3, %s159
      %p161 = scmp.lt.s32.totalorder %s14, 1
      %s162 = scalar_select %p161, %s14, 1
      %s163 = smul.addr %s162, 32
      %s164 = smul.addr %s163, 8
      %s165 = scalar_lea.vmem %s0, %s164
      %p166 = scmp.lt.s32.totalorder %s14, 1
      %s167 = scalar_select %p166, %s14, 1
      %s168 = smul.addr %s167, 32
      %s169 = smul.addr %s168, 8
      %s170 = scalar_lea.vmem %s3, %s169
      %v171 = vld [vmem:[%s165] sm:$0xff]
      %v172 = vld [vmem:[%s165 + $0x8] sm:$0xff]
      %v173 = vld [vmem:[%s165 + $0x10] sm:$0xff]
      %v174 = vld [vmem:[%s165 + $0x18] sm:$0xff]
      %v175 = vld [vmem:[%s165 + $0x20] sm:$0xff]
      %v176 = vld [vmem:[%s165 + $0x28] sm:$0xff]
      %v177 = vld [vmem:[%s165 + $0x30] sm:$0xff]
      %v178 = vld [vmem:[%s165 + $0x38] sm:$0xff]
      %v179 = vld [vmem:[%s165 + $0x40] sm:$0xff]
      %v180 = vld [vmem:[%s165 + $0x48] sm:$0xff]
      %v181 = vld [vmem:[%s165 + $0x50] sm:$0xff]
      %v182 = vld [vmem:[%s165 + $0x58] sm:$0xff]
      %v183 = vld [vmem:[%s165 + $0x60] sm:$0xff]
      %v184 = vld [vmem:[%s165 + $0x68] sm:$0xff]
      %v185 = vld [vmem:[%s165 + $0x70] sm:$0xff]
      %v186 = vld [vmem:[%s165 + $0x78] sm:$0xff]
      %v187 = vld [vmem:[%s165 + $0x80] sm:$0xff]
      %v188 = vld [vmem:[%s165 + $0x88] sm:$0xff]
      %v189 = vld [vmem:[%s165 + $0x90] sm:$0xff]
      %v190 = vld [vmem:[%s165 + $0x98] sm:$0xff]
      %v191 = vld [vmem:[%s165 + $0xa0] sm:$0xff]
      %v192 = vld [vmem:[%s165 + $0xa8] sm:$0xff]
      %v193 = vld [vmem:[%s165 + $0xb0] sm:$0xff]
      %v194 = vld [vmem:[%s165 + $0xb8] sm:$0xff]
      %v195 = vld [vmem:[%s165 + $0xc0] sm:$0xff]
      %v196 = vld [vmem:[%s165 + $0xc8] sm:$0xff]
      %v197 = vld [vmem:[%s165 + $0xd0] sm:$0xff]
      %v198 = vld [vmem:[%s165 + $0xd8] sm:$0xff]
      %v199 = vld [vmem:[%s165 + $0xe0] sm:$0xff]
      %v200 = vld [vmem:[%s165 + $0xe8] sm:$0xff]
      %v201 = vld [vmem:[%s165 + $0xf0] sm:$0xff]
      %v202 = vld [vmem:[%s165 + $0xf8] sm:$0xff]
      %v203 = vld [vmem:[%s1] sm:$0x1]
      %v205 = vlaneseq
      %v206 = vshrl.u32 %v205, 7
      %v207 = vsub.s32 0, %v206
      %v208 = vrot.slane %v203, %v207
      %v210 = vmul.f32 %v171, %v208
      %v211 = vmul.f32 %v172, %v208
      %v212 = vmul.f32 %v173, %v208
      %v213 = vmul.f32 %v174, %v208
      %v214 = vmul.f32 %v175, %v208
      %v215 = vmul.f32 %v176, %v208
      %v216 = vmul.f32 %v177, %v208
      %v217 = vmul.f32 %v178, %v208
      %v218 = vmul.f32 %v179, %v208
      %v219 = vmul.f32 %v180, %v208
      %v220 = vmul.f32 %v181, %v208
      %v221 = vmul.f32 %v182, %v208
      %v222 = vmul.f32 %v183, %v208
      %v223 = vmul.f32 %v184, %v208
      %v224 = vmul.f32 %v185, %v208
      %v225 = vmul.f32 %v186, %v208
      %v226 = vmul.f32 %v187, %v208
      %v227 = vmul.f32 %v188, %v208
      %v228 = vmul.f32 %v189, %v208
      %v229 = vmul.f32 %v190, %v208
      %v230 = vmul.f32 %v191, %v208
      %v231 = vmul.f32 %v192, %v208
      %v232 = vmul.f32 %v193, %v208
      %v233 = vmul.f32 %v194, %v208
      %v234 = vmul.f32 %v195, %v208
      %v235 = vmul.f32 %v196, %v208
      %v236 = vmul.f32 %v197, %v208
      %v237 = vmul.f32 %v198, %v208
      %v238 = vmul.f32 %v199, %v208
      %v239 = vmul.f32 %v200, %v208
      %v240 = vmul.f32 %v201, %v208
      %v241 = vmul.f32 %v202, %v208
      %v242 = vld [vmem:[%s2] sm:$0x1]
      %v244 = vlaneseq
      %v245 = vshrl.u32 %v244, 7
      %v246 = vsub.s32 0, %v245
      %v247 = vrot.slane %v242, %v246
      %v249 = vadd.f32 %v210, %v247
      %v250 = vadd.f32 %v211, %v247
      %v251 = vadd.f32 %v212, %v247
      %v252 = vadd.f32 %v213, %v247
      %v253 = vadd.f32 %v214, %v247
      %v254 = vadd.f32 %v215, %v247
      %v255 = vadd.f32 %v216, %v247
      %v256 = vadd.f32 %v217, %v247
      %v257 = vadd.f32 %v218, %v247
      %v258 = vadd.f32 %v219, %v247
      %v259 = vadd.f32 %v220, %v247
      %v260 = vadd.f32 %v221, %v247
      %v261 = vadd.f32 %v222, %v247
      %v262 = vadd.f32 %v223, %v247
      %v263 = vadd.f32 %v224, %v247
      %v264 = vadd.f32 %v225, %v247
      %v265 = vadd.f32 %v226, %v247
      %v266 = vadd.f32 %v227, %v247
      %v267 = vadd.f32 %v228, %v247
      %v268 = vadd.f32 %v229, %v247
      %v269 = vadd.f32 %v230, %v247
      %v270 = vadd.f32 %v231, %v247
      %v271 = vadd.f32 %v232, %v247
      %v272 = vadd.f32 %v233, %v247
      %v273 = vadd.f32 %v234, %v247
      %v274 = vadd.f32 %v235, %v247
      %v275 = vadd.f32 %v236, %v247
      %v276 = vadd.f32 %v237, %v247
      %v277 = vadd.f32 %v238, %v247
      %v278 = vadd.f32 %v239, %v247
      %v279 = vadd.f32 %v240, %v247
      %v280 = vadd.f32 %v241, %v247
      %vm281 = vcmp.ge.f32.partialorder %v249, 0.0
      %vm282 = vcmp.ge.f32.partialorder %v250, 0.0
      %vm283 = vcmp.ge.f32.partialorder %v251, 0.0
      %vm284 = vcmp.ge.f32.partialorder %v252, 0.0
      %vm285 = vcmp.ge.f32.partialorder %v253, 0.0
      %vm286 = vcmp.ge.f32.partialorder %v254, 0.0
      %vm287 = vcmp.ge.f32.partialorder %v255, 0.0
      %vm288 = vcmp.ge.f32.partialorder %v256, 0.0
      %vm289 = vcmp.ge.f32.partialorder %v257, 0.0
      %vm290 = vcmp.ge.f32.partialorder %v258, 0.0
      %vm291 = vcmp.ge.f32.partialorder %v259, 0.0
      %vm292 = vcmp.ge.f32.partialorder %v260, 0.0
      %vm293 = vcmp.ge.f32.partialorder %v261, 0.0
      %vm294 = vcmp.ge.f32.partialorder %v262, 0.0
      %vm295 = vcmp.ge.f32.partialorder %v263, 0.0
      %vm296 = vcmp.ge.f32.partialorder %v264, 0.0
      %vm297 = vcmp.ge.f32.partialorder %v265, 0.0
      %vm298 = vcmp.ge.f32.partialorder %v266, 0.0
      %vm299 = vcmp.ge.f32.partialorder %v267, 0.0
      %vm300 = vcmp.ge.f32.partialorder %v268, 0.0
      %vm301 = vcmp.ge.f32.partialorder %v269, 0.0
      %vm302 = vcmp.ge.f32.partialorder %v270, 0.0
      %vm303 = vcmp.ge.f32.partialorder %v271, 0.0
      %vm304 = vcmp.ge.f32.partialorder %v272, 0.0
      %vm305 = vcmp.ge.f32.partialorder %v273, 0.0
      %vm306 = vcmp.ge.f32.partialorder %v274, 0.0
      %vm307 = vcmp.ge.f32.partialorder %v275, 0.0
      %vm308 = vcmp.ge.f32.partialorder %v276, 0.0
      %vm309 = vcmp.ge.f32.partialorder %v277, 0.0
      %vm310 = vcmp.ge.f32.partialorder %v278, 0.0
      %vm311 = vcmp.ge.f32.partialorder %v279, 0.0
      %vm312 = vcmp.ge.f32.partialorder %v280, 0.0
      %v313 = vmul.f32 %v249, 0.01
      %v314 = vmul.f32 %v250, 0.01
      %v315 = vmul.f32 %v251, 0.01
      %v316 = vmul.f32 %v252, 0.01
      %v317 = vmul.f32 %v253, 0.01
      %v318 = vmul.f32 %v254, 0.01
      %v319 = vmul.f32 %v255, 0.01
      %v320 = vmul.f32 %v256, 0.01
      %v321 = vmul.f32 %v257, 0.01
      %v322 = vmul.f32 %v258, 0.01
      %v323 = vmul.f32 %v259, 0.01
      %v324 = vmul.f32 %v260, 0.01
      %v325 = vmul.f32 %v261, 0.01
      %v326 = vmul.f32 %v262, 0.01
      %v327 = vmul.f32 %v263, 0.01
      %v328 = vmul.f32 %v264, 0.01
      %v329 = vmul.f32 %v265, 0.01
      %v330 = vmul.f32 %v266, 0.01
      %v331 = vmul.f32 %v267, 0.01
      %v332 = vmul.f32 %v268, 0.01
      %v333 = vmul.f32 %v269, 0.01
      %v334 = vmul.f32 %v270, 0.01
      %v335 = vmul.f32 %v271, 0.01
      %v336 = vmul.f32 %v272, 0.01
      %v337 = vmul.f32 %v273, 0.01
      %v338 = vmul.f32 %v274, 0.01
      %v339 = vmul.f32 %v275, 0.01
      %v340 = vmul.f32 %v276, 0.01
      %v341 = vmul.f32 %v277, 0.01
      %v342 = vmul.f32 %v278, 0.01
      %v343 = vmul.f32 %v279, 0.01
      %v344 = vmul.f32 %v280, 0.01
      %v345 = vsel %vm281, %v249, %v313
      %v346 = vsel %vm282, %v250, %v314
      %v347 = vsel %vm283, %v251, %v315
      %v348 = vsel %vm284, %v252, %v316
      %v349 = vsel %vm285, %v253, %v317
      %v350 = vsel %vm286, %v254, %v318
      %v351 = vsel %vm287, %v255, %v319
      %v352 = vsel %vm288, %v256, %v320
      %v353 = vsel %vm289, %v257, %v321
      %v354 = vsel %vm290, %v258, %v322
      %v355 = vsel %vm291, %v259, %v323
      %v356 = vsel %vm292, %v260, %v324
      %v357 = vsel %vm293, %v261, %v325
      %v358 = vsel %vm294, %v262, %v326
      %v359 = vsel %vm295, %v263, %v327
      %v360 = vsel %vm296, %v264, %v328
      %v361 = vsel %vm297, %v265, %v329
      %v362 = vsel %vm298, %v266, %v330
      %v363 = vsel %vm299, %v267, %v331
      %v364 = vsel %vm300, %v268, %v332
      %v365 = vsel %vm301, %v269, %v333
      %v366 = vsel %vm302, %v270, %v334
      %v367 = vsel %vm303, %v271, %v335
      %v368 = vsel %vm304, %v272, %v336
      %v369 = vsel %vm305, %v273, %v337
      %v370 = vsel %vm306, %v274, %v338
      %v371 = vsel %vm307, %v275, %v339
      %v372 = vsel %vm308, %v276, %v340
      %v373 = vsel %vm309, %v277, %v341
      %v374 = vsel %vm310, %v278, %v342
      %v375 = vsel %vm311, %v279, %v343
      %v376 = vsel %vm312, %v280, %v344
      %377 = vst [vmem:[%s170] sm:$0xff] %v345
      %378 = vst [vmem:[%s170 + $0x8] sm:$0xff] %v346
      %379 = vst [vmem:[%s170 + $0x10] sm:$0xff] %v347
      %380 = vst [vmem:[%s170 + $0x18] sm:$0xff] %v348
      %381 = vst [vmem:[%s170 + $0x20] sm:$0xff] %v349
      %382 = vst [vmem:[%s170 + $0x28] sm:$0xff] %v350
      %383 = vst [vmem:[%s170 + $0x30] sm:$0xff] %v351
      %384 = vst [vmem:[%s170 + $0x38] sm:$0xff] %v352
      %385 = vst [vmem:[%s170 + $0x40] sm:$0xff] %v353
      %386 = vst [vmem:[%s170 + $0x48] sm:$0xff] %v354
      %387 = vst [vmem:[%s170 + $0x50] sm:$0xff] %v355
      %388 = vst [vmem:[%s170 + $0x58] sm:$0xff] %v356
      %389 = vst [vmem:[%s170 + $0x60] sm:$0xff] %v357
      %390 = vst [vmem:[%s170 + $0x68] sm:$0xff] %v358
      %391 = vst [vmem:[%s170 + $0x70] sm:$0xff] %v359
      %392 = vst [vmem:[%s170 + $0x78] sm:$0xff] %v360
      %393 = vst [vmem:[%s170 + $0x80] sm:$0xff] %v361
      %394 = vst [vmem:[%s170 + $0x88] sm:$0xff] %v362
      %395 = vst [vmem:[%s170 + $0x90] sm:$0xff] %v363
      %396 = vst [vmem:[%s170 + $0x98] sm:$0xff] %v364
      %397 = vst [vmem:[%s170 + $0xa0] sm:$0xff] %v365
      %398 = vst [vmem:[%s170 + $0xa8] sm:$0xff] %v366
      %399 = vst [vmem:[%s170 + $0xb0] sm:$0xff] %v367
      %400 = vst [vmem:[%s170 + $0xb8] sm:$0xff] %v368
      %401 = vst [vmem:[%s170 + $0xc0] sm:$0xff] %v369
      %402 = vst [vmem:[%s170 + $0xc8] sm:$0xff] %v370
      %403 = vst [vmem:[%s170 + $0xd0] sm:$0xff] %v371
      %404 = vst [vmem:[%s170 + $0xd8] sm:$0xff] %v372
      %405 = vst [vmem:[%s170 + $0xe0] sm:$0xff] %v373
      %406 = vst [vmem:[%s170 + $0xe8] sm:$0xff] %v374
      %407 = vst [vmem:[%s170 + $0xf0] sm:$0xff] %v375
      %408 = vst [vmem:[%s170 + $0xf8] sm:$0xff] %v376
      %p409 = scmp.lt.s32.totalorder %s14, 1
      %s410 = scalar_select %p409, %s14, 1
      %s411 = smul.addr %s410, 32
      %s412 = smul.addr %s411, 8
      %s413 = scalar_lea.vmem %s3, %s412
      // Predicated region
      $region33: #{basic_conv2d.3} parent=31 // pred_check
        %p414 = pneg %p100
      $region34: #{basic_conv2d.3} parent=31 // pred_check_branch
        %416 = sbr.rel (%p414) target = $region36
      $region35: #{basic_conv2d.3} parent=31 // pred_region
        _
      $region36: #{basic_conv2d.3} parent=31 // pred_fallthru
        _
    $region32: #{basic_conv2d.3} parent=5 // pred_fallthru
      _
    %p417 = scmp.le.s32.totalorder 2, %s9
    // Predicated region
    $region37: #{basic_conv2d.3} parent=5 // pred_check
      %p418 = pneg %p417
    $region38: #{basic_conv2d.3} parent=5 // pred_check_branch
      %420 = sbr.rel (%p418) target = $region40
    $region39: #{basic_conv2d.3} parent=5 // pred_region
      %s421 = ssub.s32 %s9, 2
      // Predicated region
      $region41: #{basic_conv2d.3} parent=39 // pred_check
        %p422 = pneg %p106
      $region42: #{basic_conv2d.3} parent=39 // pred_check_branch
        %424 = sbr.rel (%p422) target = $region44
      $region43: #{basic_conv2d.3} parent=39 // pred_region
        %p425 = scmp.lt.s32.totalorder %s15, 1
        %s426 = scalar_select %p425, %s15, 1
        %s427 = smul.addr %s426, 32
        %s428 = smul.addr %s427, 8
        %s429 = scalar_lea.vmem %s3, %s428
      $region44: #{basic_conv2d.3} parent=39 // pred_fallthru
        _
    $region40: #{basic_conv2d.3} parent=5 // pred_fallthru
      _
  $region6: #{basic_conv2d.3} parent=0 // loop_footer
    %s13 = sadd.s32 1, %s9
  $region7: #{basic_conv2d.3} parent=0 // loop_footer_branch
    %8 = sbr.rel target = $region3
  $region8: #{basic_conv2d.3} parent=0 // loop_exit
    _

// kernel: basic_conv2d.2
$region0: #{basic_conv2d.2}
  #allocation0 [shape = 'u32[]', space=smem, size = 0x4, offset = 0x4, fixed_abs, tag = 'smem constant byte address 0x4 - core index']
  #allocation1 [shape = 'u32[144,128]{1,0:T(1,128)}', space=vmem, size = 0x12000, scoped, tag = 'internal scratch']
  #allocation2 [shape = 'f32[256,128]{1,0:T(8,128)}', space=vmem, size = 0x20000, scoped, tag = 'scratch operand']
  %s0 = inlined_call_operand.vmem [shape: bf16[2,18,18,4], index: 0, kind: input, shape index: {}]
  %s1 = inlined_call_operand.vmem [shape: bf16[9,4,128], index: 1, kind: input, shape index: {}]
  %s2 = inlined_call_operand.vmem [shape: f32[2,16,16,128], index: 2, kind: output, shape index: {0}]
  %s3 = inlined_call_operand.vmem [shape: f32[2,2,128], index: 3, kind: output, shape index: {1}]
  %4 = xla_tuple %s2, %s3
  %s5 = sld [smem:[#allocation0]]
  $region49: #{basic_conv2d.2} parent=0
    _
  %s7 = ssub.s32 1, %s5
  %s8 = scalar_select 0, %s7, %s5
  loop: start=0, step=1, limit=4
  $region2: #{basic_conv2d.2} parent=0 // loop_pre_header
    _
  $region3: #{basic_conv2d.2} parent=0 // loop_header
    %s10 = sphi 0, %s14
    %p11 = scmp.ge.s32.totalorder %s10, 4
    %s20 = sphi 0, %s22
    %s23 = sphi 0, %s20
    %s24 = sphi 0, %s23
    %s40 = sphi 0, %s24
    %s44 = sphi 0, %s44
    %s46 = sphi 0, %s44
    %s47 = sphi 0, %s46
    %s61 = sphi 0, %s47
    %s67 = sphi 0, %s69
    %s70 = sphi 0, %s67
    %s71 = sphi 0, %s70
    %s87 = sphi 0, %s71
    %s93 = sphi 0, %s95
    %s96 = sphi 0, %s93
    %s97 = sphi 0, %s96
    %s113 = sphi 0, %s97
  $region4: #{basic_conv2d.2} parent=0 // loop_header_branch
    %13 = sbr.rel (%p11) target = $region8
  $region5: #{basic_conv2d.2} parent=0 // loop_body
    %s15 = ssub.s32 %s10, 1
    %s16 = ssub.s32 %s10, 2
    %s17 = sadd.s32 %s10, 1
    %s18 = ssub.s32 %s10, %s17
    %p19 = scmp.eq.s32.totalorder %s18, 0
    %s21 = sadd.s32 %s20, 1
    %s22 = scalar_select %p19, %s20, %s21
    %p25 = pneg %p19
    %p26 = scmp.eq.s32.totalorder %s10, 1
    %p27 = por %p25, %p26
    %p28 = scmp.ne.s32.totalorder %s20, %s23
    %p29 = scmp.eq.s32.totalorder %s10, 0
    %p30 = por %p28, %p29
    %p31 = scmp.ne.s32.totalorder %s20, %s23
    %p32 = scmp.eq.s32.totalorder %s15, 1
    %p33 = por %p31, %p32
    %p34 = scmp.ne.s32.totalorder %s23, %s24
    %p35 = scmp.eq.s32.totalorder %s15, 0
    %p36 = por %p34, %p35
    %p37 = scmp.ne.s32.totalorder %s23, %s24
    %p38 = scmp.eq.s32.totalorder %s16, 1
    %p39 = por %p37, %p38
    %p41 = scmp.ne.s32.totalorder %s24, %s40
    %p42 = scmp.eq.s32.totalorder %s16, 0
    %p43 = por %p41, %p42
    %s45 = sadd.s32 %s44, 1
    %p48 = scmp.eq.s32.totalorder %s10, 1
    %p49 = scmp.ne.s32.totalorder %s44, %s46
    %p50 = scmp.eq.s32.totalorder %s10, 0
    %p51 = por %p49, %p50
    %p52 = scmp.ne.s32.totalorder %s44, %s46
    %p53 = scmp.eq.s32.totalorder %s15, 1
    %p54 = por %p52, %p53
    %p55 = scmp.ne.s32.totalorder %s46, %s47
    %p56 = scmp.eq.s32.totalorder %s15, 0
    %p57 = por %p55, %p56
    %p58 = scmp.ne.s32.totalorder %s46, %s47
    %p59 = scmp.eq.s32.totalorder %s16, 1
    %p60 = por %p58, %p59
    %p62 = scmp.ne.s32.totalorder %s47, %s61
    %p63 = scmp.eq.s32.totalorder %s16, 0
    %p64 = por %p62, %p63
    %s65 = ssub.s32 %s10, %s17
    %p66 = scmp.eq.s32.totalorder %s65, 0
    %s68 = sadd.s32 %s67, 1
    %s69 = scalar_select %p66, %s67, %s68
    %p72 = pneg %p66
    %p73 = scmp.eq.s32.totalorder %s10, 1
    %p74 = por %p72, %p73
    %p75 = scmp.ne.s32.totalorder %s67, %s70
    %p76 = scmp.eq.s32.totalorder %s10, 0
    %p77 = por %p75, %p76
    %p78 = scmp.ne.s32.totalorder %s67, %s70
    %p79 = scmp.eq.s32.totalorder %s15, 1
    %p80 = por %p78, %p79
    %p81 = scmp.ne.s32.totalorder %s70, %s71
    %p82 = scmp.eq.s32.totalorder %s15, 0
    %p83 = por %p81, %p82
    %p84 = scmp.ne.s32.totalorder %s70, %s71
    %p85 = scmp.eq.s32.totalorder %s16, 1
    %p86 = por %p84, %p85
    %p88 = scmp.ne.s32.totalorder %s71, %s87
    %p89 = scmp.eq.s32.totalorder %s16, 0
    %p90 = por %p88, %p89
    %s91 = ssub.s32 %s10, %s17
    %p92 = scmp.eq.s32.totalorder %s91, 0
    %s94 = sadd.s32 %s93, 1
    %s95 = scalar_select %p92, %s93, %s94
    %p98 = pneg %p92
    %p99 = scmp.eq.s32.totalorder %s10, 1
    %p100 = por %p98, %p99
    %p101 = scmp.ne.s32.totalorder %s93, %s96
    %p102 = scmp.eq.s32.totalorder %s10, 0
    %p103 = por %p101, %p102
    %p104 = scmp.ne.s32.totalorder %s93, %s96
    %p105 = scmp.eq.s32.totalorder %s15, 1
    %p106 = por %p104, %p105
    %p107 = scmp.ne.s32.totalorder %s96, %s97
    %p108 = scmp.eq.s32.totalorder %s15, 0
    %p109 = por %p107, %p108
    %p110 = scmp.ne.s32.totalorder %s96, %s97
    %p111 = scmp.eq.s32.totalorder %s16, 1
    %p112 = por %p110, %p111
    %p114 = scmp.ne.s32.totalorder %s97, %s113
    %p115 = scmp.eq.s32.totalorder %s16, 0
    %p116 = por %p114, %p115
    %p117 = scmp.le.s32.totalorder 1, %s10
    %p118 = scmp.lt.s32.totalorder %s10, 3
    %p119 = pnand %p117, %p118
    %p120 = pneg %p119
    // Predicated region
    $region9: #{basic_conv2d.2} parent=5 // pred_check
      _
    $region10: #{basic_conv2d.2} parent=5 // pred_check_branch
      %122 = sbr.rel (%p119) target = $region12
    $region11: #{basic_conv2d.2} parent=5 // pred_region
      %s123 = ssub.s32 %s10, 1
      // Predicated region
      $region13: #{basic_conv2d.2} parent=11 // pred_check
        %p124 = pneg %p57
      $region14: #{basic_conv2d.2} parent=11 // pred_check_branch
        %126 = sbr.rel (%p124) target = $region16
      $region15: #{basic_conv2d.2} parent=11 // pred_region
        _
      $region16: #{basic_conv2d.2} parent=11 // pred_fallthru
        _
    $region12: #{basic_conv2d.2} parent=5 // pred_fallthru
      _
    %p127 = scmp.lt.s32.totalorder %s10, 2
    // Predicated region
    $region17: #{basic_conv2d.2} parent=5 // pred_check
      %p128 = pneg %p127
    $region18: #{basic_conv2d.2} parent=5 // pred_check_branch
      %130 = sbr.rel (%p128) target = $region20
    $region19: #{basic_conv2d.2} parent=5 // pred_region
      // Predicated region
      $region21: #{basic_conv2d.2} parent=19 // pred_check
        %p131 = pneg %p30
      $region22: #{basic_conv2d.2} parent=19 // pred_check_branch
        %133 = sbr.rel (%p131) target = $region24
      $region23: #{basic_conv2d.2} parent=19 // pred_region
        %p134 = scmp.lt.s32.totalorder %s10, 1
        %s135 = scalar_select %p134, %s10, 1
        %s136 = smul.addr %s135, 54
        %s137 = smul.addr %s136, 4
        %s138 = scalar_lea.vmem %s0, %s137
      $region24: #{basic_conv2d.2} parent=19 // pred_fallthru
        _
    $region20: #{basic_conv2d.2} parent=5 // pred_fallthru
      _
    %p139 = scmp.le.s32.totalorder 1, %s10
    %p140 = scmp.lt.s32.totalorder %s10, 3
    %p141 = pnand %p139, %p140
    %p142 = pneg %p141
    // Predicated region
    $region25: #{basic_conv2d.2} parent=5 // pred_check
      _
    $region26: #{basic_conv2d.2} parent=5 // pred_check_branch
      %144 = sbr.rel (%p141) target = $region28
    $region27: #{basic_conv2d.2} parent=5 // pred_region
      %s145 = ssub.s32 %s10, 1
      %p146 = scmp.lt.s32.totalorder %s15, 1
      %s147 = scalar_select %p146, %s15, 1
      %s148 = smul.addr %s147, 54
      %s149 = smul.addr %s148, 4
      %s150 = scalar_lea.vmem %s0, %s149
      %p151 = pneg %p36
      %p152 = pneg %p33
      %p153 = pneg %p57
      %p154 = pneg %p54
      %p155 = pneg %p83
      %p156 = pneg %p80
      %p157 = scmp.lt.s32.totalorder %s15, 1
      %s158 = scalar_select %p157, %s15, 1
      %s159 = smul.addr %s158, 32
      %s160 = smul.addr %s159, 8
      %s161 = scalar_lea.vmem %s2, %s160
      %p162 = pneg %p109
      %p163 = pneg %p106
      %p164 = scmp.lt.s32.totalorder %s15, 1
      %s165 = scalar_select %p164, %s15, 1
      %s166 = smul.addr %s165, 2
      %s167 = scalar_lea.vmem %s3, %s166
      %p168 = scmp.lt.s32.totalorder %s15, 1
      %s169 = scalar_select %p168, %s15, 1
      %s170 = smul.addr %s169, 54
      %s171 = smul.addr %s170, 4
      %s172 = scalar_lea.vmem %s0, %s171
      %p173 = scmp.lt.s32.totalorder %s15, 1
      %s174 = scalar_select %p173, %s15, 1
      %s175 = smul.addr %s174, 32
      %s176 = smul.addr %s175, 8
      %s177 = scalar_lea.vmem %s2, %s176
      %p178 = scmp.lt.s32.totalorder %s15, 1
      %s179 = scalar_select %p178, %s15, 1
      %s180 = smul.addr %s179, 2
      %s181 = scalar_lea.vmem %s3, %s180
      %183 = vst [vmem:[#allocation2] sm:$0xff] 0.0
      %184 = vst [vmem:[#allocation2 + $0x8] sm:$0xff] 0.0
      %185 = vst [vmem:[#allocation2 + $0x10] sm:$0xff] 0.0
      %186 = vst [vmem:[#allocation2 + $0x18] sm:$0xff] 0.0
      %187 = vst [vmem:[#allocation2 + $0x20] sm:$0xff] 0.0
      %188 = vst [vmem:[#allocation2 + $0x28] sm:$0xff] 0.0
      %189 = vst [vmem:[#allocation2 + $0x30] sm:$0xff] 0.0
      %190 = vst [vmem:[#allocation2 + $0x38] sm:$0xff] 0.0
      %191 = vst [vmem:[#allocation2 + $0x40] sm:$0xff] 0.0
      %192 = vst [vmem:[#allocation2 + $0x48] sm:$0xff] 0.0
      %193 = vst [vmem:[#allocation2 + $0x50] sm:$0xff] 0.0
      %194 = vst [vmem:[#allocation2 + $0x58] sm:$0xff] 0.0
      %195 = vst [vmem:[#allocation2 + $0x60] sm:$0xff] 0.0
      %196 = vst [vmem:[#allocation2 + $0x68] sm:$0xff] 0.0
      %197 = vst [vmem:[#allocation2 + $0x70] sm:$0xff] 0.0
      %198 = vst [vmem:[#allocation2 + $0x78] sm:$0xff] 0.0
      %199 = vst [vmem:[#allocation2 + $0x80] sm:$0xff] 0.0
      %200 = vst [vmem:[#allocation2 + $0x88] sm:$0xff] 0.0
      %201 = vst [vmem:[#allocation2 + $0x90] sm:$0xff] 0.0
      %202 = vst [vmem:[#allocation2 + $0x98] sm:$0xff] 0.0
      %203 = vst [vmem:[#allocation2 + $0xa0] sm:$0xff] 0.0
      %204 = vst [vmem:[#allocation2 + $0xa8] sm:$0xff] 0.0
      %205 = vst [vmem:[#allocation2 + $0xb0] sm:$0xff] 0.0
      %206 = vst [vmem:[#allocation2 + $0xb8] sm:$0xff] 0.0
      %207 = vst [vmem:[#allocation2 + $0xc0] sm:$0xff] 0.0
      %208 = vst [vmem:[#allocation2 + $0xc8] sm:$0xff] 0.0
      %209 = vst [vmem:[#allocation2 + $0xd0] sm:$0xff] 0.0
      %210 = vst [vmem:[#allocation2 + $0xd8] sm:$0xff] 0.0
      %211 = vst [vmem:[#allocation2 + $0xe0] sm:$0xff] 0.0
      %212 = vst [vmem:[#allocation2 + $0xe8] sm:$0xff] 0.0
      %213 = vst [vmem:[#allocation2 + $0xf0] sm:$0xff] 0.0
      %214 = vst [vmem:[#allocation2 + $0xf8] sm:$0xff] 0.0
      %v215 = vld [vmem:[%s172] sm:$0xf]
      %v216 = vld [vmem:[%s172 + $0x4] sm:$0xf]
      %v217 = vld [vmem:[%s172 + $0xc] sm:$0xf]
      %v218 = vld [vmem:[%s172 + $0x10] sm:$0xf]
      %v219 = vld [vmem:[%s172 + $0x18] sm:$0xf]
      %v220 = vld [vmem:[%s172 + $0x1c] sm:$0xf]
      %v221 = vld [vmem:[%s172 + $0x24] sm:$0xf]
      %v222 = vld [vmem:[%s172 + $0x28] sm:$0xf]
      %v223 = vld [vmem:[%s172 + $0x30] sm:$0xf]
      %v224 = vld [vmem:[%s172 + $0x34] sm:$0xf]
      %v225 = vld [vmem:[%s172 + $0x3c] sm:$0xf]
      %v226 = vld [vmem:[%s172 + $0x40] sm:$0xf]
      %v227 = vld [vmem:[%s172 + $0x48] sm:$0xf]
      %v228 = vld [vmem:[%s172 + $0x4c] sm:$0xf]
      %v229 = vld [vmem:[%s172 + $0x54] sm:$0xf]
      %v230 = vld [vmem:[%s172 + $0x58] sm:$0xf]
      %v231 = vld [vmem:[%s172 + $0x60] sm:$0xf]
      %v232 = vld [vmem:[%s172 + $0x64] sm:$0xf]
      %v233 = vld [vmem:[%s172 + $0x6c] sm:$0xf]
      %v234 = vld [vmem:[%s172 + $0x70] sm:$0xf]
      %v235 = vld [vmem:[%s172 + $0x78] sm:$0xf]
      %v236 = vld [vmem:[%s172 + $0x7c] sm:$0xf]
      %v237 = vld [vmem:[%s172 + $0x84] sm:$0xf]
      %v238 = vld [vmem:[%s172 + $0x88] sm:$0xf]
      %v239 = vld [vmem:[%s172 + $0x90] sm:$0xf]
      %v240 = vld [vmem:[%s172 + $0x94] sm:$0xf]
      %v241 = vld [vmem:[%s172 + $0x9c] sm:$0xf]
      %v242 = vld [vmem:[%s172 + $0xa0] sm:$0xf]
      %v243 = vld [vmem:[%s172 + $0xa8] sm:$0xf]
      %v244 = vld [vmem:[%s172 + $0xac] sm:$0xf]
      %v245 = vld [vmem:[%s172 + $0xb4] sm:$0xf]
      %v246 = vld [vmem:[%s172 + $0xb8] sm:$0xf]
      %v247 = vld [vmem:[#allocation2] sm:$0xff]
      %v248 = vld [vmem:[#allocation2 + $0x8] sm:$0xff]
      %v249 = vld [vmem:[#allocation2 + $0x10] sm:$0xff]
      %v250 = vld [vmem:[#allocation2 + $0x18] sm:$0xff]
      %v251 = vld [vmem:[#allocation2 + $0x20] sm:$0xff]
      %v252 = vld [vmem:[#allocation2 + $0x28] sm:$0xff]
      %v253 = vld [vmem:[#allocation2 + $0x30] sm:$0xff]
      %v254 = vld [vmem:[#allocation2 + $0x38] sm:$0xff]
      %v255 = vld [vmem:[#allocation2 + $0x40] sm:$0xff]
      %v256 = vld [vmem:[#allocation2 + $0x48] sm:$0xff]
      %v257 = vld [vmem:[#allocation2 + $0x50] sm:$0xff]
      %v258 = vld [vmem:[#allocation2 + $0x58] sm:$0xff]
      %v259 = vld [vmem:[#allocation2 + $0x60] sm:$0xff]
      %v260 = vld [vmem:[#allocation2 + $0x68] sm:$0xff]
      %v261 = vld [vmem:[#allocation2 + $0x70] sm:$0xff]
      %v262 = vld [vmem:[#allocation2 + $0x78] sm:$0xff]
      %v263 = vld [vmem:[#allocation2 + $0x80] sm:$0xff]
      %v264 = vld [vmem:[#allocation2 + $0x88] sm:$0xff]
      %v265 = vld [vmem:[#allocation2 + $0x90] sm:$0xff]
      %v266 = vld [vmem:[#allocation2 + $0x98] sm:$0xff]
      %v267 = vld [vmem:[#allocation2 + $0xa0] sm:$0xff]
      %v268 = vld [vmem:[#allocation2 + $0xa8] sm:$0xff]
      %v269 = vld [vmem:[#allocation2 + $0xb0] sm:$0xff]
      %v270 = vld [vmem:[#allocation2 + $0xb8] sm:$0xff]
      %v271 = vld [vmem:[#allocation2 + $0xc0] sm:$0xff]
      %v272 = vld [vmem:[#allocation2 + $0xc8] sm:$0xff]
      %v273 = vld [vmem:[#allocation2 + $0xd0] sm:$0xff]
      %v274 = vld [vmem:[#allocation2 + $0xd8] sm:$0xff]
      %v275 = vld [vmem:[#allocation2 + $0xe0] sm:$0xff]
      %v276 = vld [vmem:[#allocation2 + $0xe8] sm:$0xff]
      %v277 = vld [vmem:[#allocation2 + $0xf0] sm:$0xff]
      %v278 = vld [vmem:[#allocation2 + $0xf8] sm:$0xff]
      %v279 = vld [vmem:[%s1] sm:$0x3]
      %v312 = vunpack.c.l.b16 %v215
      %v313 = vunpack.c.l.b16 %v216
      %v314 = vunpack.c.l.b16 %v217
      %v315 = vunpack.c.l.b16 %v218
      %v316 = vunpack.c.l.b16 %v219
      %v317 = vunpack.c.l.b16 %v220
      %v318 = vunpack.c.l.b16 %v221
      %v319 = vunpack.c.l.b16 %v222
      %v320 = vunpack.c.l.b16 %v223
      %v321 = vunpack.c.l.b16 %v224
      %v322 = vunpack.c.l.b16 %v225
      %v323 = vunpack.c.l.b16 %v226
      %v324 = vunpack.c.l.b16 %v227
      %v325 = vunpack.c.l.b16 %v228
      %v326 = vunpack.c.l.b16 %v229
      %v327 = vunpack.c.l.b16 %v230
      %v328 = vunpack.c.l.b16 %v231
      %v329 = vunpack.c.l.b16 %v232
      %v330 = vunpack.c.l.b16 %v233
      %v331 = vunpack.c.l.b16 %v234
      %v332 = vunpack.c.l.b16 %v235
      %v333 = vunpack.c.l.b16 %v236
      %v334 = vunpack.c.l.b16 %v237
      %v335 = vunpack.c.l.b16 %v238
      %v336 = vunpack.c.l.b16 %v239
      %v337 = vunpack.c.l.b16 %v240
      %v338 = vunpack.c.l.b16 %v241
      %v339 = vunpack.c.l.b16 %v242
      %v340 = vunpack.c.l.b16 %v243
      %v341 = vunpack.c.l.b16 %v244
      %v342 = vunpack.c.l.b16 %v245
      %v343 = vunpack.c.l.b16 %v246
      %v344 = vpack.c.b16 %v313, %v312
      %v345 = vpack.c.b16 %v315, %v314
      %v346 = vpack.c.b16 %v317, %v316
      %v347 = vpack.c.b16 %v319, %v318
      %v348 = vpack.c.b16 %v321, %v320
      %v349 = vpack.c.b16 %v323, %v322
      %v350 = vpack.c.b16 %v325, %v324
      %v351 = vpack.c.b16 %v327, %v326
      %v352 = vpack.c.b16 %v329, %v328
      %v353 = vpack.c.b16 %v331, %v330
      %v354 = vpack.c.b16 %v333, %v332
      %v355 = vpack.c.b16 %v335, %v334
      %v356 = vpack.c.b16 %v337, %v336
      %v357 = vpack.c.b16 %v339, %v338
      %v358 = vpack.c.b16 %v341, %v340
      %v359 = vpack.c.b16 %v343, %v342
      %vm360 = vcmask 31744
      %v362 = vsel %vm360, %v344, 0
      %v365 = vsel %vm360, %v345, 0
      %v368 = vsel %vm360, %v346, 0
      %v371 = vsel %vm360, %v347, 0
      %v374 = vsel %vm360, %v348, 0
      %v377 = vsel %vm360, %v349, 0
      %v380 = vsel %vm360, %v350, 0
      %v383 = vsel %vm360, %v351, 0
      %v386 = vsel %vm360, %v352, 0
      %v389 = vsel %vm360, %v353, 0
      %v392 = vsel %vm360, %v354, 0
      %v395 = vsel %vm360, %v355, 0
      %v398 = vsel %vm360, %v356, 0
      %v401 = vsel %vm360, %v357, 0
      %v404 = vsel %vm360, %v358, 0
      %v407 = vsel %vm360, %v359, 0
      %vm409 = vcmask 1041408
      %v411 = vsel %vm409, %v279, 0
      %413 = vmatprep.subr.bf16.mxu0 0
      %414 = vmatpush1.bf16.msra.mxu0 0
      %415 = vmatprep.subr.bf16.mxu0 0
      %416 = vmatpush1.bf16.msra.mxu0 0
      %417 = vmatprep.subr.bf16.mxu0 0
      %418 = vmatpush1.bf16.msra.mxu0 0
      %419 = vmatprep.subr.bf16.mxu0 0
      %420 = vmatpush1.bf16.msra.mxu0 0
      %421 = vmatprep.subr.bf16.mxu0 0
      %422 = vmatpush1.bf16.msra.mxu0 0
      %423 = vmatprep.subr.bf16.mxu0 0
      %424 = vmatpush1.bf16.msra.mxu0 0
      %425 = vmatprep.subr.bf16.mxu0 0
      %426 = vmatpush1.bf16.msra.mxu0 0
      %427 = vmatprep.subr.bf16.mxu0 0
      %428 = vmatpush1.bf16.msra.mxu0 %v411
      %429 = vmatprep.subr.bf16.mxu0 0
      %430 = vmatpush2.bf16.msra.mxu0 0
      %431 = vmatprep.subr.bf16.mxu0 0
      %432 = vmatpush2.bf16.msra.mxu0 0
      %433 = vmatprep.subr.bf16.mxu0 0
      %434 = vmatpush2.bf16.msra.mxu0 0
      %435 = vmatprep.subr.bf16.mxu0 0
      %436 = vmatpush2.bf16.msra.mxu0 0
      %437 = vmatprep.subr.bf16.mxu0 0
      %438 = vmatpush2.bf16.msra.mxu0 0
      %439 = vmatprep.subr.bf16.mxu0 0
      %440 = vmatpush2.bf16.msra.mxu0 0
      %441 = vmatprep.subr.bf16.mxu0 0
      %442 = vmatpush2.bf16.msra.mxu0 0
      %443 = vmatprep.subr.bf16.mxu0 0
      %444 = vmatpush2.bf16.msra.mxu0 0
      %445 = vmatprep.mubr.bf16.mxu0 0
      %446 = vmatmul.mubr.bf16.gmra.mxu0 %v362
      %v447 = vpop.f32.mrf.mxu0
      %v448 = vadd.f32 0.0, %v447
      %v449 = vpop.f32.mrf.mxu0
      %v450 = vpop.f32.mrf.mxu0
      %v451 = vadd.f32 0.0, %v450
      %v452 = vpop.f32.mrf.mxu0
      %453 = vmatprep.mubr.bf16.mxu0 0
      %454 = vmatmul.mubr.bf16.gmra.mxu0 %v365
      %v455 = vpop.f32.mrf.mxu0
      %v456 = vadd.f32 0.0, %v455
      %v457 = vpop.f32.mrf.mxu0
      %v458 = vpop.f32.mrf.mxu0
      %v459 = vadd.f32 0.0, %v458
      %v460 = vpop.f32.mrf.mxu0
      %461 = vmatprep.mubr.bf16.mxu0 0
      %462 = vmatmul.mubr.bf16.gmra.mxu0 %v368
      %v463 = vpop.f32.mrf.mxu0
      %v464 = vadd.f32 0.0, %v463
      %v465 = vpop.f32.mrf.mxu0
      %v466 = vpop.f32.mrf.mxu0
      %v467 = vadd.f32 0.0, %v466
      %v468 = vpop.f32.mrf.mxu0
      %469 = vmatprep.mubr.bf16.mxu0 0
      %470 = vmatmul.mubr.bf16.gmra.mxu0 %v371
      %v471 = vpop.f32.mrf.mxu0
      %v472 = vadd.f32 0.0, %v471
      %v473 = vpop.f32.mrf.mxu0
      %v474 = vpop.f32.mrf.mxu0
      %v475 = vadd.f32 0.0, %v474
      %v476 = vpop.f32.mrf.mxu0
      %477 = vmatprep.mubr.bf16.mxu0 0
      %478 = vmatmul.mubr.bf16.gmra.mxu0 %v374
      %v479 = vpop.f32.mrf.mxu0
      %v480 = vadd.f32 0.0, %v479
      %v481 = vpop.f32.mrf.mxu0
      %v482 = vpop.f32.mrf.mxu0
      %v483 = vadd.f32 0.0, %v482
      %v484 = vpop.f32.mrf.mxu0
      %485 = vmatprep.mubr.bf16.mxu0 0
      %486 = vmatmul.mubr.bf16.gmra.mxu0 %v377
      %v487 = vpop.f32.mrf.mxu0
      %v488 = vadd.f32 0.0, %v487
      %v489 = vpop.f32.mrf.mxu0
      %v490 = vpop.f32.mrf.mxu0
      %v491 = vadd.f32 0.0, %v490
      %v492 = vpop.f32.mrf.mxu0
      %493 = vmatprep.mubr.bf16.mxu0 0
      %494 = vmatmul.mubr.bf16.gmra.mxu0 %v380
      %v495 = vpop.f32.mrf.mxu0
      %v496 = vadd.f32 0.0, %v495
      %v497 = vpop.f32.mrf.mxu0
      %v498 = vpop.f32.mrf.mxu0
      %v499 = vadd.f32 0.0, %v498
      %v500 = vpop.f32.mrf.mxu0
      %501 = vmatprep.mubr.bf16.mxu0 0
      %502 = vmatmul.mubr.bf16.gmra.mxu0 %v383
      %v503 = vpop.f32.mrf.mxu0
      %v504 = vadd.f32 0.0, %v503
      %v505 = vpop.f32.mrf.mxu0
      %v506 = vpop.f32.mrf.mxu0
      %v507 = vadd.f32 0.0, %v506
      %v508 = vpop.f32.mrf.mxu0
      %509 = vmatprep.mubr.bf16.mxu0 0
      %510 = vmatmul.mubr.bf16.gmra.mxu0 %v386
      %v511 = vpop.f32.mrf.mxu0
      %v512 = vadd.f32 0.0, %v511
      %v513 = vpop.f32.mrf.mxu0
      %v514 = vpop.f32.mrf.mxu0
      %v515 = vadd.f32 0.0, %v514
      %v516 = vpop.f32.mrf.mxu0
      %517 = vmatprep.mubr.bf16.mxu0 0
      %518 = vmatmul.mubr.bf16.gmra.mxu0 %v389
      %v519 = vpop.f32.mrf.mxu0
      %v520 = vadd.f32 0.0, %v519
      %v521 = vpop.f32.mrf.mxu0
      %v522 = vpop.f32.mrf.mxu0
      %v523 = vadd.f32 0.0, %v522
      %v524 = vpop.f32.mrf.mxu0
      %525 = vmatprep.mubr.bf16.mxu0 0
      %526 = vmatmul.mubr.bf16.gmra.mxu0 %v392
      %v527 = vpop.f32.mrf.mxu0
      %v528 = vadd.f32 0.0, %v527
      %v529 = vpop.f32.mrf.mxu0
      %v530 = vpop.f32.mrf.mxu0
      %v531 = vadd.f32 0.0, %v530
      %v532 = vpop.f32.mrf.mxu0
      %533 = vmatprep.mubr.bf16.mxu0 0
      %534 = vmatmul.mubr.bf16.gmra.mxu0 %v395
      %v535 = vpop.f32.mrf.mxu0
      %v536 = vadd.f32 0.0, %v535
      %v537 = vpop.f32.mrf.mxu0
      %v538 = vpop.f32.mrf.mxu0
      %v539 = vadd.f32 0.0, %v538
      %v540 = vpop.f32.mrf.mxu0
      %541 = vmatprep.mubr.bf16.mxu0 0
      %542 = vmatmul.mubr.bf16.gmra.mxu0 %v398
      %v543 = vpop.f32.mrf.mxu0
      %v544 = vadd.f32 0.0, %v543
      %v545 = vpop.f32.mrf.mxu0
      %v546 = vpop.f32.mrf.mxu0
      %v547 = vadd.f32 0.0, %v546
      %v548 = vpop.f32.mrf.mxu0
      %549 = vmatprep.mubr.bf16.mxu0 0
      %550 = vmatmul.mubr.bf16.gmra.mxu0 %v401
      %v551 = vpop.f32.mrf.mxu0
      %v552 = vadd.f32 0.0, %v551
      %v553 = vpop.f32.mrf.mxu0
      %v554 = vpop.f32.mrf.mxu0
      %v555 = vadd.f32 0.0, %v554
      %v556 = vpop.f32.mrf.mxu0
      %557 = vmatprep.mubr.bf16.mxu0 0
      %558 = vmatmul.mubr.bf16.gmra.mxu0 %v404
      %v559 = vpop.f32.mrf.mxu0
      %v560 = vadd.f32 0.0, %v559
      %v561 = vpop.f32.mrf.mxu0
      %v562 = vpop.f32.mrf.mxu0
      %v563 = vadd.f32 0.0, %v562
      %v564 = vpop.f32.mrf.mxu0
      %565 = vmatprep.mubr.bf16.mxu0 0
      %566 = vmatmul.mubr.bf16.gmra.mxu0 %v407
      %v567 = vpop.f32.mrf.mxu0
      %v568 = vadd.f32 0.0, %v567
      %v569 = vpop.f32.mrf.mxu0
      %v570 = vpop.f32.mrf.mxu0
      %v571 = vadd.f32 0.0, %v570
      %v572 = vpop.f32.mrf.mxu0
      %573 = vdwg.mxu0
      %v574 = vadd.f32 %v247, %v448
      %v575 = vadd.f32 %v248, %v451
      %v576 = vadd.f32 %v249, %v456
      %v577 = vadd.f32 %v250, %v459
      %v578 = vadd.f32 %v251, %v464
      %v579 = vadd.f32 %v252, %v467
      %v580 = vadd.f32 %v253, %v472
      %v581 = vadd.f32 %v254, %v475
      %v582 = vadd.f32 %v255, %v480
      %v583 = vadd.f32 %v256, %v483
      %v584 = vadd.f32 %v257, %v488
      %v585 = vadd.f32 %v258, %v491
      %v586 = vadd.f32 %v259, %v496
      %v587 = vadd.f32 %v260, %v499
      %v588 = vadd.f32 %v261, %v504
      %v589 = vadd.f32 %v262, %v507
      %v590 = vadd.f32 %v263, %v512
      %v591 = vadd.f32 %v264, %v515
      %v592 = vadd.f32 %v265, %v520
      %v593 = vadd.f32 %v266, %v523
      %v594 = vadd.f32 %v267, %v528
      %v595 = vadd.f32 %v268, %v531
      %v596 = vadd.f32 %v269, %v536
      %v597 = vadd.f32 %v270, %v539
      %v598 = vadd.f32 %v271, %v544
      %v599 = vadd.f32 %v272, %v547
      %v600 = vadd.f32 %v273, %v552
      %v601 = vadd.f32 %v274, %v555
      %v602 = vadd.f32 %v275, %v560
      %v603 = vadd.f32 %v276, %v563
      %v604 = vadd.f32 %v277, %v568
      %v605 = vadd.f32 %v278, %v571
      %606 = vst [vmem:[#allocation2] sm:$0xff] %v574
      %607 = vst [vmem:[#allocation2 + $0x8] sm:$0xff] %v575
      %608 = vst [vmem:[#allocation2 + $0x10] sm:$0xff] %v576
      %609 = vst [vmem:[#allocation2 + $0x18] sm:$0xff] %v577
      %610 = vst [vmem:[#allocation2 + $0x20] sm:$0xff] %v578
      %611 = vst [vmem:[#allocation2 + $0x28] sm:$0xff] %v579
      %612 = vst [vmem:[#allocation2 + $0x30] sm:$0xff] %v580
      %613 = vst [vmem:[#allocation2 + $0x38] sm:$0xff] %v581
      %614 = vst [vmem:[#allocation2 + $0x40] sm:$0xff] %v582
      %615 = vst [vmem:[#allocation2 + $0x48] sm:$0xff] %v583
      %616 = vst [vmem:[#allocation2 + $0x50] sm:$0xff] %v584
      %617 = vst [vmem:[#allocation2 + $0x58] sm:$0xff] %v585
      %618 = vst [vmem:[#allocation2 + $0x60] sm:$0xff] %v586
      %619 = vst [vmem:[#allocation2 + $0x68] sm:$0xff] %v587
      %620 = vst [vmem:[#allocation2 + $0x70] sm:$0xff] %v588
      %621 = vst [vmem:[#allocation2 + $0x78] sm:$0xff] %v589
      %622 = vst [vmem:[#allocation2 + $0x80] sm:$0xff] %v590
      %623 = vst [vmem:[#allocation2 + $0x88] sm:$0xff] %v591
      %624 = vst [vmem:[#allocation2 + $0x90] sm:$0xff] %v592
      %625 = vst [vmem:[#allocation2 + $0x98] sm:$0xff] %v593
      %626 = vst [vmem:[#allocation2 + $0xa0] sm:$0xff] %v594
      %627 = vst [vmem:[#allocation2 + $0xa8] sm:$0xff] %v595
      %628 = vst [vmem:[#allocation2 + $0xb0] sm:$0xff] %v596
      %629 = vst [vmem:[#allocation2 + $0xb8] sm:$0xff] %v597
      %630 = vst [vmem:[#allocation2 + $0xc0] sm:$0xff] %v598
      %631 = vst [vmem:[#allocation2 + $0xc8] sm:$0xff] %v599
      %632 = vst [vmem:[#allocation2 + $0xd0] sm:$0xff] %v600
      %633 = vst [vmem:[#allocation2 + $0xd8] sm:$0xff] %v601
      %634 = vst [vmem:[#allocation2 + $0xe0] sm:$0xff] %v602
      %635 = vst [vmem:[#allocation2 + $0xe8] sm:$0xff] %v603
      %636 = vst [vmem:[#allocation2 + $0xf0] sm:$0xff] %v604
      %637 = vst [vmem:[#allocation2 + $0xf8] sm:$0xff] %v605
      %v638 = vld [vmem:[%s172] sm:$0xf]
      %v639 = vld [vmem:[%s172 + $0x4] sm:$0xf]
      %v640 = vld [vmem:[%s172 + $0x8] sm:$0x1]
      %v641 = vld [vmem:[%s172 + $0xc] sm:$0xf]
      %v642 = vld [vmem:[%s172 + $0x10] sm:$0xf]
      %v643 = vld [vmem:[%s172 + $0x14] sm:$0x1]
      %v644 = vld [vmem:[%s172 + $0x18] sm:$0xf]
      %v645 = vld [vmem:[%s172 + $0x1c] sm:$0xf]
      %v646 = vld [vmem:[%s172 + $0x20] sm:$0x1]
      %v647 = vld [vmem:[%s172 + $0x24] sm:$0xf]
      %v648 = vld [vmem:[%s172 + $0x28] sm:$0xf]
      %v649 = vld [vmem:[%s172 + $0x2c] sm:$0x1]
      %v650 = vld [vmem:[%s172 + $0x30] sm:$0xf]
      %v651 = vld [vmem:[%s172 + $0x34] sm:$0xf]
      %v652 = vld [vmem:[%s172 + $0x38] sm:$0x1]
      %v653 = vld [vmem:[%s172 + $0x3c] sm:$0xf]
      %v654 = vld [vmem:[%s172 + $0x40] sm:$0xf]
      %v655 = vld [vmem:[%s172 + $0x44] sm:$0x1]
      %v656 = vld [vmem:[%s172 + $0x48] sm:$0xf]
      %v657 = vld [vmem:[%s172 + $0x4c] sm:$0xf]
      %v658 = vld [vmem:[%s172 + $0x50] sm:$0x1]
      %v659 = vld [vmem:[%s172 + $0x54] sm:$0xf]
      %v660 = vld [vmem:[%s172 + $0x58] sm:$0xf]
      %v661 = vld [vmem:[%s172 + $0x5c] sm:$0x1]
      %v662 = vld [vmem:[%s172 + $0x60] sm:$0xf]
      %v663 = vld [vmem:[%s172 + $0x64] sm:$0xf]
      %v664 = vld [vmem:[%s172 + $0x68] sm:$0x1]
      %v665 = vld [vmem:[%s172 + $0x6c] sm:$0xf]
      %v666 = vld [vmem:[%s172 + $0x70] sm:$0xf]
      %v667 = vld [vmem:[%s172 + $0x74] sm:$0x1]
      %v668 = vld [vmem:[%s172 + $0x78] sm:$0xf]
      %v669 = vld [vmem:[%s172 + $0x7c] sm:$0xf]
      %v670 = vld [vmem:[%s172 + $0x80] sm:$0x1]
      %v671 = vld [vmem:[%s172 + $0x84] sm:$0xf]
      %v672 = vld [vmem:[%s172 + $0x88] sm:$0xf]
      %v673 = vld [vmem:[%s172 + $0x8c] sm:$0x1]
      %v674 = vld [vmem:[%s172 + $0x90] sm:$0xf]
      %v675 = vld [vmem:[%s172 + $0x94] sm:$0xf]
      %v676 = vld [vmem:[%s172 + $0x98] sm:$0x1]
      %v677 = vld [vmem:[%s172 + $0x9c] sm:$0xf]
      %v678 = vld [vmem:[%s172 + $0xa0] sm:$0xf]
      %v679 = vld [vmem:[%s172 + $0xa4] sm:$0x1]
      %v680 = vld [vmem:[%s172 + $0xa8] sm:$0xf]
      %v681 = vld [vmem:[%s172 + $0xac] sm:$0xf]
      %v682 = vld [vmem:[%s172 + $0xb0] sm:$0x1]
      %v683 = vld [vmem:[%s172 + $0xb4] sm:$0xf]
      %v684 = vld [vmem:[%s172 + $0xb8] sm:$0xf]
      %v685 = vld [vmem:[%s172 + $0xbc] sm:$0x1]
      %v686 = vld [vmem:[#allocation2] sm:$0xff]
      %v687 = vld [vmem:[#allocation2 + $0x8] sm:$0xff]
      %v688 = vld [vmem:[#allocation2 + $0x10] sm:$0xff]
      %v689 = vld [vmem:[#allocation2 + $0x18] sm:$0xff]
      %v690 = vld [vmem:[#allocation2 + $0x20] sm:$0xff]
      %v691 = vld [vmem:[#allocation2 + $0x28] sm:$0xff]
      %v692 = vld [vmem:[#allocation2 + $0x30] sm:$0xff]
      %v693 = vld [vmem:[#allocation2 + $0x38] sm:$0xff]
      %v694 = vld [vmem:[#allocation2 + $0x40] sm:$0xff]
      %v695 = vld [vmem:[#allocation2 + $0x48] sm:$0xff]
      %v696 = vld [vmem:[#allocation2 + $0x50] sm:$0xff]
      %v697 = vld [vmem:[#allocation2 + $0x58] sm:$0xff]
      %v698 = vld [vmem:[#allocation2 + $0x60] sm:$0xff]
      %v699 = vld [vmem:[#allocation2 + $0x68] sm:$0xff]
      %v700 = vld [vmem:[#allocation2 + $0x70] sm:$0xff]
      %v701 = vld [vmem:[#allocation2 + $0x78] sm:$0xff]
      %v702 = vld [vmem:[#allocation2 + $0x80] sm:$0xff]
      %v703 = vld [vmem:[#allocation2 + $0x88] sm:$0xff]
      %v704 = vld [vmem:[#allocation2 + $0x90] sm:$0xff]
      %v705 = vld [vmem:[#allocation2 + $0x98] sm:$0xff]
      %v706 = vld [vmem:[#allocation2 + $0xa0] sm:$0xff]
      %v707 = vld [vmem:[#allocation2 + $0xa8] sm:$0xff]
      %v708 = vld [vmem:[#allocation2 + $0xb0] sm:$0xff]
      %v709 = vld [vmem:[#allocation2 + $0xb8] sm:$0xff]
      %v710 = vld [vmem:[#allocation2 + $0xc0] sm:$0xff]
      %v711 = vld [vmem:[#allocation2 + $0xc8] sm:$0xff]
      %v712 = vld [vmem:[#allocation2 + $0xd0] sm:$0xff]
      %v713 = vld [vmem:[#allocation2 + $0xd8] sm:$0xff]
      %v714 = vld [vmem:[#allocation2 + $0xe0] sm:$0xff]
      %v715 = vld [vmem:[#allocation2 + $0xe8] sm:$0xff]
      %v716 = vld [vmem:[#allocation2 + $0xf0] sm:$0xff]
      %v717 = vld [vmem:[#allocation2 + $0xf8] sm:$0xff]
      %vm718 = vsmask.f32 3328
      %vm719 = vsmask.f32 7440
      %vm720 = vmor %vm718, %vm719
      %v722 = vshrl.u32 %v638, 16
      %v724 = vrot.slane %v722, 4
      %v725 = vshll.u32 %v638, 16
      %v727 = vrot.slane %v725, 5
      %v728 = vor.u32 %v724, %v727
      %v729 = vrot.slane %v728, 4
      %v731 = vshll.u32 %v639, 16
      %v733 = vrot.slane %v731, 5
      %v734 = vsel %vm720, %v729, %v733
      %v735 = vshrl.u32 %v639, 16
      %v737 = vrot.slane %v735, 4
      %v738 = vor.u32 %v737, %v733
      %v739 = vrot.slane %v738, 4
      %v741 = vshll.u32 %v640, 16
      %v743 = vrot.slane %v741, 5
      %v744 = vsel %vm720, %v739, %v743
      %v746 = vshrl.u32 %v641, 16
      %v748 = vrot.slane %v746, 4
      %v749 = vshll.u32 %v641, 16
      %v751 = vrot.slane %v749, 5
      %v752 = vor.u32 %v748, %v751
      %v753 = vrot.slane %v752, 4
      %v755 = vshll.u32 %v642, 16
      %v757 = vrot.slane %v755, 5
      %v758 = vsel %vm720, %v753, %v757
      %v759 = vshrl.u32 %v642, 16
      %v761 = vrot.slane %v759, 4
      %v762 = vor.u32 %v761, %v757
      %v763 = vrot.slane %v762, 4
      %v765 = vshll.u32 %v643, 16
      %v767 = vrot.slane %v765, 5
      %v768 = vsel %vm720, %v763, %v767
      %v770 = vshrl.u32 %v644, 16
      %v772 = vrot.slane %v770, 4
      %v773 = vshll.u32 %v644, 16
      %v775 = vrot.slane %v773, 5
      %v776 = vor.u32 %v772, %v775
      %v777 = vrot.slane %v776, 4
      %v779 = vshll.u32 %v645, 16
      %v781 = vrot.slane %v779, 5
      %v782 = vsel %vm720, %v777, %v781
      %v783 = vshrl.u32 %v645, 16
      %v785 = vrot.slane %v783, 4
      %v786 = vor.u32 %v785, %v781
      %v787 = vrot.slane %v786, 4
      %v789 = vshll.u32 %v646, 16
      %v791 = vrot.slane %v789, 5
      %v792 = vsel %vm720, %v787, %v791
      %v794 = vshrl.u32 %v647, 16
      %v796 = vrot.slane %v794, 4
      %v797 = vshll.u32 %v647, 16
      %v799 = vrot.slane %v797, 5
      %v800 = vor.u32 %v796, %v799
      %v801 = vrot.slane %v800, 4
      %v803 = vshll.u32 %v648, 16
      %v805 = vrot.slane %v803, 5
      %v806 = vsel %vm720, %v801, %v805
      %v807 = vshrl.u32 %v648, 16
      %v809 = vrot.slane %v807, 4
      %v810 = vor.u32 %v809, %v805
      %v811 = vrot.slane %v810, 4
      %v813 = vshll.u32 %v649, 16
      %v815 = vrot.slane %v813, 5
      %v816 = vsel %vm720, %v811, %v815
      %v818 = vshrl.u32 %v650, 16
      %v820 = vrot.slane %v818, 4
      %v821 = vshll.u32 %v650, 16
      %v823 = vrot.slane %v821, 5
      %v824 = vor.u32 %v820, %v823
      %v825 = vrot.slane %v824, 4
      %v827 = vshll.u32 %v651, 16
      %v829 = vrot.slane %v827, 5
      %v830 = vsel %vm720, %v825, %v829
      %v831 = vshrl.u32 %v651, 16
      %v833 = vrot.slane %v831, 4
      %v834 = vor.u32 %v833, %v829
      %v835 = vrot.slane %v834, 4
      %v837 = vshll.u32 %v652, 16
      %v839 = vrot.slane %v837, 5
      %v840 = vsel %vm720, %v835, %v839
      %v842 = vshrl.u32 %v653, 16
      %v844 = vrot.slane %v842, 4
      %v845 = vshll.u32 %v653, 16
      %v847 = vrot.slane %v845, 5
      %v848 = vor.u32 %v844, %v847
      %v849 = vrot.slane %v848, 4
      %v851 = vshll.u32 %v654, 16
      %v853 = vrot.slane %v851, 5
      %v854 = vsel %vm720, %v849, %v853
      %v855 = vshrl.u32 %v654, 16
      %v857 = vrot.slane %v855, 4
      %v858 = vor.u32 %v857, %v853
      %v859 = vrot.slane %v858, 4
      %v861 = vshll.u32 %v655, 16
      %v863 = vrot.slane %v861, 5
      %v864 = vsel %vm720, %v859, %v863
      %v866 = vshrl.u32 %v656, 16
      %v868 = vrot.slane %v866, 4
      %v869 = vshll.u32 %v656, 16
      %v871 = vrot.slane %v869, 5
      %v872 = vor.u32 %v868, %v871
      %v873 = vrot.slane %v872, 4
      %v875 = vshll.u32 %v657, 16
      %v877 = vrot.slane %v875, 5
      %v878 = vsel %vm720, %v873, %v877
      %v879 = vshrl.u32 %v657, 16
      %v881 = vrot.slane %v879, 4
      %v882 = vor.u32 %v881, %v877
      %v883 = vrot.slane %v882, 4
      %v885 = vshll.u32 %v658, 16
      %v887 = vrot.slane %v885, 5
      %v888 = vsel %vm720, %v883, %v887
      %v890 = vshrl.u32 %v659, 16
      %v892 = vrot.slane %v890, 4
      %v893 = vshll.u32 %v659, 16
      %v895 = vrot.slane %v893, 5
      %v896 = vor.u32 %v892, %v895
      %v897 = vrot.slane %v896, 4
      %v899 = vshll.u32 %v660, 16
      %v901 = vrot.slane %v899, 5
      %v902 = vsel %vm720, %v897, %v901
      %v903 = vshrl.u32 %v660, 16
      %v905 = vrot.slane %v903, 4
      %v906 = vor.u32 %v905, %v901
      %v907 = vrot.slane %v906, 4
      %v909 = vshll.u32 %v661, 16
      %v911 = vrot.slane %v909, 5
      %v912 = vsel %vm720, %v907, %v911
      %v914 = vshrl.u32 %v662, 16
      %v916 = vrot.slane %v914, 4
      %v917 = vshll.u32 %v662, 16
      %v919 = vrot.slane %v917, 5
      %v920 = vor.u32 %v916, %v919
      %v921 = vrot.slane %v920, 4
      %v923 = vshll.u32 %v663, 16
      %v925 = vrot.slane %v923, 5
      %v926 = vsel %vm720, %v921, %v925
      %v927 = vshrl.u32 %v663, 16
      %v929 = vrot.slane %v927, 4
      %v930 = vor.u32 %v929, %v925
      %v931 = vrot.slane %v930, 4
      %v933 = vshll.u32 %v664, 16
      %v935 = vrot.slane %v933, 5
      %v936 = vsel %vm720, %v931, %v935
      %v938 = vshrl.u32 %v665, 16
      %v940 = vrot.slane %v938, 4
      %v941 = vshll.u32 %v665, 16
      %v943 = vrot.slane %v941, 5
      %v944 = vor.u32 %v940, %v943
      %v945 = vrot.slane %v944, 4
      %v947 = vshll.u32 %v666, 16
      %v949 = vrot.slane %v947, 5
      %v950 = vsel %vm720, %v945, %v949
      %v951 = vshrl.u32 %v666, 16
      %v953 = vrot.slane %v951, 4
      %v954 = vor.u32 %v953, %v949
      %v955 = vrot.slane %v954, 4
      %v957 = vshll.u32 %v667, 16
      %v959 = vrot.slane %v957, 5
      %v960 = vsel %vm720, %v955, %v959
      %v962 = vshrl.u32 %v668, 16
      %v964 = vrot.slane %v962, 4
      %v965 = vshll.u32 %v668, 16
      %v967 = vrot.slane %v965, 5
      %v968 = vor.u32 %v964, %v967
      %v969 = vrot.slane %v968, 4
      %v971 = vshll.u32 %v669, 16
      %v973 = vrot.slane %v971, 5
      %v974 = vsel %vm720, %v969, %v973
      %v975 = vshrl.u32 %v669, 16
      %v977 = vrot.slane %v975, 4
      %v978 = vor.u32 %v977, %v973
      %v979 = vrot.slane %v978, 4
      %v981 = vshll.u32 %v670, 16
      %v983 = vrot.slane %v981, 5
      %v984 = vsel %vm720, %v979, %v983
      %v986 = vshrl.u32 %v671, 16
      %v988 = vrot.slane %v986, 4
      %v989 = vshll.u32 %v671, 16
      %v991 = vrot.slane %v989, 5
      %v992 = vor.u32 %v988, %v991
      %v993 = vrot.slane %v992, 4
      %v995 = vshll.u32 %v672, 16
      %v997 = vrot.slane %v995, 5
      %v998 = vsel %vm720, %v993, %v997
      %v999 = vshrl.u32 %v672, 16
      %v1001 = vrot.slane %v999, 4
      %v1002 = vor.u32 %v1001, %v997
      %v1003 = vrot.slane %v1002, 4
      %v1005 = vshll.u32 %v673, 16
      %v1007 = vrot.slane %v1005, 5
      %v1008 = vsel %vm720, %v1003, %v1007
      %v1010 = vshrl.u32 %v674, 16
      %v1012 = vrot.slane %v1010, 4
      %v1013 = vshll.u32 %v674, 16
      %v1015 = vrot.slane %v1013, 5
      %v1016 = vor.u32 %v1012, %v1015
      %v1017 = vrot.slane %v1016, 4
      %v1019 = vshll.u32 %v675, 16
      %v1021 = vrot.slane %v1019, 5
      %v1022 = vsel %vm720, %v1017, %v1021
      %v1023 = vshrl.u32 %v675, 16
      %v1025 = vrot.slane %v1023, 4
      %v1026 = vor.u32 %v1025, %v1021
      %v1027 = vrot.slane %v1026, 4
      %v1029 = vshll.u32 %v676, 16
      %v1031 = vrot.slane %v1029, 5
      %v1032 = vsel %vm720, %v1027, %v1031
      %v1034 = vshrl.u32 %v677, 16
      %v1036 = vrot.slane %v1034, 4
      %v1037 = vshll.u32 %v677, 16
      %v1039 = vrot.slane %v1037, 5
      %v1040 = vor.u32 %v1036, %v1039
      %v1041 = vrot.slane %v1040, 4
      %v1043 = vshll.u32 %v678, 16
      %v1045 = vrot.slane %v1043, 5
      %v1046 = vsel %vm720, %v1041, %v1045
      %v1047 = vshrl.u32 %v678, 16
      %v1049 = vrot.slane %v1047, 4
      %v1050 = vor.u32 %v1049, %v1045
      %v1051 = vrot.slane %v1050, 4
      %v1053 = vshll.u32 %v679, 16
      %v1055 = vrot.slane %v1053, 5
      %v1056 = vsel %vm720, %v1051, %v1055
      %v1058 = vshrl.u32 %v680, 16
      %v1060 = vrot.slane %v1058, 4
      %v1061 = vshll.u32 %v680, 16
      %v1063 = vrot.slane %v1061, 5
      %v1064 = vor.u32 %v1060, %v1063
      %v1065 = vrot.slane %v1064, 4
      %v1067 = vshll.u32 %v681, 16
      %v1069 = vrot.slane %v1067, 5
      %v1070 = vsel %vm720, %v1065, %v1069
      %v1071 = vshrl.u32 %v681, 16
      %v1073 = vrot.slane %v1071, 4
      %v1074 = vor.u32 %v1073, %v1069
      %v1075 = vrot.slane %v1074, 4
      %v1077 = vshll.u32 %v682, 16
      %v1079 = vrot.slane %v1077, 5
      %v1080 = vsel %vm720, %v1075, %v1079
      %v1082 = vshrl.u32 %v683, 16
      %v1084 = vrot.slane %v1082, 4
      %v1085 = vshll.u32 %v683, 16
      %v1087 = vrot.slane %v1085, 5
      %v1088 = vor.u32 %v1084, %v1087
      %v1089 = vrot.slane %v1088, 4
      %v1091 = vshll.u32 %v684, 16
      %v1093 = vrot.slane %v1091, 5
      %v1094 = vsel %vm720, %v1089, %v1093
      %v1095 = vshrl.u32 %v684, 16
      %v1097 = vrot.slane %v1095, 4
      %v1098 = vor.u32 %v1097, %v1093
      %v1099 = vrot.slane %v1098, 4
      %v1101 = vshll.u32 %v685, 16
      %v1103 = vrot.slane %v1101, 5
      %v1104 = vsel %vm720, %v1099, %v1103
      %s1105 = scalar_lea.vmem %s1, 2
      %v1106 = vld [vmem:[%s1105] sm:$0x3]
      %v1107 = vunpack.c.l.b16 %v734
      %v1108 = vunpack.c.l.b16 %v744
      %v1109 = vunpack.c.l.b16 %v758
      %v1110 = vunpack.c.l.b16 %v768
      %v1111 = vunpack.c.l.b16 %v782
      %v1112 = vunpack.c.l.b16 %v792
      %v1113 = vunpack.c.l.b16 %v806
      %v1114 = vunpack.c.l.b16 %v816
      %v1115 = vunpack.c.l.b16 %v830
      %v1116 = vunpack.c.l.b16 %v840
      %v1117 = vunpack.c.l.b16 %v854
      %v1118 = vunpack.c.l.b16 %v864
      %v1119 = vunpack.c.l.b16 %v878
      %v1120 = vunpack.c.l.b16 %v888
      %v1121 = vunpack.c.l.b16 %v902
      %v1122 = vunpack.c.l.b16 %v912
      %v1123 = vunpack.c.l.b16 %v926
      %v1124 = vunpack.c.l.b16 %v936
      %v1125 = vunpack.c.l.b16 %v950
      %v1126 = vunpack.c.l.b16 %v960
      %v1127 = vunpack.c.l.b16 %v974
      %v1128 = vunpack.c.l.b16 %v984
      %v1129 = vunpack.c.l.b16 %v998
      %v1130 = vunpack.c.l.b16 %v1008
      %v1131 = vunpack.c.l.b16 %v1022
      %v1132 = vunpack.c.l.b16 %v1032
      %v1133 = vunpack.c.l.b16 %v1046
      %v1134 = vunpack.c.l.b16 %v1056
      %v1135 = vunpack.c.l.b16 %v1070
      %v1136 = vunpack.c.l.b16 %v1080
      %v1137 = vunpack.c.l.b16 %v1094
      %v1138 = vunpack.c.l.b16 %v1104
      %v1139 = vpack.c.b16 %v1108, %v1107
      %v1140 = vpack.c.b16 %v1110, %v1109
      %v1141 = vpack.c.b16 %v1112, %v1111
      %v1142 = vpack.c.b16 %v1114, %v1113
      %v1143 = vpack.c.b16 %v1116, %v1115
      %v1144 = vpack.c.b16 %v1118, %v1117
      %v1145 = vpack.c.b16 %v1120, %v1119
      %v1146 = vpack.c.b16 %v1122, %v1121
      %v1147 = vpack.c.b16 %v1124, %v1123
      %v1148 = vpack.c.b16 %v1126, %v1125
      %v1149 = vpack.c.b16 %v1128, %v1127
      %v1150 = vpack.c.b16 %v1130, %v1129
      %v1151 = vpack.c.b16 %v1132, %v1131
      %v1152 = vpack.c.b16 %v1134, %v1133
      %v1153 = vpack.c.b16 %v1136, %v1135
      %v1154 = vpack.c.b16 %v1138, %v1137
      %v1156 = vsel %vm360, %v1139, 0
      %v1159 = vsel %vm360, %v1140, 0
      %v1162 = vsel %vm360, %v1141, 0
      %v1165 = vsel %vm360, %v1142, 0
      %v1168 = vsel %vm360, %v1143, 0
      %v1171 = vsel %vm360, %v1144, 0
      %v1174 = vsel %vm360, %v1145, 0
      %v1177 = vsel %vm360, %v1146, 0
      %v1180 = vsel %vm360, %v1147, 0
      %v1183 = vsel %vm360, %v1148, 0
      %v1186 = vsel %vm360, %v1149, 0
      %v1189 = vsel %vm360, %v1150, 0
      %v1192 = vsel %vm360, %v1151, 0
      %v1195 = vsel %vm360, %v1152, 0
      %v1198 = vsel %vm360, %v1153, 0
      %v1201 = vsel %vm360, %v1154, 0
      %v1204 = vsel %vm409, %v1106, 0
      %1206 = vmatprep.subr.bf16.mxu0 0
      %1207 = vmatpush1.bf16.msra.mxu0 0
      %1208 = vmatprep.subr.bf16.mxu0 0
      %1209 = vmatpush1.bf16.msra.mxu0 0
      %1210 = vmatprep.subr.bf16.mxu0 0
      %1211 = vmatpush1.bf16.msra.mxu0 0
      %1212 = vmatprep.subr.bf16.mxu0 0
      %1213 = vmatpush1.bf16.msra.mxu0 0
      %1214 = vmatprep.subr.bf16.mxu0 0
      %1215 = vmatpush1.bf16.msra.mxu0 0
      %1216 = vmatprep.subr.bf16.mxu0 0
      %1217 = vmatpush1.bf16.msra.mxu0 0
      %1218 = vmatprep.subr.bf16.mxu0 0
      %1219 = vmatpush1.bf16.msra.mxu0 0
      %1220 = vmatprep.subr.bf16.mxu0 0
      %1221 = vmatpush1.bf16.msra.mxu0 %v1204
      %1222 = vmatprep.subr.bf16.mxu0 0
      %1223 = vmatpush2.bf16.msra.mxu0 0
      %1224 = vmatprep.subr.bf16.mxu0 0
      %1225 = vmatpush2.bf16.msra.mxu0 0
      %1226 = vmatprep.subr.bf16.mxu0 0
      %1227 = vmatpush2.bf16.msra.mxu0 0
      %1228 = vmatprep.subr.bf16.mxu0 0
      %1229 = vmatpush2.bf16.msra.mxu0 0
      %1230 = vmatprep.subr.bf16.mxu0 0
      %1231 = vmatpush2.bf16.msra.mxu0 0
      %1232 = vmatprep.subr.bf16.mxu0 0
      %1233 = vmatpush2.bf16.msra.mxu0 0
      %1234 = vmatprep.subr.bf16.mxu0 0
      %1235 = vmatpush2.bf16.msra.mxu0 0
      %1236 = vmatprep.subr.bf16.mxu0 0
      %1237 = vmatpush2.bf16.msra.mxu0 0
      %1238 = vmatprep.mubr.bf16.mxu0 0
      %1239 = vmatmul.mubr.bf16.gmra.mxu0 %v1156
      %v1240 = vpop.f32.mrf.mxu0
      %v1241 = vadd.f32 0.0, %v1240
      %v1242 = vpop.f32.mrf.mxu0
      %v1243 = vpop.f32.mrf.mxu0
      %v1244 = vadd.f32 0.0, %v1243
      %v1245 = vpop.f32.mrf.mxu0
      %1246 = vmatprep.mubr.bf16.mxu0 0
      %1247 = vmatmul.mubr.bf16.gmra.mxu0 %v1159
      %v1248 = vpop.f32.mrf.mxu0
      %v1249 = vadd.f32 0.0, %v1248
      %v1250 = vpop.f32.mrf.mxu0
      %v1251 = vpop.f32.mrf.mxu0
      %v1252 = vadd.f32 0.0, %v1251
      %v1253 = vpop.f32.mrf.mxu0
      %1254 = vmatprep.mubr.bf16.mxu0 0
      %1255 = vmatmul.mubr.bf16.gmra.mxu0 %v1162
      %v1256 = vpop.f32.mrf.mxu0
      %v1257 = vadd.f32 0.0, %v1256
      %v1258 = vpop.f32.mrf.mxu0
      %v1259 = vpop.f32.mrf.mxu0
      %v1260 = vadd.f32 0.0, %v1259
      %v1261 = vpop.f32.mrf.mxu0
      %1262 = vmatprep.mubr.bf16.mxu0 0
      %1263 = vmatmul.mubr.bf16.gmra.mxu0 %v1165
      %v1264 = vpop.f32.mrf.mxu0
      %v1265 = vadd.f32 0.0, %v1264
      %v1266 = vpop.f32.mrf.mxu0
      %v1267 = vpop.f32.mrf.mxu0
      %v1268 = vadd.f32 0.0, %v1267
      %v1269 = vpop.f32.mrf.mxu0
      %1270 = vmatprep.mubr.bf16.mxu0 0
      %1271 = vmatmul.mubr.bf16.gmra.mxu0 %v1168
      %v1272 = vpop.f32.mrf.mxu0
      %v1273 = vadd.f32 0.0, %v1272
      %v1274 = vpop.f32.mrf.mxu0
      %v1275 = vpop.f32.mrf.mxu0
      %v1276 = vadd.f32 0.0, %v1275
      %v1277 = vpop.f32.mrf.mxu0
      %1278 = vmatprep.mubr.bf16.mxu0 0
      %1279 = vmatmul.mubr.bf16.gmra.mxu0 %v1171
      %v1280 = vpop.f32.mrf.mxu0
      %v1281 = vadd.f32 0.0, %v1280
      %v1282 = vpop.f32.mrf.mxu0
      %v1283 = vpop.f32.mrf.mxu0
      %v1284 = vadd.f32 0.0, %v1283
      %v1285 = vpop.f32.mrf.mxu0
      %1286 = vmatprep.mubr.bf16.mxu0 0
      %1287 = vmatmul.mubr.bf16.gmra.mxu0 %v1174
      %v1288 = vpop.f32.mrf.mxu0
      %v1289 = vadd.f32 0.0, %v1288
      %v1290 = vpop.f32.mrf.mxu0
      %v1291 = vpop.f32.mrf.mxu0
      %v1292 = vadd.f32 0.0, %v1291
      %v1293 = vpop.f32.mrf.mxu0
      %1294 = vmatprep.mubr.bf16.mxu0 0
      %1295 = vmatmul.mubr.bf16.gmra.mxu0 %v1177
      %v1296 = vpop.f32.mrf.mxu0
      %v1297 = vadd.f32 0.0, %v1296
      %v1298 = vpop.f32.mrf.mxu0
      %v1299 = vpop.f32.mrf.mxu0
      %v1300 = vadd.f32 0.0, %v1299
      %v1301 = vpop.f32.mrf.mxu0
      %1302 = vmatprep.mubr.bf16.mxu0 0
      %1303 = vmatmul.mubr.bf16.gmra.mxu0 %v1180
      %v1304 = vpop.f32.mrf.mxu0
      %v1305 = vadd.f32 0.0, %v1304
      %v1306 = vpop.f32.mrf.mxu0
      %v1307 = vpop.f32.mrf.mxu0
      %v1308 = vadd.f32 0.0, %v1307
      %v1309 = vpop.f32.mrf.mxu0
      %1310 = vmatprep.mubr.bf16.mxu0 0
      %1311 = vmatmul.mubr.bf16.gmra.mxu0 %v1183
      %v1312 = vpop.f32.mrf.mxu0
      %v1313 = vadd.f32 0.0, %v1312
      %v1314 = vpop.f32.mrf.mxu0
      %v1315 = vpop.f32.mrf.mxu0
      %v1316 = vadd.f32 0.0, %v1315
      %v1317 = vpop.f32.mrf.mxu0
      %1318 = vmatprep.mubr.bf16.mxu0 0
      %1319 = vmatmul.mubr.bf16.gmra.mxu0 %v1186
      %v1320 = vpop.f32.mrf.mxu0
      %v1321 = vadd.f32 0.0, %v1320
      %v1322 = vpop.f32.mrf.mxu0
      %v1323 = vpop.f32.mrf.mxu0
      %v1324 = vadd.f32 0.0, %v1323
      %v1325 = vpop.f32.mrf.mxu0
      %1326 = vmatprep.mubr.bf16.mxu0 0
      %1327 = vmatmul.mubr.bf16.gmra.mxu0 %v1189
      %v1328 = vpop.f32.mrf.mxu0
      %v1329 = vadd.f32 0.0, %v1328
      %v1330 = vpop.f32.mrf.mxu0
      %v1331 = vpop.f32.mrf.mxu0
      %v1332 = vadd.f32 0.0, %v1331
      %v1333 = vpop.f32.mrf.mxu0
      %1334 = vmatprep.mubr.bf16.mxu0 0
      %1335 = vmatmul.mubr.bf16.gmra.mxu0 %v1192
      %v1336 = vpop.f32.mrf.mxu0
      %v1337 = vadd.f32 0.0, %v1336
      %v1338 = vpop.f32.mrf.mxu0
      %v1339 = vpop.f32.mrf.mxu0
      %v1340 = vadd.f32 0.0, %v1339
      %v1341 = vpop.f32.mrf.mxu0
      %1342 = vmatprep.mubr.bf16.mxu0 0
      %1343 = vmatmul.mubr.bf16.gmra.mxu0 %v1195
      %v1344 = vpop.f32.mrf.mxu0
      %v1345 = vadd.f32 0.0, %v1344
      %v1346 = vpop.f32.mrf.mxu0
      %v1347 = vpop.f32.mrf.mxu0
      %v1348 = vadd.f32 0.0, %v1347
      %v1349 = vpop.f32.mrf.mxu0
      %1350 = vmatprep.mubr.bf16.mxu0 0
      %1351 = vmatmul.mubr.bf16.gmra.mxu0 %v1198
      %v1352 = vpop.f32.mrf.mxu0
      %v1353 = vadd.f32 0.0, %v1352
      %v1354 = vpop.f32.mrf.mxu0
      %v1355 = vpop.f32.mrf.mxu0
      %v1356 = vadd.f32 0.0, %v1355
      %v1357 = vpop.f32.mrf.mxu0
      %1358 = vmatprep.mubr.bf16.mxu0 0
      %1359 = vmatmul.mubr.bf16.gmra.mxu0 %v1201
      %v1360 = vpop.f32.mrf.mxu0
      %v1361 = vadd.f32 0.0, %v1360
      %v1362 = vpop.f32.mrf.mxu0
      %v1363 = vpop.f32.mrf.mxu0
      %v1364 = vadd.f32 0.0, %v1363
      %v1365 = vpop.f32.mrf.mxu0
      %1366 = vdwg.mxu0
      %v1367 = vadd.f32 %v686, %v1241
      %v1368 = vadd.f32 %v687, %v1244
      %v1369 = vadd.f32 %v688, %v1249
      %v1370 = vadd.f32 %v689, %v1252
      %v1371 = vadd.f32 %v690, %v1257
      %v1372 = vadd.f32 %v691, %v1260
      %v1373 = vadd.f32 %v692, %v1265
      %v1374 = vadd.f32 %v693, %v1268
      %v1375 = vadd.f32 %v694, %v1273
      %v1376 = vadd.f32 %v695, %v1276
      %v1377 = vadd.f32 %v696, %v1281
      %v1378 = vadd.f32 %v697, %v1284
      %v1379 = vadd.f32 %v698, %v1289
      %v1380 = vadd.f32 %v699, %v1292
      %v1381 = vadd.f32 %v700, %v1297
      %v1382 = vadd.f32 %v701, %v1300
      %v1383 = vadd.f32 %v702, %v1305
      %v1384 = vadd.f32 %v703, %v1308
      %v1385 = vadd.f32 %v704, %v1313
      %v1386 = vadd.f32 %v705, %v1316
      %v1387 = vadd.f32 %v706, %v1321
      %v1388 = vadd.f32 %v707, %v1324
      %v1389 = vadd.f32 %v708, %v1329
      %v1390 = vadd.f32 %v709, %v1332
      %v1391 = vadd.f32 %v710, %v1337
      %v1392 = vadd.f32 %v711, %v1340
      %v1393 = vadd.f32 %v712, %v1345
      %v1394 = vadd.f32 %v713, %v1348
      %v1395 = vadd.f32 %v714, %v1353
      %v1396 = vadd.f32 %v715, %v1356
      %v1397 = vadd.f32 %v716, %v1361
      %v1398 = vadd.f32 %v717, %v1364
      %1399 = vst [vmem:[#allocation2] sm:$0xff] %v1367
      %1400 = vst [vmem:[#allocation2 + $0x8] sm:$0xff] %v1368
      %1401 = vst [vmem:[#allocation2 + $0x10] sm:$0xff] %v1369
      %1402 = vst [vmem:[#allocation2 + $0x18] sm:$0xff] %v1370
      %1403 = vst [vmem:[#allocation2 + $0x20] sm:$0xff] %v1371
      %1404 = vst [vmem:[#allocation2 + $0x28] sm:$0xff] %v1372
      %1405 = vst [vmem:[#allocation2 + $0x30] sm:$0xff] %v1373
      %1406 = vst [vmem:[#allocation2 + $0x38] sm:$0xff] %v1374
      %1407 = vst [vmem:[#allocation2 + $0x40] sm:$0xff] %v1375
      %1408 = vst [vmem:[#allocation2 + $0x48] sm:$0xff] %v1376
      %1409 = vst [vmem:[#allocation2 + $0x50] sm:$0xff] %v1377
      %1410 = vst [vmem:[#allocation2 + $0x58] sm:$0xff] %v1378
      %1411 = vst [vmem:[#allocation2 + $0x60] sm:$0xff] %v1379
      %1412 = vst [vmem:[#allocation2 + $0x68] sm:$0xff] %v1380
      %1413 = vst [vmem:[#allocation2 + $0x70] sm:$0xff] %v1381
      %1414 = vst [vmem:[#allocation2 + $0x78] sm:$0xff] %v1382
      %1415 = vst [vmem:[#allocation2 + $0x80] sm:$0xff] %v1383
      %1416 = vst [vmem:[#allocation2 + $0x88] sm:$0xff] %v1384
      %1417 = vst [vmem:[#allocation2 + $0x90] sm:$0xff] %v1385
      %1418 = vst [vmem:[#allocation2 + $0x98] sm:$0xff] %v1386
      %1419 = vst [vmem:[#allocation2 + $0xa0] sm:$0xff] %v1387
      %1420 = vst [vmem:[#allocation2 + $0xa8] sm:$0xff] %v1388
      %1421 = vst [vmem:[#allocation2 + $0xb0] sm:$0xff] %v1389
      %1422 = vst [vmem:[#allocation2 + $0xb8] sm:$0xff] %v1390
      %1423 = vst [vmem:[#allocation2 + $0xc0] sm:$0xff] %v1391
      %1424 = vst [vmem:[#allocation2 + $0xc8] sm:$0xff] %v1392
      %1425 = vst [vmem:[#allocation2 + $0xd0] sm:$0xff] %v1393
      %1426 = vst [vmem:[#allocation2 + $0xd8] sm:$0xff] %v1394
      %1427 = vst [vmem:[#allocation2 + $0xe0] sm:$0xff] %v1395
      %1428 = vst [vmem:[#allocation2 + $0xe8] sm:$0xff] %v1396
      %1429 = vst [vmem:[#allocation2 + $0xf0] sm:$0xff] %v1397
      %1430 = vst [vmem:[#allocation2 + $0xf8] sm:$0xff] %v1398
      %v1431 = vld [vmem:[%s172] sm:$0xe]
      %v1432 = vld [vmem:[%s172 + $0x4] sm:$0xf]
      %v1433 = vld [vmem:[%s172 + $0x8] sm:$0x1]
      %v1434 = vld [vmem:[%s172 + $0xc] sm:$0xe]
      %v1435 = vld [vmem:[%s172 + $0x10] sm:$0xf]
      %v1436 = vld [vmem:[%s172 + $0x14] sm:$0x1]
      %v1437 = vld [vmem:[%s172 + $0x18] sm:$0xe]
      %v1438 = vld [vmem:[%s172 + $0x1c] sm:$0xf]
      %v1439 = vld [vmem:[%s172 + $0x20] sm:$0x1]
      %v1440 = vld [vmem:[%s172 + $0x24] sm:$0xe]
      %v1441 = vld [vmem:[%s172 + $0x28] sm:$0xf]
      %v1442 = vld [vmem:[%s172 + $0x2c] sm:$0x1]
      %v1443 = vld [vmem:[%s172 + $0x30] sm:$0xe]
      %v1444 = vld [vmem:[%s172 + $0x34] sm:$0xf]
      %v1445 = vld [vmem:[%s172 + $0x38] sm:$0x1]
      %v1446 = vld [vmem:[%s172 + $0x3c] sm:$0xe]
      %v1447 = vld [vmem:[%s172 + $0x40] sm:$0xf]
      %v1448 = vld [vmem:[%s172 + $0x44] sm:$0x1]
      %v1449 = vld [vmem:[%s172 + $0x48] sm:$0xe]
      %v1450 = vld [vmem:[%s172 + $0x4c] sm:$0xf]
      %v1451 = vld [vmem:[%s172 + $0x50] sm:$0x1]
      %v1452 = vld [vmem:[%s172 + $0x54] sm:$0xe]
      %v1453 = vld [vmem:[%s172 + $0x58] sm:$0xf]
      %v1454 = vld [vmem:[%s172 + $0x5c] sm:$0x1]
      %v1455 = vld [vmem:[%s172 + $0x60] sm:$0xe]
      %v1456 = vld [vmem:[%s172 + $0x64] sm:$0xf]
      %v1457 = vld [vmem:[%s172 + $0x68] sm:$0x1]
      %v1458 = vld [vmem:[%s172 + $0x6c] sm:$0xe]
      %v1459 = vld [vmem:[%s172 + $0x70] sm:$0xf]
      %v1460 = vld [vmem:[%s172 + $0x74] sm:$0x1]
      %v1461 = vld [vmem:[%s172 + $0x78] sm:$0xe]
      %v1462 = vld [vmem:[%s172 + $0x7c] sm:$0xf]
      %v1463 = vld [vmem:[%s172 + $0x80] sm:$0x1]
      %v1464 = vld [vmem:[%s172 + $0x84] sm:$0xe]
      %v1465 = vld [vmem:[%s172 + $0x88] sm:$0xf]
      %v1466 = vld [vmem:[%s172 + $0x8c] sm:$0x1]
      %v1467 = vld [vmem:[%s172 + $0x90] sm:$0xe]
      %v1468 = vld [vmem:[%s172 + $0x94] sm:$0xf]
      %v1469 = vld [vmem:[%s172 + $0x98] sm:$0x1]
      %v1470 = vld [vmem:[%s172 + $0x9c] sm:$0xe]
      %v1471 = vld [vmem:[%s172 + $0xa0] sm:$0xf]
      %v1472 = vld [vmem:[%s172 + $0xa4] sm:$0x1]
      %v1473 = vld [vmem:[%s172 + $0xa8] sm:$0xe]
      %v1474 = vld [vmem:[%s172 + $0xac] sm:$0xf]
      %v1475 = vld [vmem:[%s172 + $0xb0] sm:$0x1]
      %v1476 = vld [vmem:[%s172 + $0xb4] sm:$0xe]
      %v1477 = vld [vmem:[%s172 + $0xb8] sm:$0xf]
      %v1478 = vld [vmem:[%s172 + $0xbc] sm:$0x1]
      %v1479 = vld [vmem:[#allocation2] sm:$0xff]
      %v1480 = vld [vmem:[#allocation2 + $0x8] sm:$0xff]
      %v1481 = vld [vmem:[#allocation2 + $0x10] sm:$0xff]
      %v1482 = vld [vmem:[#allocation2 + $0x18] sm:$0xff]
      %v1483 = vld [vmem:[#allocation2 + $0x20] sm:$0xff]
      %v1484 = vld [vmem:[#allocation2 + $0x28] sm:$0xff]
      %v1485 = vld [vmem:[#allocation2 + $0x30] sm:$0xff]
      %v1486 = vld [vmem:[#allocation2 + $0x38] sm:$0xff]
      %v1487 = vld [vmem:[#allocation2 + $0x40] sm:$0xff]
      %v1488 = vld [vmem:[#allocation2 + $0x48] sm:$0xff]
      %v1489 = vld [vmem:[#allocation2 + $0x50] sm:$0xff]
      %v1490 = vld [vmem:[#allocation2 + $0x58] sm:$0xff]
      %v1491 = vld [vmem:[#allocation2 + $0x60] sm:$0xff]
      %v1492 = vld [vmem:[#allocation2 + $0x68] sm:$0xff]
      %v1493 = vld [vmem:[#allocation2 + $0x70] sm:$0xff]
      %v1494 = vld [vmem:[#allocation2 + $0x78] sm:$0xff]
      %v1495 = vld [vmem:[#allocation2 + $0x80] sm:$0xff]
      %v1496 = vld [vmem:[#allocation2 + $0x88] sm:$0xff]
      %v1497 = vld [vmem:[#allocation2 + $0x90] sm:$0xff]
      %v1498 = vld [vmem:[#allocation2 + $0x98] sm:$0xff]
      %v1499 = vld [vmem:[#allocation2 + $0xa0] sm:$0xff]
      %v1500 = vld [vmem:[#allocation2 + $0xa8] sm:$0xff]
      %v1501 = vld [vmem:[#allocation2 + $0xb0] sm:$0xff]
      %v1502 = vld [vmem:[#allocation2 + $0xb8] sm:$0xff]
      %v1503 = vld [vmem:[#allocation2 + $0xc0] sm:$0xff]
      %v1504 = vld [vmem:[#allocation2 + $0xc8] sm:$0xff]
      %v1505 = vld [vmem:[#allocation2 + $0xd0] sm:$0xff]
      %v1506 = vld [vmem:[#allocation2 + $0xd8] sm:$0xff]
      %v1507 = vld [vmem:[#allocation2 + $0xe0] sm:$0xff]
      %v1508 = vld [vmem:[#allocation2 + $0xe8] sm:$0xff]
      %v1509 = vld [vmem:[#allocation2 + $0xf0] sm:$0xff]
      %v1510 = vld [vmem:[#allocation2 + $0xf8] sm:$0xff]
      %vm1559 = vcmask 1042432
      %vm1560 = vcmask 1046532
      %vm1561 = vmor %vm1559, %vm1560
      %v1562 = vrot.slane %v1431, 5
      %v1563 = vrot.slane %v1562, 4
      %v1564 = vrot.slane %v1432, 5
      %v1565 = vsel %vm1561, %v1563, %v1564
      %v1566 = vrot.slane %v1564, 4
      %v1567 = vrot.slane %v1433, 5
      %v1568 = vsel %vm1561, %v1566, %v1567
      %v1569 = vrot.slane %v1434, 5
      %v1570 = vrot.slane %v1569, 4
      %v1571 = vrot.slane %v1435, 5
      %v1572 = vsel %vm1561, %v1570, %v1571
      %v1573 = vrot.slane %v1571, 4
      %v1574 = vrot.slane %v1436, 5
      %v1575 = vsel %vm1561, %v1573, %v1574
      %v1576 = vrot.slane %v1437, 5
      %v1577 = vrot.slane %v1576, 4
      %v1578 = vrot.slane %v1438, 5
      %v1579 = vsel %vm1561, %v1577, %v1578
      %v1580 = vrot.slane %v1578, 4
      %v1581 = vrot.slane %v1439, 5
      %v1582 = vsel %vm1561, %v1580, %v1581
      %v1583 = vrot.slane %v1440, 5
      %v1584 = vrot.slane %v1583, 4
      %v1585 = vrot.slane %v1441, 5
      %v1586 = vsel %vm1561, %v1584, %v1585
      %v1587 = vrot.slane %v1585, 4
      %v1588 = vrot.slane %v1442, 5
      %v1589 = vsel %vm1561, %v1587, %v1588
      %v1590 = vrot.slane %v1443, 5
      %v1591 = vrot.slane %v1590, 4
      %v1592 = vrot.slane %v1444, 5
      %v1593 = vsel %vm1561, %v1591, %v1592
      %v1594 = vrot.slane %v1592, 4
      %v1595 = vrot.slane %v1445, 5
      %v1596 = vsel %vm1561, %v1594, %v1595
      %v1597 = vrot.slane %v1446, 5
      %v1598 = vrot.slane %v1597, 4
      %v1599 = vrot.slane %v1447, 5
      %v1600 = vsel %vm1561, %v1598, %v1599
      %v1601 = vrot.slane %v1599, 4
      %v1602 = vrot.slane %v1448, 5
      %v1603 = vsel %vm1561, %v1601, %v1602
      %v1604 = vrot.slane %v1449, 5
      %v1605 = vrot.slane %v1604, 4
      %v1606 = vrot.slane %v1450, 5
      %v1607 = vsel %vm1561, %v1605, %v1606
      %v1608 = vrot.slane %v1606, 4
      %v1609 = vrot.slane %v1451, 5
      %v1610 = vsel %vm1561, %v1608, %v1609
      %v1611 = vrot.slane %v1452, 5
      %v1612 = vrot.slane %v1611, 4
      %v1613 = vrot.slane %v1453, 5
      %v1614 = vsel %vm1561, %v1612, %v1613
      %v1615 = vrot.slane %v1613, 4
      %v1616 = vrot.slane %v1454, 5
      %v1617 = vsel %vm1561, %v1615, %v1616
      %v1618 = vrot.slane %v1455, 5
      %v1619 = vrot.slane %v1618, 4
      %v1620 = vrot.slane %v1456, 5
      %v1621 = vsel %vm1561, %v1619, %v1620
      %v1622 = vrot.slane %v1620, 4
      %v1623 = vrot.slane %v1457, 5
      %v1624 = vsel %vm1561, %v1622, %v1623
      %v1625 = vrot.slane %v1458, 5
      %v1626 = vrot.slane %v1625, 4
      %v1627 = vrot.slane %v1459, 5
      %v1628 = vsel %vm1561, %v1626, %v1627
      %v1629 = vrot.slane %v1627, 4
      %v1630 = vrot.slane %v1460, 5
      %v1631 = vsel %vm1561, %v1629, %v1630
      %v1632 = vrot.slane %v1461, 5
      %v1633 = vrot.slane %v1632, 4
      %v1634 = vrot.slane %v1462, 5
      %v1635 = vsel %vm1561, %v1633, %v1634
      %v1636 = vrot.slane %v1634, 4
      %v1637 = vrot.slane %v1463, 5
      %v1638 = vsel %vm1561, %v1636, %v1637
      %v1639 = vrot.slane %v1464, 5
      %v1640 = vrot.slane %v1639, 4
      %v1641 = vrot.slane %v1465, 5
      %v1642 = vsel %vm1561, %v1640, %v1641
      %v1643 = vrot.slane %v1641, 4
      %v1644 = vrot.slane %v1466, 5
      %v1645 = vsel %vm1561, %v1643, %v1644
      %v1646 = vrot.slane %v1467, 5
      %v1647 = vrot.slane %v1646, 4
      %v1648 = vrot.slane %v1468, 5
      %v1649 = vsel %vm1561, %v1647, %v1648
      %v1650 = vrot.slane %v1648, 4
      %v1651 = vrot.slane %v1469, 5
      %v1652 = vsel %vm1561, %v1650, %v1651
      %v1653 = vrot.slane %v1470, 5
      %v1654 = vrot.slane %v1653, 4
      %v1655 = vrot.slane %v1471, 5
      %v1656 = vsel %vm1561, %v1654, %v1655
      %v1657 = vrot.slane %v1655, 4
      %v1658 = vrot.slane %v1472, 5
      %v1659 = vsel %vm1561, %v1657, %v1658
      %v1660 = vrot.slane %v1473, 5
      %v1661 = vrot.slane %v1660, 4
      %v1662 = vrot.slane %v1474, 5
      %v1663 = vsel %vm1561, %v1661, %v1662
      %v1664 = vrot.slane %v1662, 4
      %v1665 = vrot.slane %v1475, 5
      %v1666 = vsel %vm1561, %v1664, %v1665
      %v1667 = vrot.slane %v1476, 5
      %v1668 = vrot.slane %v1667, 4
      %v1669 = vrot.slane %v1477, 5
      %v1670 = vsel %vm1561, %v1668, %v1669
      %v1671 = vrot.slane %v1669, 4
      %v1672 = vrot.slane %v1478, 5
      %v1673 = vsel %vm1561, %v1671, %v1672
      %s1674 = scalar_lea.vmem %s1, 4
      %v1675 = vld [vmem:[%s1674] sm:$0x3]
      %v1676 = vunpack.c.l.b16 %v1565
      %v1677 = vunpack.c.l.b16 %v1568
      %v1678 = vunpack.c.l.b16 %v1572
      %v1679 = vunpack.c.l.b16 %v1575
      %v1680 = vunpack.c.l.b16 %v1579
      %v1681 = vunpack.c.l.b16 %v1582
      %v1682 = vunpack.c.l.b16 %v1586
      %v1683 = vunpack.c.l.b16 %v1589
      %v1684 = vunpack.c.l.b16 %v1593
      %v1685 = vunpack.c.l.b16 %v1596
      %v1686 = vunpack.c.l.b16 %v1600
      %v1687 = vunpack.c.l.b16 %v1603
      %v1688 = vunpack.c.l.b16 %v1607
      %v1689 = vunpack.c.l.b16 %v1610
      %v1690 = vunpack.c.l.b16 %v1614
      %v1691 = vunpack.c.l.b16 %v1617
      %v1692 = vunpack.c.l.b16 %v1621
      %v1693 = vunpack.c.l.b16 %v1624
      %v1694 = vunpack.c.l.b16 %v1628
      %v1695 = vunpack.c.l.b16 %v1631
      %v1696 = vunpack.c.l.b16 %v1635
      %v1697 = vunpack.c.l.b16 %v1638
      %v1698 = vunpack.c.l.b16 %v1642
      %v1699 = vunpack.c.l.b16 %v1645
      %v1700 = vunpack.c.l.b16 %v1649
      %v1701 = vunpack.c.l.b16 %v1652
      %v1702 = vunpack.c.l.b16 %v1656
      %v1703 = vunpack.c.l.b16 %v1659
      %v1704 = vunpack.c.l.b16 %v1663
      %v1705 = vunpack.c.l.b16 %v1666
      %v1706 = vunpack.c.l.b16 %v1670
      %v1707 = vunpack.c.l.b16 %v1673
      %v1708 = vpack.c.b16 %v1677, %v1676
      %v1709 = vpack.c.b16 %v1679, %v1678
      %v1710 = vpack.c.b16 %v1681, %v1680
      %v1711 = vpack.c.b16 %v1683, %v1682
      %v1712 = vpack.c.b16 %v1685, %v1684
      %v1713 = vpack.c.b16 %v1687, %v1686
      %v1714 = vpack.c.b16 %v1689, %v1688
      %v1715 = vpack.c.b16 %v1691, %v1690
      %v1716 = vpack.c.b16 %v1693, %v1692
      %v1717 = vpack.c.b16 %v1695, %v1694
      %v1718 = vpack.c.b16 %v1697, %v1696
      %v1719 = vpack.c.b16 %v1699, %v1698
      %v1720 = vpack.c.b16 %v1701, %v1700
      %v1721 = vpack.c.b16 %v1703, %v1702
      %v1722 = vpack.c.b16 %v1705, %v1704
      %v1723 = vpack.c.b16 %v1707, %v1706
      %v1725 = vsel %vm360, %v1708, 0
      %v1728 = vsel %vm360, %v1709, 0
      %v1731 = vsel %vm360, %v1710, 0
      %v1734 = vsel %vm360, %v1711, 0
      %v1737 = vsel %vm360, %v1712, 0
      %v1740 = vsel %vm360, %v1713, 0
      %v1743 = vsel %vm360, %v1714, 0
      %v1746 = vsel %vm360, %v1715, 0
      %v1749 = vsel %vm360, %v1716, 0
      %v1752 = vsel %vm360, %v1717, 0
      %v1755 = vsel %vm360, %v1718, 0
      %v1758 = vsel %vm360, %v1719, 0
      %v1761 = vsel %vm360, %v1720, 0
      %v1764 = vsel %vm360, %v1721, 0
      %v1767 = vsel %vm360, %v1722, 0
      %v1770 = vsel %vm360, %v1723, 0
      %v1773 = vsel %vm409, %v1675, 0
      %1775 = vmatprep.subr.bf16.mxu0 0
      %1776 = vmatpush1.bf16.msra.mxu0 0
      %1777 = vmatprep.subr.bf16.mxu0 0
      %1778 = vmatpush1.bf16.msra.mxu0 0
      %1779 = vmatprep.subr.bf16.mxu0 0
      %1780 = vmatpush1.bf16.msra.mxu0 0
      %1781 = vmatprep.subr.bf16.mxu0 0
      %1782 = vmatpush1.bf16.msra.mxu0 0
      %1783 = vmatprep.subr.bf16.mxu0 0
      %1784 = vmatpush1.bf16.msra.mxu0 0
      %1785 = vmatprep.subr.bf16.mxu0 0
      %1786 = vmatpush1.bf16.msra.mxu0 0
      %1787 = vmatprep.subr.bf16.mxu0 0
      %1788 = vmatpush1.bf16.msra.mxu0 0
      %1789 = vmatprep.subr.bf16.mxu0 0
      %1790 = vmatpush1.bf16.msra.mxu0 %v1773
      %1791 = vmatprep.subr.bf16.mxu0 0
      %1792 = vmatpush2.bf16.msra.mxu0 0
      %1793 = vmatprep.subr.bf16.mxu0 0
      %1794 = vmatpush2.bf16.msra.mxu0 0
      %1795 = vmatprep.subr.bf16.mxu0 0
      %1796 = vmatpush2.bf16.msra.mxu0 0
      %1797 = vmatprep.subr.bf16.mxu0 0
      %1798 = vmatpush2.bf16.msra.mxu0 0
      %1799 = vmatprep.subr.bf16.mxu0 0
      %1800 = vmatpush2.bf16.msra.mxu0 0
      %1801 = vmatprep.subr.bf16.mxu0 0
      %1802 = vmatpush2.bf16.msra.mxu0 0
      %1803 = vmatprep.subr.bf16.mxu0 0
      %1804 = vmatpush2.bf16.msra.mxu0 0
      %1805 = vmatprep.subr.bf16.mxu0 0
      %1806 = vmatpush2.bf16.msra.mxu0 0
      %1807 = vmatprep.mubr.bf16.mxu0 0
      %1808 = vmatmul.mubr.bf16.gmra.mxu0 %v1725
      %v1809 = vpop.f32.mrf.mxu0
      %v1810 = vadd.f32 0.0, %v1809
      %v1811 = vpop.f32.mrf.mxu0
      %v1812 = vpop.f32.mrf.mxu0
      %v1813 = vadd.f32 0.0, %v1812
      %v1814 = vpop.f32.mrf.mxu0
      %1815 = vmatprep.mubr.bf16.mxu0 0
      %1816 = vmatmul.mubr.bf16.gmra.mxu0 %v1728
      %v1817 = vpop.f32.mrf.mxu0
      %v1818 = vadd.f32 0.0, %v1817
      %v1819 = vpop.f32.mrf.mxu0
      %v1820 = vpop.f32.mrf.mxu0
      %v1821 = vadd.f32 0.0, %v1820
      %v1822 = vpop.f32.mrf.mxu0
      %1823 = vmatprep.mubr.bf16.mxu0 0
      %1824 = vmatmul.mubr.bf16.gmra.mxu0 %v1731
      %v1825 = vpop.f32.mrf.mxu0
      %v1826 = vadd.f32 0.0, %v1825
      %v1827 = vpop.f32.mrf.mxu0
      %v1828 = vpop.f32.mrf.mxu0
      %v1829 = vadd.f32 0.0, %v1828
      %v1830 = vpop.f32.mrf.mxu0
      %1831 = vmatprep.mubr.bf16.mxu0 0
      %1832 = vmatmul.mubr.bf16.gmra.mxu0 %v1734
      %v1833 = vpop.f32.mrf.mxu0
      %v1834 = vadd.f32 0.0, %v1833
      %v1835 = vpop.f32.mrf.mxu0
      %v1836 = vpop.f32.mrf.mxu0
      %v1837 = vadd.f32 0.0, %v1836
      %v1838 = vpop.f32.mrf.mxu0
      %1839 = vmatprep.mubr.bf16.mxu0 0
      %1840 = vmatmul.mubr.bf16.gmra.mxu0 %v1737
      %v1841 = vpop.f32.mrf.mxu0
      %v1842 = vadd.f32 0.0, %v1841
      %v1843 = vpop.f32.mrf.mxu0
      %v1844 = vpop.f32.mrf.mxu0
      %v1845 = vadd.f32 0.0, %v1844
      %v1846 = vpop.f32.mrf.mxu0
      %1847 = vmatprep.mubr.bf16.mxu0 0
      %1848 = vmatmul.mubr.bf16.gmra.mxu0 %v1740
      %v1849 = vpop.f32.mrf.mxu0
      %v1850 = vadd.f32 0.0, %v1849
      %v1851 = vpop.f32.mrf.mxu0
      %v1852 = vpop.f32.mrf.mxu0
      %v1853 = vadd.f32 0.0, %v1852
      %v1854 = vpop.f32.mrf.mxu0
      %1855 = vmatprep.mubr.bf16.mxu0 0
      %1856 = vmatmul.mubr.bf16.gmra.mxu0 %v1743
      %v1857 = vpop.f32.mrf.mxu0
      %v1858 = vadd.f32 0.0, %v1857
      %v1859 = vpop.f32.mrf.mxu0
      %v1860 = vpop.f32.mrf.mxu0
      %v1861 = vadd.f32 0.0, %v1860
      %v1862 = vpop.f32.mrf.mxu0
      %1863 = vmatprep.mubr.bf16.mxu0 0
      %1864 = vmatmul.mubr.bf16.gmra.mxu0 %v1746
      %v1865 = vpop.f32.mrf.mxu0
      %v1866 = vadd.f32 0.0, %v1865
      %v1867 = vpop.f32.mrf.mxu0
      %v1868 = vpop.f32.mrf.mxu0
      %v1869 = vadd.f32 0.0, %v1868
      %v1870 = vpop.f32.mrf.mxu0
      %1871 = vmatprep.mubr.bf16.mxu0 0
      %1872 = vmatmul.mubr.bf16.gmra.mxu0 %v1749
      %v1873 = vpop.f32.mrf.mxu0
      %v1874 = vadd.f32 0.0, %v1873
      %v1875 = vpop.f32.mrf.mxu0
      %v1876 = vpop.f32.mrf.mxu0
      %v1877 = vadd.f32 0.0, %v1876
      %v1878 = vpop.f32.mrf.mxu0
      %1879 = vmatprep.mubr.bf16.mxu0 0
      %1880 = vmatmul.mubr.bf16.gmra.mxu0 %v1752
      %v1881 = vpop.f32.mrf.mxu0
      %v1882 = vadd.f32 0.0, %v1881
      %v1883 = vpop.f32.mrf.mxu0
      %v1884 = vpop.f32.mrf.mxu0
      %v1885 = vadd.f32 0.0, %v1884
      %v1886 = vpop.f32.mrf.mxu0
      %1887 = vmatprep.mubr.bf16.mxu0 0
      %1888 = vmatmul.mubr.bf16.gmra.mxu0 %v1755
      %v1889 = vpop.f32.mrf.mxu0
      %v1890 = vadd.f32 0.0, %v1889
      %v1891 = vpop.f32.mrf.mxu0
      %v1892 = vpop.f32.mrf.mxu0
      %v1893 = vadd.f32 0.0, %v1892
      %v1894 = vpop.f32.mrf.mxu0
      %1895 = vmatprep.mubr.bf16.mxu0 0
      %1896 = vmatmul.mubr.bf16.gmra.mxu0 %v1758
      %v1897 = vpop.f32.mrf.mxu0
      %v1898 = vadd.f32 0.0, %v1897
      %v1899 = vpop.f32.mrf.mxu0
      %v1900 = vpop.f32.mrf.mxu0
      %v1901 = vadd.f32 0.0, %v1900
      %v1902 = vpop.f32.mrf.mxu0
      %1903 = vmatprep.mubr.bf16.mxu0 0
      %1904 = vmatmul.mubr.bf16.gmra.mxu0 %v1761
      %v1905 = vpop.f32.mrf.mxu0
      %v1906 = vadd.f32 0.0, %v1905
      %v1907 = vpop.f32.mrf.mxu0
      %v1908 = vpop.f32.mrf.mxu0
      %v1909 = vadd.f32 0.0, %v1908
      %v1910 = vpop.f32.mrf.mxu0
      %1911 = vmatprep.mubr.bf16.mxu0 0
      %1912 = vmatmul.mubr.bf16.gmra.mxu0 %v1764
      %v1913 = vpop.f32.mrf.mxu0
      %v1914 = vadd.f32 0.0, %v1913
      %v1915 = vpop.f32.mrf.mxu0
      %v1916 = vpop.f32.mrf.mxu0
      %v1917 = vadd.f32 0.0, %v1916
      %v1918 = vpop.f32.mrf.mxu0
      %1919 = vmatprep.mubr.bf16.mxu0 0
      %1920 = vmatmul.mubr.bf16.gmra.mxu0 %v1767
      %v1921 = vpop.f32.mrf.mxu0
      %v1922 = vadd.f32 0.0, %v1921
      %v1923 = vpop.f32.mrf.mxu0
      %v1924 = vpop.f32.mrf.mxu0
      %v1925 = vadd.f32 0.0, %v1924
      %v1926 = vpop.f32.mrf.mxu0
      %1927 = vmatprep.mubr.bf16.mxu0 0
      %1928 = vmatmul.mubr.bf16.gmra.mxu0 %v1770
      %v1929 = vpop.f32.mrf.mxu0
      %v1930 = vadd.f32 0.0, %v1929
      %v1931 = vpop.f32.mrf.mxu0
      %v1932 = vpop.f32.mrf.mxu0
      %v1933 = vadd.f32 0.0, %v1932
      %v1934 = vpop.f32.mrf.mxu0
      %1935 = vdwg.mxu0
      %v1936 = vadd.f32 %v1479, %v1810
      %v1937 = vadd.f32 %v1480, %v1813
      %v1938 = vadd.f32 %v1481, %v1818
      %v1939 = vadd.f32 %v1482, %v1821
      %v1940 = vadd.f32 %v1483, %v1826
      %v1941 = vadd.f32 %v1484, %v1829
      %v1942 = vadd.f32 %v1485, %v1834
      %v1943 = vadd.f32 %v1486, %v1837
      %v1944 = vadd.f32 %v1487, %v1842
      %v1945 = vadd.f32 %v1488, %v1845
      %v1946 = vadd.f32 %v1489, %v1850
      %v1947 = vadd.f32 %v1490, %v1853
      %v1948 = vadd.f32 %v1491, %v1858
      %v1949 = vadd.f32 %v1492, %v1861
      %v1950 = vadd.f32 %v1493, %v1866
      %v1951 = vadd.f32 %v1494, %v1869
      %v1952 = vadd.f32 %v1495, %v1874
      %v1953 = vadd.f32 %v1496, %v1877
      %v1954 = vadd.f32 %v1497, %v1882
      %v1955 = vadd.f32 %v1498, %v1885
      %v1956 = vadd.f32 %v1499, %v1890
      %v1957 = vadd.f32 %v1500, %v1893
      %v1958 = vadd.f32 %v1501, %v1898
      %v1959 = vadd.f32 %v1502, %v1901
      %v1960 = vadd.f32 %v1503, %v1906
      %v1961 = vadd.f32 %v1504, %v1909
      %v1962 = vadd.f32 %v1505, %v1914
      %v1963 = vadd.f32 %v1506, %v1917
      %v1964 = vadd.f32 %v1507, %v1922
      %v1965 = vadd.f32 %v1508, %v1925
      %v1966 = vadd.f32 %v1509, %v1930
      %v1967 = vadd.f32 %v1510, %v1933
      %1968 = vst [vmem:[#allocation2] sm:$0xff] %v1936
      %1969 = vst [vmem:[#allocation2 + $0x8] sm:$0xff] %v1937
      %1970 = vst [vmem:[#allocation2 + $0x10] sm:$0xff] %v1938
      %1971 = vst [vmem:[#allocation2 + $0x18] sm:$0xff] %v1939
      %1972 = vst [vmem:[#allocation2 + $0x20] sm:$0xff] %v1940
      %1973 = vst [vmem:[#allocation2 + $0x28] sm:$0xff] %v1941
      %1974 = vst [vmem:[#allocation2 + $0x30] sm:$0xff] %v1942
      %1975 = vst [vmem:[#allocation2 + $0x38] sm:$0xff] %v1943
      %1976 = vst [vmem:[#allocation2 + $0x40] sm:$0xff] %v1944
      %1977 = vst [vmem:[#allocation2 + $0x48] sm:$0xff] %v1945
      %1978 = vst [vmem:[#allocation2 + $0x50] sm:$0xff] %v1946
      %1979 = vst [vmem:[#allocation2 + $0x58] sm:$0xff] %v1947
      %1980 = vst [vmem:[#allocation2 + $0x60] sm:$0xff] %v1948
      %1981 = vst [vmem:[#allocation2 + $0x68] sm:$0xff] %v1949
      %1982 = vst [vmem:[#allocation2 + $0x70] sm:$0xff] %v1950
      %1983 = vst [vmem:[#allocation2 + $0x78] sm:$0xff] %v1951
      %1984 = vst [vmem:[#allocation2 + $0x80] sm:$0xff] %v1952
      %1985 = vst [vmem:[#allocation2 + $0x88] sm:$0xff] %v1953
      %1986 = vst [vmem:[#allocation2 + $0x90] sm:$0xff] %v1954
      %1987 = vst [vmem:[#allocation2 + $0x98] sm:$0xff] %v1955
      %1988 = vst [vmem:[#allocation2 + $0xa0] sm:$0xff] %v1956
      %1989 = vst [vmem:[#allocation2 + $0xa8] sm:$0xff] %v1957
      %1990 = vst [vmem:[#allocation2 + $0xb0] sm:$0xff] %v1958
      %1991 = vst [vmem:[#allocation2 + $0xb8] sm:$0xff] %v1959
      %1992 = vst [vmem:[#allocation2 + $0xc0] sm:$0xff] %v1960
      %1993 = vst [vmem:[#allocation2 + $0xc8] sm:$0xff] %v1961
      %1994 = vst [vmem:[#allocation2 + $0xd0] sm:$0xff] %v1962
      %1995 = vst [vmem:[#allocation2 + $0xd8] sm:$0xff] %v1963
      %1996 = vst [vmem:[#allocation2 + $0xe0] sm:$0xff] %v1964
      %1997 = vst [vmem:[#allocation2 + $0xe8] sm:$0xff] %v1965
      %1998 = vst [vmem:[#allocation2 + $0xf0] sm:$0xff] %v1966
      %1999 = vst [vmem:[#allocation2 + $0xf8] sm:$0xff] %v1967
      %s2000 = scalar_lea.vmem %s172, 12
      %v2001 = vld [vmem:[%s2000] sm:$0xf]
      %v2002 = vld [vmem:[%s2000 + $0x4] sm:$0xf]
      %v2003 = vld [vmem:[%s2000 + $0xc] sm:$0xf]
      %v2004 = vld [vmem:[%s2000 + $0x10] sm:$0xf]
      %v2005 = vld [vmem:[%s2000 + $0x18] sm:$0xf]
      %v2006 = vld [vmem:[%s2000 + $0x1c] sm:$0xf]
      %v2007 = vld [vmem:[%s2000 + $0x24] sm:$0xf]
      %v2008 = vld [vmem:[%s2000 + $0x28] sm:$0xf]
      %v2009 = vld [vmem:[%s2000 + $0x30] sm:$0xf]
      %v2010 = vld [vmem:[%s2000 + $0x34] sm:$0xf]
      %v2011 = vld [vmem:[%s2000 + $0x3c] sm:$0xf]
      %v2012 = vld [vmem:[%s2000 + $0x40] sm:$0xf]
      %v2013 = vld [vmem:[%s2000 + $0x48] sm:$0xf]
      %v2014 = vld [vmem:[%s2000 + $0x4c] sm:$0xf]
      %v2015 = vld [vmem:[%s2000 + $0x54] sm:$0xf]
      %v2016 = vld [vmem:[%s2000 + $0x58] sm:$0xf]
      %v2017 = vld [vmem:[%s2000 + $0x60] sm:$0xf]
      %v2018 = vld [vmem:[%s2000 + $0x64] sm:$0xf]
      %v2019 = vld [vmem:[%s2000 + $0x6c] sm:$0xf]
      %v2020 = vld [vmem:[%s2000 + $0x70] sm:$0xf]
      %v2021 = vld [vmem:[%s2000 + $0x78] sm:$0xf]
      %v2022 = vld [vmem:[%s2000 + $0x7c] sm:$0xf]
      %v2023 = vld [vmem:[%s2000 + $0x84] sm:$0xf]
      %v2024 = vld [vmem:[%s2000 + $0x88] sm:$0xf]
      %v2025 = vld [vmem:[%s2000 + $0x90] sm:$0xf]
      %v2026 = vld [vmem:[%s2000 + $0x94] sm:$0xf]
      %v2027 = vld [vmem:[%s2000 + $0x9c] sm:$0xf]
      %v2028 = vld [vmem:[%s2000 + $0xa0] sm:$0xf]
      %v2029 = vld [vmem:[%s2000 + $0xa8] sm:$0xf]
      %v2030 = vld [vmem:[%s2000 + $0xac] sm:$0xf]
      %v2031 = vld [vmem:[%s2000 + $0xb4] sm:$0xf]
      %v2032 = vld [vmem:[%s2000 + $0xb8] sm:$0xf]
      %v2033 = vld [vmem:[#allocation2] sm:$0xff]
      %v2034 = vld [vmem:[#allocation2 + $0x8] sm:$0xff]
      %v2035 = vld [vmem:[#allocation2 + $0x10] sm:$0xff]
      %v2036 = vld [vmem:[#allocation2 + $0x18] sm:$0xff]
      %v2037 = vld [vmem:[#allocation2 + $0x20] sm:$0xff]
      %v2038 = vld [vmem:[#allocation2 + $0x28] sm:$0xff]
      %v2039 = vld [vmem:[#allocation2 + $0x30] sm:$0xff]
      %v2040 = vld [vmem:[#allocation2 + $0x38] sm:$0xff]
      %v2041 = vld [vmem:[#allocation2 + $0x40] sm:$0xff]
      %v2042 = vld [vmem:[#allocation2 + $0x48] sm:$0xff]
      %v2043 = vld [vmem:[#allocation2 + $0x50] sm:$0xff]
      %v2044 = vld [vmem:[#allocation2 + $0x58] sm:$0xff]
      %v2045 = vld [vmem:[#allocation2 + $0x60] sm:$0xff]
      %v2046 = vld [vmem:[#allocation2 + $0x68] sm:$0xff]
      %v2047 = vld [vmem:[#allocation2 + $0x70] sm:$0xff]
      %v2048 = vld [vmem:[#allocation2 + $0x78] sm:$0xff]
      %v2049 = vld [vmem:[#allocation2 + $0x80] sm:$0xff]
      %v2050 = vld [vmem:[#allocation2 + $0x88] sm:$0xff]
      %v2051 = vld [vmem:[#allocation2 + $0x90] sm:$0xff]
      %v2052 = vld [vmem:[#allocation2 + $0x98] sm:$0xff]
      %v2053 = vld [vmem:[#allocation2 + $0xa0] sm:$0xff]
      %v2054 = vld [vmem:[#allocation2 + $0xa8] sm:$0xff]
      %v2055 = vld [vmem:[#allocation2 + $0xb0] sm:$0xff]
      %v2056 = vld [vmem:[#allocation2 + $0xb8] sm:$0xff]
      %v2057 = vld [vmem:[#allocation2 + $0xc0] sm:$0xff]
      %v2058 = vld [vmem:[#allocation2 + $0xc8] sm:$0xff]
      %v2059 = vld [vmem:[#allocation2 + $0xd0] sm:$0xff]
      %v2060 = vld [vmem:[#allocation2 + $0xd8] sm:$0xff]
      %v2061 = vld [vmem:[#allocation2 + $0xe0] sm:$0xff]
      %v2062 = vld [vmem:[#allocation2 + $0xe8] sm:$0xff]
      %v2063 = vld [vmem:[#allocation2 + $0xf0] sm:$0xff]
      %v2064 = vld [vmem:[#allocation2 + $0xf8] sm:$0xff]
      %s2065 = scalar_lea.vmem %s1, 6
      %v2066 = vld [vmem:[%s2065] sm:$0x3]
      %v2099 = vunpack.c.l.b16 %v2001
      %v2100 = vunpack.c.l.b16 %v2002
      %v2101 = vunpack.c.l.b16 %v2003
      %v2102 = vunpack.c.l.b16 %v2004
      %v2103 = vunpack.c.l.b16 %v2005
      %v2104 = vunpack.c.l.b16 %v2006
      %v2105 = vunpack.c.l.b16 %v2007
      %v2106 = vunpack.c.l.b16 %v2008
      %v2107 = vunpack.c.l.b16 %v2009
      %v2108 = vunpack.c.l.b16 %v2010
      %v2109 = vunpack.c.l.b16 %v2011
      %v2110 = vunpack.c.l.b16 %v2012
      %v2111 = vunpack.c.l.b16 %v2013
      %v2112 = vunpack.c.l.b16 %v2014
      %v2113 = vunpack.c.l.b16 %v2015
      %v2114 = vunpack.c.l.b16 %v2016
      %v2115 = vunpack.c.l.b16 %v2017
      %v2116 = vunpack.c.l.b16 %v2018
      %v2117 = vunpack.c.l.b16 %v2019
      %v2118 = vunpack.c.l.b16 %v2020
      %v2119 = vunpack.c.l.b16 %v2021
      %v2120 = vunpack.c.l.b16 %v2022
      %v2121 = vunpack.c.l.b16 %v2023
      %v2122 = vunpack.c.l.b16 %v2024
      %v2123 = vunpack.c.l.b16 %v2025
      %v2124 = vunpack.c.l.b16 %v2026
      %v2125 = vunpack.c.l.b16 %v2027
      %v2126 = vunpack.c.l.b16 %v2028
      %v2127 = vunpack.c.l.b16 %v2029
      %v2128 = vunpack.c.l.b16 %v2030
      %v2129 = vunpack.c.l.b16 %v2031
      %v2130 = vunpack.c.l.b16 %v2032
      %v2131 = vpack.c.b16 %v2100, %v2099
      %v2132 = vpack.c.b16 %v2102, %v2101
      %v2133 = vpack.c.b16 %v2104, %v2103
      %v2134 = vpack.c.b16 %v2106, %v2105
      %v2135 = vpack.c.b16 %v2108, %v2107
      %v2136 = vpack.c.b16 %v2110, %v2109
      %v2137 = vpack.c.b16 %v2112, %v2111
      %v2138 = vpack.c.b16 %v2114, %v2113
      %v2139 = vpack.c.b16 %v2116, %v2115
      %v2140 = vpack.c.b16 %v2118, %v2117
      %v2141 = vpack.c.b16 %v2120, %v2119
      %v2142 = vpack.c.b16 %v2122, %v2121
      %v2143 = vpack.c.b16 %v2124, %v2123
      %v2144 = vpack.c.b16 %v2126, %v2125
      %v2145 = vpack.c.b16 %v2128, %v2127
      %v2146 = vpack.c.b16 %v2130, %v2129
      %v2148 = vsel %vm360, %v2131, 0
      %v2151 = vsel %vm360, %v2132, 0
      %v2154 = vsel %vm360, %v2133, 0
      %v2157 = vsel %vm360, %v2134, 0
      %v2160 = vsel %vm360, %v2135, 0
      %v2163 = vsel %vm360, %v2136, 0
      %v2166 = vsel %vm360, %v2137, 0
      %v2169 = vsel %vm360, %v2138, 0
      %v2172 = vsel %vm360, %v2139, 0
      %v2175 = vsel %vm360, %v2140, 0
      %v2178 = vsel %vm360, %v2141, 0
      %v2181 = vsel %vm360, %v2142, 0
      %v2184 = vsel %vm360, %v2143, 0
      %v2187 = vsel %vm360, %v2144, 0
      %v2190 = vsel %vm360, %v2145, 0
      %v2193 = vsel %vm360, %v2146, 0
      %v2196 = vsel %vm409, %v2066, 0
      %2198 = vmatprep.subr.bf16.mxu0 0
      %2199 = vmatpush1.bf16.msra.mxu0 0
      %2200 = vmatprep.subr.bf16.mxu0 0
      %2201 = vmatpush1.bf16.msra.mxu0 0
      %2202 = vmatprep.subr.bf16.mxu0 0
      %2203 = vmatpush1.bf16.msra.mxu0 0
      %2204 = vmatprep.subr.bf16.mxu0 0
      %2205 = vmatpush1.bf16.msra.mxu0 0
      %2206 = vmatprep.subr.bf16.mxu0 0
      %2207 = vmatpush1.bf16.msra.mxu0 0
      %2208 = vmatprep.subr.bf16.mxu0 0
      %2209 = vmatpush1.bf16.msra.mxu0 0
      %2210 = vmatprep.subr.bf16.mxu0 0
      %2211 = vmatpush1.bf16.msra.mxu0 0
      %2212 = vmatprep.subr.bf16.mxu0 0
      %2213 = vmatpush1.bf16.msra.mxu0 %v2196
      %2214 = vmatprep.subr.bf16.mxu0 0
      %2215 = vmatpush2.bf16.msra.mxu0 0
      %2216 = vmatprep.subr.bf16.mxu0 0
      %2217 = vmatpush2.bf16.msra.mxu0 0
      %2218 = vmatprep.subr.bf16.mxu0 0
      %2219 = vmatpush2.bf16.msra.mxu0 0
      %2220 = vmatprep.subr.bf16.mxu0 0
      %2221 = vmatpush2.bf16.msra.mxu0 0
      %2222 = vmatprep.subr.bf16.mxu0 0
      %2223 = vmatpush2.bf16.msra.mxu0 0
      %2224 = vmatprep.subr.bf16.mxu0 0
      %2225 = vmatpush2.bf16.msra.mxu0 0
      %2226 = vmatprep.subr.bf16.mxu0 0
      %2227 = vmatpush2.bf16.msra.mxu0 0
      %2228 = vmatprep.subr.bf16.mxu0 0
      %2229 = vmatpush2.bf16.msra.mxu0 0
      %2230 = vmatprep.mubr.bf16.mxu0 0
      %2231 = vmatmul.mubr.bf16.gmra.mxu0 %v2148
      %v2232 = vpop.f32.mrf.mxu0
      %v2233 = vadd.f32 0.0, %v2232
      %v2234 = vpop.f32.mrf.mxu0
      %v2235 = vpop.f32.mrf.mxu0
      %v2236 = vadd.f32 0.0, %v2235
      %v2237 = vpop.f32.mrf.mxu0
      %2238 = vmatprep.mubr.bf16.mxu0 0
      %2239 = vmatmul.mubr.bf16.gmra.mxu0 %v2151
      %v2240 = vpop.f32.mrf.mxu0
      %v2241 = vadd.f32 0.0, %v2240
      %v2242 = vpop.f32.mrf.mxu0
      %v2243 = vpop.f32.mrf.mxu0
      %v2244 = vadd.f32 0.0, %v2243
      %v2245 = vpop.f32.mrf.mxu0
      %2246 = vmatprep.mubr.bf16.mxu0 0
      %2247 = vmatmul.mubr.bf16.gmra.mxu0 %v2154
      %v2248 = vpop.f32.mrf.mxu0
      %v2249 = vadd.f32 0.0, %v2248
      %v2250 = vpop.f32.mrf.mxu0
      %v2251 = vpop.f32.mrf.mxu0
      %v2252 = vadd.f32 0.0, %v2251
      %v2253 = vpop.f32.mrf.mxu0
      %2254 = vmatprep.mubr.bf16.mxu0 0
      %2255 = vmatmul.mubr.bf16.gmra.mxu0 %v2157
      %v2256 = vpop.f32.mrf.mxu0
      %v2257 = vadd.f32 0.0, %v2256
      %v2258 = vpop.f32.mrf.mxu0
      %v2259 = vpop.f32.mrf.mxu0
      %v2260 = vadd.f32 0.0, %v2259
      %v2261 = vpop.f32.mrf.mxu0
      %2262 = vmatprep.mubr.bf16.mxu0 0
      %2263 = vmatmul.mubr.bf16.gmra.mxu0 %v2160
      %v2264 = vpop.f32.mrf.mxu0
      %v2265 = vadd.f32 0.0, %v2264
      %v2266 = vpop.f32.mrf.mxu0
      %v2267 = vpop.f32.mrf.mxu0
      %v2268 = vadd.f32 0.0, %v2267
      %v2269 = vpop.f32.mrf.mxu0
      %2270 = vmatprep.mubr.bf16.mxu0 0
      %2271 = vmatmul.mubr.bf16.gmra.mxu0 %v2163
      %v2272 = vpop.f32.mrf.mxu0
      %v2273 = vadd.f32 0.0, %v2272
      %v2274 = vpop.f32.mrf.mxu0
      %v2275 = vpop.f32.mrf.mxu0
      %v2276 = vadd.f32 0.0, %v2275
      %v2277 = vpop.f32.mrf.mxu0
      %2278 = vmatprep.mubr.bf16.mxu0 0
      %2279 = vmatmul.mubr.bf16.gmra.mxu0 %v2166
      %v2280 = vpop.f32.mrf.mxu0
      %v2281 = vadd.f32 0.0, %v2280
      %v2282 = vpop.f32.mrf.mxu0
      %v2283 = vpop.f32.mrf.mxu0
      %v2284 = vadd.f32 0.0, %v2283
      %v2285 = vpop.f32.mrf.mxu0
      %2286 = vmatprep.mubr.bf16.mxu0 0
      %2287 = vmatmul.mubr.bf16.gmra.mxu0 %v2169
      %v2288 = vpop.f32.mrf.mxu0
      %v2289 = vadd.f32 0.0, %v2288
      %v2290 = vpop.f32.mrf.mxu0
      %v2291 = vpop.f32.mrf.mxu0
      %v2292 = vadd.f32 0.0, %v2291
      %v2293 = vpop.f32.mrf.mxu0
      %2294 = vmatprep.mubr.bf16.mxu0 0
      %2295 = vmatmul.mubr.bf16.gmra.mxu0 %v2172
      %v2296 = vpop.f32.mrf.mxu0
      %v2297 = vadd.f32 0.0, %v2296
      %v2298 = vpop.f32.mrf.mxu0
      %v2299 = vpop.f32.mrf.mxu0
      %v2300 = vadd.f32 0.0, %v2299
      %v2301 = vpop.f32.mrf.mxu0
      %2302 = vmatprep.mubr.bf16.mxu0 0
      %2303 = vmatmul.mubr.bf16.gmra.mxu0 %v2175
      %v2304 = vpop.f32.mrf.mxu0
      %v2305 = vadd.f32 0.0, %v2304
      %v2306 = vpop.f32.mrf.mxu0
      %v2307 = vpop.f32.mrf.mxu0
      %v2308 = vadd.f32 0.0, %v2307
      %v2309 = vpop.f32.mrf.mxu0
      %2310 = vmatprep.mubr.bf16.mxu0 0
      %2311 = vmatmul.mubr.bf16.gmra.mxu0 %v2178
      %v2312 = vpop.f32.mrf.mxu0
      %v2313 = vadd.f32 0.0, %v2312
      %v2314 = vpop.f32.mrf.mxu0
      %v2315 = vpop.f32.mrf.mxu0
      %v2316 = vadd.f32 0.0, %v2315
      %v2317 = vpop.f32.mrf.mxu0
      %2318 = vmatprep.mubr.bf16.mxu0 0
      %2319 = vmatmul.mubr.bf16.gmra.mxu0 %v2181
      %v2320 = vpop.f32.mrf.mxu0
      %v2321 = vadd.f32 0.0, %v2320
      %v2322 = vpop.f32.mrf.mxu0
      %v2323 = vpop.f32.mrf.mxu0
      %v2324 = vadd.f32 0.0, %v2323
      %v2325 = vpop.f32.mrf.mxu0
      %2326 = vmatprep.mubr.bf16.mxu0 0
      %2327 = vmatmul.mubr.bf16.gmra.mxu0 %v2184
      %v2328 = vpop.f32.mrf.mxu0
      %v2329 = vadd.f32 0.0, %v2328
      %v2330 = vpop.f32.mrf.mxu0
      %v2331 = vpop.f32.mrf.mxu0
      %v2332 = vadd.f32 0.0, %v2331
      %v2333 = vpop.f32.mrf.mxu0
      %2334 = vmatprep.mubr.bf16.mxu0 0
      %2335 = vmatmul.mubr.bf16.gmra.mxu0 %v2187
      %v2336 = vpop.f32.mrf.mxu0
      %v2337 = vadd.f32 0.0, %v2336
      %v2338 = vpop.f32.mrf.mxu0
      %v2339 = vpop.f32.mrf.mxu0
      %v2340 = vadd.f32 0.0, %v2339
      %v2341 = vpop.f32.mrf.mxu0
      %2342 = vmatprep.mubr.bf16.mxu0 0
      %2343 = vmatmul.mubr.bf16.gmra.mxu0 %v2190
      %v2344 = vpop.f32.mrf.mxu0
      %v2345 = vadd.f32 0.0, %v2344
      %v2346 = vpop.f32.mrf.mxu0
      %v2347 = vpop.f32.mrf.mxu0
      %v2348 = vadd.f32 0.0, %v2347
      %v2349 = vpop.f32.mrf.mxu0
      %2350 = vmatprep.mubr.bf16.mxu0 0
      %2351 = vmatmul.mubr.bf16.gmra.mxu0 %v2193
      %v2352 = vpop.f32.mrf.mxu0
      %v2353 = vadd.f32 0.0, %v2352
      %v2354 = vpop.f32.mrf.mxu0
      %v2355 = vpop.f32.mrf.mxu0
      %v2356 = vadd.f32 0.0, %v2355
      %v2357 = vpop.f32.mrf.mxu0
      %2358 = vdwg.mxu0
      %v2359 = vadd.f32 %v2033, %v2233
      %v2360 = vadd.f32 %v2034, %v2236
      %v2361 = vadd.f32 %v2035, %v2241
      %v2362 = vadd.f32 %v2036, %v2244
      %v2363 = vadd.f32 %v2037, %v2249
      %v2364 = vadd.f32 %v2038, %v2252
      %v2365 = vadd.f32 %v2039, %v2257
      %v2366 = vadd.f32 %v2040, %v2260
      %v2367 = vadd.f32 %v2041, %v2265
      %v2368 = vadd.f32 %v2042, %v2268
      %v2369 = vadd.f32 %v2043, %v2273
      %v2370 = vadd.f32 %v2044, %v2276
      %v2371 = vadd.f32 %v2045, %v2281
      %v2372 = vadd.f32 %v2046, %v2284
      %v2373 = vadd.f32 %v2047, %v2289
      %v2374 = vadd.f32 %v2048, %v2292
      %v2375 = vadd.f32 %v2049, %v2297
      %v2376 = vadd.f32 %v2050, %v2300
      %v2377 = vadd.f32 %v2051, %v2305
      %v2378 = vadd.f32 %v2052, %v2308
      %v2379 = vadd.f32 %v2053, %v2313
      %v2380 = vadd.f32 %v2054, %v2316
      %v2381 = vadd.f32 %v2055, %v2321
      %v2382 = vadd.f32 %v2056, %v2324
      %v2383 = vadd.f32 %v2057, %v2329
      %v2384 = vadd.f32 %v2058, %v2332
      %v2385 = vadd.f32 %v2059, %v2337
      %v2386 = vadd.f32 %v2060, %v2340
      %v2387 = vadd.f32 %v2061, %v2345
      %v2388 = vadd.f32 %v2062, %v2348
      %v2389 = vadd.f32 %v2063, %v2353
      %v2390 = vadd.f32 %v2064, %v2356
      %2391 = vst [vmem:[#allocation2] sm:$0xff] %v2359
      %2392 = vst [vmem:[#allocation2 + $0x8] sm:$0xff] %v2360
      %2393 = vst [vmem:[#allocation2 + $0x10] sm:$0xff] %v2361
      %2394 = vst [vmem:[#allocation2 + $0x18] sm:$0xff] %v2362
      %2395 = vst [vmem:[#allocation2 + $0x20] sm:$0xff] %v2363
      %2396 = vst [vmem:[#allocation2 + $0x28] sm:$0xff] %v2364
      %2397 = vst [vmem:[#allocation2 + $0x30] sm:$0xff] %v2365
      %2398 = vst [vmem:[#allocation2 + $0x38] sm:$0xff] %v2366
      %2399 = vst [vmem:[#allocation2 + $0x40] sm:$0xff] %v2367
      %2400 = vst [vmem:[#allocation2 + $0x48] sm:$0xff] %v2368
      %2401 = vst [vmem:[#allocation2 + $0x50] sm:$0xff] %v2369
      %2402 = vst [vmem:[#allocation2 + $0x58] sm:$0xff] %v2370
      %2403 = vst [vmem:[#allocation2 + $0x60] sm:$0xff] %v2371
      %2404 = vst [vmem:[#allocation2 + $0x68] sm:$0xff] %v2372
      %2405 = vst [vmem:[#allocation2 + $0x70] sm:$0xff] %v2373
      %2406 = vst [vmem:[#allocation2 + $0x78] sm:$0xff] %v2374
      %2407 = vst [vmem:[#allocation2 + $0x80] sm:$0xff] %v2375
      %2408 = vst [vmem:[#allocation2 + $0x88] sm:$0xff] %v2376
      %2409 = vst [vmem:[#allocation2 + $0x90] sm:$0xff] %v2377
      %2410 = vst [vmem:[#allocation2 + $0x98] sm:$0xff] %v2378
      %2411 = vst [vmem:[#allocation2 + $0xa0] sm:$0xff] %v2379
      %2412 = vst [vmem:[#allocation2 + $0xa8] sm:$0xff] %v2380
      %2413 = vst [vmem:[#allocation2 + $0xb0] sm:$0xff] %v2381
      %2414 = vst [vmem:[#allocation2 + $0xb8] sm:$0xff] %v2382
      %2415 = vst [vmem:[#allocation2 + $0xc0] sm:$0xff] %v2383
      %2416 = vst [vmem:[#allocation2 + $0xc8] sm:$0xff] %v2384
      %2417 = vst [vmem:[#allocation2 + $0xd0] sm:$0xff] %v2385
      %2418 = vst [vmem:[#allocation2 + $0xd8] sm:$0xff] %v2386
      %2419 = vst [vmem:[#allocation2 + $0xe0] sm:$0xff] %v2387
      %2420 = vst [vmem:[#allocation2 + $0xe8] sm:$0xff] %v2388
      %2421 = vst [vmem:[#allocation2 + $0xf0] sm:$0xff] %v2389
      %2422 = vst [vmem:[#allocation2 + $0xf8] sm:$0xff] %v2390
      %v2423 = vld [vmem:[%s2000] sm:$0xf]
      %v2424 = vld [vmem:[%s2000 + $0x4] sm:$0xf]
      %v2425 = vld [vmem:[%s2000 + $0x8] sm:$0x1]
      %v2426 = vld [vmem:[%s2000 + $0xc] sm:$0xf]
      %v2427 = vld [vmem:[%s2000 + $0x10] sm:$0xf]
      %v2428 = vld [vmem:[%s2000 + $0x14] sm:$0x1]
      %v2429 = vld [vmem:[%s2000 + $0x18] sm:$0xf]
      %v2430 = vld [vmem:[%s2000 + $0x1c] sm:$0xf]
      %v2431 = vld [vmem:[%s2000 + $0x20] sm:$0x1]
      %v2432 = vld [vmem:[%s2000 + $0x24] sm:$0xf]
      %v2433 = vld [vmem:[%s2000 + $0x28] sm:$0xf]
      %v2434 = vld [vmem:[%s2000 + $0x2c] sm:$0x1]
      %v2435 = vld [vmem:[%s2000 + $0x30] sm:$0xf]
      %v2436 = vld [vmem:[%s2000 + $0x34] sm:$0xf]
      %v2437 = vld [vmem:[%s2000 + $0x38] sm:$0x1]
      %v2438 = vld [vmem:[%s2000 + $0x3c] sm:$0xf]
      %v2439 = vld [vmem:[%s2000 + $0x40] sm:$0xf]
      %v2440 = vld [vmem:[%s2000 + $0x44] sm:$0x1]
      %v2441 = vld [vmem:[%s2000 + $0x48] sm:$0xf]
      %v2442 = vld [vmem:[%s2000 + $0x4c] sm:$0xf]
      %v2443 = vld [vmem:[%s2000 + $0x50] sm:$0x1]
      %v2444 = vld [vmem:[%s2000 + $0x54] sm:$0xf]
      %v2445 = vld [vmem:[%s2000 + $0x58] sm:$0xf]
      %v2446 = vld [vmem:[%s2000 + $0x5c] sm:$0x1]
      %v2447 = vld [vmem:[%s2000 + $0x60] sm:$0xf]
      %v2448 = vld [vmem:[%s2000 + $0x64] sm:$0xf]
      %v2449 = vld [vmem:[%s2000 + $0x68] sm:$0x1]
      %v2450 = vld [vmem:[%s2000 + $0x6c] sm:$0xf]
      %v2451 = vld [vmem:[%s2000 + $0x70] sm:$0xf]
      %v2452 = vld [vmem:[%s2000 + $0x74] sm:$0x1]
      %v2453 = vld [vmem:[%s2000 + $0x78] sm:$0xf]
      %v2454 = vld [vmem:[%s2000 + $0x7c] sm:$0xf]
      %v2455 = vld [vmem:[%s2000 + $0x80] sm:$0x1]
      %v2456 = vld [vmem:[%s2000 + $0x84] sm:$0xf]
      %v2457 = vld [vmem:[%s2000 + $0x88] sm:$0xf]
      %v2458 = vld [vmem:[%s2000 + $0x8c] sm:$0x1]
      %v2459 = vld [vmem:[%s2000 + $0x90] sm:$0xf]
      %v2460 = vld [vmem:[%s2000 + $0x94] sm:$0xf]
      %v2461 = vld [vmem:[%s2000 + $0x98] sm:$0x1]
      %v2462 = vld [vmem:[%s2000 + $0x9c] sm:$0xf]
      %v2463 = vld [vmem:[%s2000 + $0xa0] sm:$0xf]
      %v2464 = vld [vmem:[%s2000 + $0xa4] sm:$0x1]
      %v2465 = vld [vmem:[%s2000 + $0xa8] sm:$0xf]
      %v2466 = vld [vmem:[%s2000 + $0xac] sm:$0xf]
      %v2467 = vld [vmem:[%s2000 + $0xb0] sm:$0x1]
      %v2468 = vld [vmem:[%s2000 + $0xb4] sm:$0xf]
      %v2469 = vld [vmem:[%s2000 + $0xb8] sm:$0xf]
      %v2470 = vld [vmem:[%s2000 + $0xbc] sm:$0x1]
      %v2471 = vld [vmem:[#allocation2] sm:$0xff]
      %v2472 = vld [vmem:[#allocation2 + $0x8] sm:$0xff]
      %v2473 = vld [vmem:[#allocation2 + $0x10] sm:$0xff]
      %v2474 = vld [vmem:[#allocation2 + $0x18] sm:$0xff]
      %v2475 = vld [vmem:[#allocation2 + $0x20] sm:$0xff]
      %v2476 = vld [vmem:[#allocation2 + $0x28] sm:$0xff]
      %v2477 = vld [vmem:[#allocation2 + $0x30] sm:$0xff]
      %v2478 = vld [vmem:[#allocation2 + $0x38] sm:$0xff]
      %v2479 = vld [vmem:[#allocation2 + $0x40] sm:$0xff]
      %v2480 = vld [vmem:[#allocation2 + $0x48] sm:$0xff]
      %v2481 = vld [vmem:[#allocation2 + $0x50] sm:$0xff]
      %v2482 = vld [vmem:[#allocation2 + $0x58] sm:$0xff]
      %v2483 = vld [vmem:[#allocation2 + $0x60] sm:$0xff]
      %v2484 = vld [vmem:[#allocation2 + $0x68] sm:$0xff]
      %v2485 = vld [vmem:[#allocation2 + $0x70] sm:$0xff]
      %v2486 = vld [vmem:[#allocation2 + $0x78] sm:$0xff]
      %v2487 = vld [vmem:[#allocation2 + $0x80] sm:$0xff]
      %v2488 = vld [vmem:[#allocation2 + $0x88] sm:$0xff]
      %v2489 = vld [vmem:[#allocation2 + $0x90] sm:$0xff]
      %v2490 = vld [vmem:[#allocation2 + $0x98] sm:$0xff]
      %v2491 = vld [vmem:[#allocation2 + $0xa0] sm:$0xff]
      %v2492 = vld [vmem:[#allocation2 + $0xa8] sm:$0xff]
      %v2493 = vld [vmem:[#allocation2 + $0xb0] sm:$0xff]
      %v2494 = vld [vmem:[#allocation2 + $0xb8] sm:$0xff]
      %v2495 = vld [vmem:[#allocation2 + $0xc0] sm:$0xff]
      %v2496 = vld [vmem:[#allocation2 + $0xc8] sm:$0xff]
      %v2497 = vld [vmem:[#allocation2 + $0xd0] sm:$0xff]
      %v2498 = vld [vmem:[#allocation2 + $0xd8] sm:$0xff]
      %v2499 = vld [vmem:[#allocation2 + $0xe0] sm:$0xff]
      %v2500 = vld [vmem:[#allocation2 + $0xe8] sm:$0xff]
      %v2501 = vld [vmem:[#allocation2 + $0xf0] sm:$0xff]
      %v2502 = vld [vmem:[#allocation2 + $0xf8] sm:$0xff]
      %v2504 = vshrl.u32 %v2423, 16
      %v2506 = vrot.slane %v2504, 4
      %v2507 = vshll.u32 %v2423, 16
      %v2509 = vrot.slane %v2507, 5
      %v2510 = vor.u32 %v2506, %v2509
      %v2511 = vrot.slane %v2510, 4
      %v2513 = vshll.u32 %v2424, 16
      %v2515 = vrot.slane %v2513, 5
      %v2516 = vsel %vm720, %v2511, %v2515
      %v2517 = vshrl.u32 %v2424, 16
      %v2519 = vrot.slane %v2517, 4
      %v2520 = vor.u32 %v2519, %v2515
      %v2521 = vrot.slane %v2520, 4
      %v2523 = vshll.u32 %v2425, 16
      %v2525 = vrot.slane %v2523, 5
      %v2526 = vsel %vm720, %v2521, %v2525
      %v2528 = vshrl.u32 %v2426, 16
      %v2530 = vrot.slane %v2528, 4
      %v2531 = vshll.u32 %v2426, 16
      %v2533 = vrot.slane %v2531, 5
      %v2534 = vor.u32 %v2530, %v2533
      %v2535 = vrot.slane %v2534, 4
      %v2537 = vshll.u32 %v2427, 16
      %v2539 = vrot.slane %v2537, 5
      %v2540 = vsel %vm720, %v2535, %v2539
      %v2541 = vshrl.u32 %v2427, 16
      %v2543 = vrot.slane %v2541, 4
      %v2544 = vor.u32 %v2543, %v2539
      %v2545 = vrot.slane %v2544, 4
      %v2547 = vshll.u32 %v2428, 16
      %v2549 = vrot.slane %v2547, 5
      %v2550 = vsel %vm720, %v2545, %v2549
      %v2552 = vshrl.u32 %v2429, 16
      %v2554 = vrot.slane %v2552, 4
      %v2555 = vshll.u32 %v2429, 16
      %v2557 = vrot.slane %v2555, 5
      %v2558 = vor.u32 %v2554, %v2557
      %v2559 = vrot.slane %v2558, 4
      %v2561 = vshll.u32 %v2430, 16
      %v2563 = vrot.slane %v2561, 5
      %v2564 = vsel %vm720, %v2559, %v2563
      %v2565 = vshrl.u32 %v2430, 16
      %v2567 = vrot.slane %v2565, 4
      %v2568 = vor.u32 %v2567, %v2563
      %v2569 = vrot.slane %v2568, 4
      %v2571 = vshll.u32 %v2431, 16
      %v2573 = vrot.slane %v2571, 5
      %v2574 = vsel %vm720, %v2569, %v2573
      %v2576 = vshrl.u32 %v2432, 16
      %v2578 = vrot.slane %v2576, 4
      %v2579 = vshll.u32 %v2432, 16
      %v2581 = vrot.slane %v2579, 5
      %v2582 = vor.u32 %v2578, %v2581
      %v2583 = vrot.slane %v2582, 4
      %v2585 = vshll.u32 %v2433, 16
      %v2587 = vrot.slane %v2585, 5
      %v2588 = vsel %vm720, %v2583, %v2587
      %v2589 = vshrl.u32 %v2433, 16
      %v2591 = vrot.slane %v2589, 4
      %v2592 = vor.u32 %v2591, %v2587
      %v2593 = vrot.slane %v2592, 4
      %v2595 = vshll.u32 %v2434, 16
      %v2597 = vrot.slane %v2595, 5
      %v2598 = vsel %vm720, %v2593, %v2597
      %v2600 = vshrl.u32 %v2435, 16
      %v2602 = vrot.slane %v2600, 4
      %v2603 = vshll.u32 %v2435, 16
      %v2605 = vrot.slane %v2603, 5
      %v2606 = vor.u32 %v2602, %v2605
      %v2607 = vrot.slane %v2606, 4
      %v2609 = vshll.u32 %v2436, 16
      %v2611 = vrot.slane %v2609, 5
      %v2612 = vsel %vm720, %v2607, %v2611
      %v2613 = vshrl.u32 %v2436, 16
      %v2615 = vrot.slane %v2613, 4
      %v2616 = vor.u32 %v2615, %v2611
      %v2617 = vrot.slane %v2616, 4
      %v2619 = vshll.u32 %v2437, 16
      %v2621 = vrot.slane %v2619, 5
      %v2622 = vsel %vm720, %v2617, %v2621
      %v2624 = vshrl.u32 %v2438, 16
      %v2626 = vrot.slane %v2624, 4
      %v2627 = vshll.u32 %v2438, 16
      %v2629 = vrot.slane %v2627, 5
      %v2630 = vor.u32 %v2626, %v2629
      %v2631 = vrot.slane %v2630, 4
      %v2633 = vshll.u32 %v2439, 16
      %v2635 = vrot.slane %v2633, 5
      %v2636 = vsel %vm720, %v2631, %v2635
      %v2637 = vshrl.u32 %v2439, 16
      %v2639 = vrot.slane %v2637, 4
      %v2640 = vor.u32 %v2639, %v2635
      %v2641 = vrot.slane %v2640, 4
      %v2643 = vshll.u32 %v2440, 16
      %v2645 = vrot.slane %v2643, 5
      %v2646 = vsel %vm720, %v2641, %v2645
      %v2648 = vshrl.u32 %v2441, 16
      %v2650 = vrot.slane %v2648, 4
      %v2651 = vshll.u32 %v2441, 16
      %v2653 = vrot.slane %v2651, 5
      %v2654 = vor.u32 %v2650, %v2653
      %v2655 = vrot.slane %v2654, 4
      %v2657 = vshll.u32 %v2442, 16
      %v2659 = vrot.slane %v2657, 5
      %v2660 = vsel %vm720, %v2655, %v2659
      %v2661 = vshrl.u32 %v2442, 16
      %v2663 = vrot.slane %v2661, 4
      %v2664 = vor.u32 %v2663, %v2659
      %v2665 = vrot.slane %v2664, 4
      %v2667 = vshll.u32 %v2443, 16
      %v2669 = vrot.slane %v2667, 5
      %v2670 = vsel %vm720, %v2665, %v2669
      %v2672 = vshrl.u32 %v2444, 16
      %v2674 = vrot.slane %v2672, 4
      %v2675 = vshll.u32 %v2444, 16
      %v2677 = vrot.slane %v2675, 5
      %v2678 = vor.u32 %v2674, %v2677
      %v2679 = vrot.slane %v2678, 4
      %v2681 = vshll.u32 %v2445, 16
      %v2683 = vrot.slane %v2681, 5
      %v2684 = vsel %vm720, %v2679, %v2683
      %v2685 = vshrl.u32 %v2445, 16
      %v2687 = vrot.slane %v2685, 4
      %v2688 = vor.u32 %v2687, %v2683
      %v2689 = vrot.slane %v2688, 4
      %v2691 = vshll.u32 %v2446, 16
      %v2693 = vrot.slane %v2691, 5
      %v2694 = vsel %vm720, %v2689, %v2693
      %v2696 = vshrl.u32 %v2447, 16
      %v2698 = vrot.slane %v2696, 4
      %v2699 = vshll.u32 %v2447, 16
      %v2701 = vrot.slane %v2699, 5
      %v2702 = vor.u32 %v2698, %v2701
      %v2703 = vrot.slane %v2702, 4
      %v2705 = vshll.u32 %v2448, 16
      %v2707 = vrot.slane %v2705, 5
      %v2708 = vsel %vm720, %v2703, %v2707
      %v2709 = vshrl.u32 %v2448, 16
      %v2711 = vrot.slane %v2709, 4
      %v2712 = vor.u32 %v2711, %v2707
      %v2713 = vrot.slane %v2712, 4
      %v2715 = vshll.u32 %v2449, 16
      %v2717 = vrot.slane %v2715, 5
      %v2718 = vsel %vm720, %v2713, %v2717
      %v2720 = vshrl.u32 %v2450, 16
      %v2722 = vrot.slane %v2720, 4
      %v2723 = vshll.u32 %v2450, 16
      %v2725 = vrot.slane %v2723, 5
      %v2726 = vor.u32 %v2722, %v2725
      %v2727 = vrot.slane %v2726, 4
      %v2729 = vshll.u32 %v2451, 16
      %v2731 = vrot.slane %v2729, 5
      %v2732 = vsel %vm720, %v2727, %v2731
      %v2733 = vshrl.u32 %v2451, 16
      %v2735 = vrot.slane %v2733, 4
      %v2736 = vor.u32 %v2735, %v2731
      %v2737 = vrot.slane %v2736, 4
      %v2739 = vshll.u32 %v2452, 16
      %v2741 = vrot.slane %v2739, 5
      %v2742 = vsel %vm720, %v2737, %v2741
      %v2744 = vshrl.u32 %v2453, 16
      %v2746 = vrot.slane %v2744, 4
      %v2747 = vshll.u32 %v2453, 16
      %v2749 = vrot.slane %v2747, 5
      %v2750 = vor.u32 %v2746, %v2749
      %v2751 = vrot.slane %v2750, 4
      %v2753 = vshll.u32 %v2454, 16
      %v2755 = vrot.slane %v2753, 5
      %v2756 = vsel %vm720, %v2751, %v2755
      %v2757 = vshrl.u32 %v2454, 16
      %v2759 = vrot.slane %v2757, 4
      %v2760 = vor.u32 %v2759, %v2755
      %v2761 = vrot.slane %v2760, 4
      %v2763 = vshll.u32 %v2455, 16
      %v2765 = vrot.slane %v2763, 5
      %v2766 = vsel %vm720, %v2761, %v2765
      %v2768 = vshrl.u32 %v2456, 16
      %v2770 = vrot.slane %v2768, 4
      %v2771 = vshll.u32 %v2456, 16
      %v2773 = vrot.slane %v2771, 5
      %v2774 = vor.u32 %v2770, %v2773
      %v2775 = vrot.slane %v2774, 4
      %v2777 = vshll.u32 %v2457, 16
      %v2779 = vrot.slane %v2777, 5
      %v2780 = vsel %vm720, %v2775, %v2779
      %v2781 = vshrl.u32 %v2457, 16
      %v2783 = vrot.slane %v2781, 4
      %v2784 = vor.u32 %v2783, %v2779
      %v2785 = vrot.slane %v2784, 4
      %v2787 = vshll.u32 %v2458, 16
      %v2789 = vrot.slane %v2787, 5
      %v2790 = vsel %vm720, %v2785, %v2789
      %v2792 = vshrl.u32 %v2459, 16
      %v2794 = vrot.slane %v2792, 4
      %v2795 = vshll.u32 %v2459, 16
      %v2797 = vrot.slane %v2795, 5
      %v2798 = vor.u32 %v2794, %v2797
      %v2799 = vrot.slane %v2798, 4
      %v2801 = vshll.u32 %v2460, 16
      %v2803 = vrot.slane %v2801, 5
      %v2804 = vsel %vm720, %v2799, %v2803
      %v2805 = vshrl.u32 %v2460, 16
      %v2807 = vrot.slane %v2805, 4
      %v2808 = vor.u32 %v2807, %v2803
      %v2809 = vrot.slane %v2808, 4
      %v2811 = vshll.u32 %v2461, 16
      %v2813 = vrot.slane %v2811, 5
      %v2814 = vsel %vm720, %v2809, %v2813
      %v2816 = vshrl.u32 %v2462, 16
      %v2818 = vrot.slane %v2816, 4
      %v2819 = vshll.u32 %v2462, 16
      %v2821 = vrot.slane %v2819, 5
      %v2822 = vor.u32 %v2818, %v2821
      %v2823 = vrot.slane %v2822, 4
      %v2825 = vshll.u32 %v2463, 16
      %v2827 = vrot.slane %v2825, 5
      %v2828 = vsel %vm720, %v2823, %v2827
      %v2829 = vshrl.u32 %v2463, 16
      %v2831 = vrot.slane %v2829, 4
      %v2832 = vor.u32 %v2831, %v2827
      %v2833 = vrot.slane %v2832, 4
      %v2835 = vshll.u32 %v2464, 16
      %v2837 = vrot.slane %v2835, 5
      %v2838 = vsel %vm720, %v2833, %v2837
      %v2840 = vshrl.u32 %v2465, 16
      %v2842 = vrot.slane %v2840, 4
      %v2843 = vshll.u32 %v2465, 16
      %v2845 = vrot.slane %v2843, 5
      %v2846 = vor.u32 %v2842, %v2845
      %v2847 = vrot.slane %v2846, 4
      %v2849 = vshll.u32 %v2466, 16
      %v2851 = vrot.slane %v2849, 5
      %v2852 = vsel %vm720, %v2847, %v2851
      %v2853 = vshrl.u32 %v2466, 16
      %v2855 = vrot.slane %v2853, 4
      %v2856 = vor.u32 %v2855, %v2851
      %v2857 = vrot.slane %v2856, 4
      %v2859 = vshll.u32 %v2467, 16
      %v2861 = vrot.slane %v2859, 5
      %v2862 = vsel %vm720, %v2857, %v2861
      %v2864 = vshrl.u32 %v2468, 16
      %v2866 = vrot.slane %v2864, 4
      %v2867 = vshll.u32 %v2468, 16
      %v2869 = vrot.slane %v2867, 5
      %v2870 = vor.u32 %v2866, %v2869
      %v2871 = vrot.slane %v2870, 4
      %v2873 = vshll.u32 %v2469, 16
      %v2875 = vrot.slane %v2873, 5
      %v2876 = vsel %vm720, %v2871, %v2875
      %v2877 = vshrl.u32 %v2469, 16
      %v2879 = vrot.slane %v2877, 4
      %v2880 = vor.u32 %v2879, %v2875
      %v2881 = vrot.slane %v2880, 4
      %v2883 = vshll.u32 %v2470, 16
      %v2885 = vrot.slane %v2883, 5
      %v2886 = vsel %vm720, %v2881, %v2885
      %s2887 = scalar_lea.vmem %s1, 8
      %v2888 = vld [vmem:[%s2887] sm:$0x3]
      %v2889 = vunpack.c.l.b16 %v2516
      %v2890 = vunpack.c.l.b16 %v2526
      %v2891 = vunpack.c.l.b16 %v2540
      %v2892 = vunpack.c.l.b16 %v2550
      %v2893 = vunpack.c.l.b16 %v2564
      %v2894 = vunpack.c.l.b16 %v2574
      %v2895 = vunpack.c.l.b16 %v2588
      %v2896 = vunpack.c.l.b16 %v2598
      %v2897 = vunpack.c.l.b16 %v2612
      %v2898 = vunpack.c.l.b16 %v2622
      %v2899 = vunpack.c.l.b16 %v2636
      %v2900 = vunpack.c.l.b16 %v2646
      %v2901 = vunpack.c.l.b16 %v2660
      %v2902 = vunpack.c.l.b16 %v2670
      %v2903 = vunpack.c.l.b16 %v2684
      %v2904 = vunpack.c.l.b16 %v2694
      %v2905 = vunpack.c.l.b16 %v2708
      %v2906 = vunpack.c.l.b16 %v2718
      %v2907 = vunpack.c.l.b16 %v2732
      %v2908 = vunpack.c.l.b16 %v2742
      %v2909 = vunpack.c.l.b16 %v2756
      %v2910 = vunpack.c.l.b16 %v2766
      %v2911 = vunpack.c.l.b16 %v2780
      %v2912 = vunpack.c.l.b16 %v2790
      %v2913 = vunpack.c.l.b16 %v2804
      %v2914 = vunpack.c.l.b16 %v2814
      %v2915 = vunpack.c.l.b16 %v2828
      %v2916 = vunpack.c.l.b16 %v2838
      %v2917 = vunpack.c.l.b16 %v2852
      %v2918 = vunpack.c.l.b16 %v2862
      %v2919 = vunpack.c.l.b16 %v2876
      %v2920 = vunpack.c.l.b16 %v2886
      %v2921 = vpack.c.b16 %v2890, %v2889
      %v2922 = vpack.c.b16 %v2892, %v2891
      %v2923 = vpack.c.b16 %v2894, %v2893
      %v2924 = vpack.c.b16 %v2896, %v2895
      %v2925 = vpack.c.b16 %v2898, %v2897
      %v2926 = vpack.c.b16 %v2900, %v2899
      %v2927 = vpack.c.b16 %v2902, %v2901
      %v2928 = vpack.c.b16 %v2904, %v2903
      %v2929 = vpack.c.b16 %v2906, %v2905
      %v2930 = vpack.c.b16 %v2908, %v2907
      %v2931 = vpack.c.b16 %v2910, %v2909
      %v2932 = vpack.c.b16 %v2912, %v2911
      %v2933 = vpack.c.b16 %v2914, %v2913
      %v2934 = vpack.c.b16 %v2916, %v2915
      %v2935 = vpack.c.b16 %v2918, %v2917
      %v2936 = vpack.c.b16 %v2920, %v2919
      %v2938 = vsel %vm360, %v2921, 0
      %v2941 = vsel %vm360, %v2922, 0
      %v2944 = vsel %vm360, %v2923, 0
      %v2947 = vsel %vm360, %v2924, 0
      %v2950 = vsel %vm360, %v2925, 0
      %v2953 = vsel %vm360, %v2926, 0
      %v2956 = vsel %vm360, %v2927, 0
      %v2959 = vsel %vm360, %v2928, 0
      %v2962 = vsel %vm360, %v2929, 0
      %v2965 = vsel %vm360, %v2930, 0
      %v2968 = vsel %vm360, %v2931, 0
      %v2971 = vsel %vm360, %v2932, 0
      %v2974 = vsel %vm360, %v2933, 0
      %v2977 = vsel %vm360, %v2934, 0
      %v2980 = vsel %vm360, %v2935, 0
      %v2983 = vsel %vm360, %v2936, 0
      %v2986 = vsel %vm409, %v2888, 0
      %2988 = vmatprep.subr.bf16.mxu0 0
      %2989 = vmatpush1.bf16.msra.mxu0 0
      %2990 = vmatprep.subr.bf16.mxu0 0
      %2991 = vmatpush1.bf16.msra.mxu0 0
      %2992 = vmatprep.subr.bf16.mxu0 0
      %2993 = vmatpush1.bf16.msra.mxu0 0
      %2994 = vmatprep.subr.bf16.mxu0 0
      %2995 = vmatpush1.bf16.msra.mxu0 0
      %2996 = vmatprep.subr.bf16.mxu0 0
      %2997 = vmatpush1.bf16.msra.mxu0 0
      %2998 = vmatprep.subr.bf16.mxu0 0
      %2999 = vmatpush1.bf16.msra.mxu0 0
      %3000 = vmatprep.subr.bf16.mxu0 0
      %3001 = vmatpush1.bf16.msra.mxu0 0
      %3002 = vmatprep.subr.bf16.mxu0 0
      %3003 = vmatpush1.bf16.msra.mxu0 %v2986
      %3004 = vmatprep.subr.bf16.mxu0 0
      %3005 = vmatpush2.bf16.msra.mxu0 0
      %3006 = vmatprep.subr.bf16.mxu0 0
      %3007 = vmatpush2.bf16.msra.mxu0 0
      %3008 = vmatprep.subr.bf16.mxu0 0
      %3009 = vmatpush2.bf16.msra.mxu0 0
      %3010 = vmatprep.subr.bf16.mxu0 0
      %3011 = vmatpush2.bf16.msra.mxu0 0
      %3012 = vmatprep.subr.bf16.mxu0 0
      %3013 = vmatpush2.bf16.msra.mxu0 0
      %3014 = vmatprep.subr.bf16.mxu0 0
      %3015 = vmatpush2.bf16.msra.mxu0 0
      %3016 = vmatprep.subr.bf16.mxu0 0
      %3017 = vmatpush2.bf16.msra.mxu0 0
      %3018 = vmatprep.subr.bf16.mxu0 0
      %3019 = vmatpush2.bf16.msra.mxu0 0
      %3020 = vmatprep.mubr.bf16.mxu0 0
      %3021 = vmatmul.mubr.bf16.gmra.mxu0 %v2938
      %v3022 = vpop.f32.mrf.mxu0
      %v3023 = vadd.f32 0.0, %v3022
      %v3024 = vpop.f32.mrf.mxu0
      %v3025 = vpop.f32.mrf.mxu0
      %v3026 = vadd.f32 0.0, %v3025
      %v3027 = vpop.f32.mrf.mxu0
      %3028 = vmatprep.mubr.bf16.mxu0 0
      %3029 = vmatmul.mubr.bf16.gmra.mxu0 %v2941
      %v3030 = vpop.f32.mrf.mxu0
      %v3031 = vadd.f32 0.0, %v3030
      %v3032 = vpop.f32.mrf.mxu0
      %v3033 = vpop.f32.mrf.mxu0
      %v3034 = vadd.f32 0.0, %v3033
      %v3035 = vpop.f32.mrf.mxu0
      %3036 = vmatprep.mubr.bf16.mxu0 0
      %3037 = vmatmul.mubr.bf16.gmra.mxu0 %v2944
      %v3038 = vpop.f32.mrf.mxu0
      %v3039 = vadd.f32 0.0, %v3038
      %v3040 = vpop.f32.mrf.mxu0
      %v3041 = vpop.f32.mrf.mxu0
      %v3042 = vadd.f32 0.0, %v3041
      %v3043 = vpop.f32.mrf.mxu0
      %3044 = vmatprep.mubr.bf16.mxu0 0
      %3045 = vmatmul.mubr.bf16.gmra.mxu0 %v2947
      %v3046 = vpop.f32.mrf.mxu0
      %v3047 = vadd.f32 0.0, %v3046
      %v3048 = vpop.f32.mrf.mxu0
      %v3049 = vpop.f32.mrf.mxu0
      %v3050 = vadd.f32 0.0, %v3049
      %v3051 = vpop.f32.mrf.mxu0
      %3052 = vmatprep.mubr.bf16.mxu0 0
      %3053 = vmatmul.mubr.bf16.gmra.mxu0 %v2950
      %v3054 = vpop.f32.mrf.mxu0
      %v3055 = vadd.f32 0.0, %v3054
      %v3056 = vpop.f32.mrf.mxu0
      %v3057 = vpop.f32.mrf.mxu0
      %v3058 = vadd.f32 0.0, %v3057
      %v3059 = vpop.f32.mrf.mxu0
      %3060 = vmatprep.mubr.bf16.mxu0 0
      %3061 = vmatmul.mubr.bf16.gmra.mxu0 %v2953
      %v3062 = vpop.f32.mrf.mxu0
      %v3063 = vadd.f32 0.0, %v3062
      %v3064 = vpop.f32.mrf.mxu0
      %v3065 = vpop.f32.mrf.mxu0
      %v3066 = vadd.f32 0.0, %v3065
      %v3067 = vpop.f32.mrf.mxu0
      %3068 = vmatprep.mubr.bf16.mxu0 0
      %3069 = vmatmul.mubr.bf16.gmra.mxu0 %v2956
      %v3070 = vpop.f32.mrf.mxu0
      %v3071 = vadd.f32 0.0, %v3070
      %v3072 = vpop.f32.mrf.mxu0
      %v3073 = vpop.f32.mrf.mxu0
      %v3074 = vadd.f32 0.0, %v3073
      %v3075 = vpop.f32.mrf.mxu0
      %3076 = vmatprep.mubr.bf16.mxu0 0
      %3077 = vmatmul.mubr.bf16.gmra.mxu0 %v2959
      %v3078 = vpop.f32.mrf.mxu0
      %v3079 = vadd.f32 0.0, %v3078
      %v3080 = vpop.f32.mrf.mxu0
      %v3081 = vpop.f32.mrf.mxu0
      %v3082 = vadd.f32 0.0, %v3081
      %v3083 = vpop.f32.mrf.mxu0
      %3084 = vmatprep.mubr.bf16.mxu0 0
      %3085 = vmatmul.mubr.bf16.gmra.mxu0 %v2962
      %v3086 = vpop.f32.mrf.mxu0
      %v3087 = vadd.f32 0.0, %v3086
      %v3088 = vpop.f32.mrf.mxu0
      %v3089 = vpop.f32.mrf.mxu0
      %v3090 = vadd.f32 0.0, %v3089
      %v3091 = vpop.f32.mrf.mxu0
      %3092 = vmatprep.mubr.bf16.mxu0 0
      %3093 = vmatmul.mubr.bf16.gmra.mxu0 %v2965
      %v3094 = vpop.f32.mrf.mxu0
      %v3095 = vadd.f32 0.0, %v3094
      %v3096 = vpop.f32.mrf.mxu0
      %v3097 = vpop.f32.mrf.mxu0
      %v3098 = vadd.f32 0.0, %v3097
      %v3099 = vpop.f32.mrf.mxu0
      %3100 = vmatprep.mubr.bf16.mxu0 0
      %3101 = vmatmul.mubr.bf16.gmra.mxu0 %v2968
      %v3102 = vpop.f32.mrf.mxu0
      %v3103 = vadd.f32 0.0, %v3102
      %v3104 = vpop.f32.mrf.mxu0
      %v3105 = vpop.f32.mrf.mxu0
      %v3106 = vadd.f32 0.0, %v3105
      %v3107 = vpop.f32.mrf.mxu0
      %3108 = vmatprep.mubr.bf16.mxu0 0
      %3109 = vmatmul.mubr.bf16.gmra.mxu0 %v2971
      %v3110 = vpop.f32.mrf.mxu0
      %v3111 = vadd.f32 0.0, %v3110
      %v3112 = vpop.f32.mrf.mxu0
      %v3113 = vpop.f32.mrf.mxu0
      %v3114 = vadd.f32 0.0, %v3113
      %v3115 = vpop.f32.mrf.mxu0
      %3116 = vmatprep.mubr.bf16.mxu0 0
      %3117 = vmatmul.mubr.bf16.gmra.mxu0 %v2974
      %v3118 = vpop.f32.mrf.mxu0
      %v3119 = vadd.f32 0.0, %v3118
      %v3120 = vpop.f32.mrf.mxu0
      %v3121 = vpop.f32.mrf.mxu0
      %v3122 = vadd.f32 0.0, %v3121
      %v3123 = vpop.f32.mrf.mxu0
      %3124 = vmatprep.mubr.bf16.mxu0 0
      %3125 = vmatmul.mubr.bf16.gmra.mxu0 %v2977
      %v3126 = vpop.f32.mrf.mxu0
      %v3127 = vadd.f32 0.0, %v3126
      %v3128 = vpop.f32.mrf.mxu0
      %v3129 = vpop.f32.mrf.mxu0
      %v3130 = vadd.f32 0.0, %v3129
      %v3131 = vpop.f32.mrf.mxu0
      %3132 = vmatprep.mubr.bf16.mxu0 0
      %3133 = vmatmul.mubr.bf16.gmra.mxu0 %v2980
      %v3134 = vpop.f32.mrf.mxu0
      %v3135 = vadd.f32 0.0, %v3134
      %v3136 = vpop.f32.mrf.mxu0
      %v3137 = vpop.f32.mrf.mxu0
      %v3138 = vadd.f32 0.0, %v3137
      %v3139 = vpop.f32.mrf.mxu0
      %3140 = vmatprep.mubr.bf16.mxu0 0
      %3141 = vmatmul.mubr.bf16.gmra.mxu0 %v2983
      %v3142 = vpop.f32.mrf.mxu0
      %v3143 = vadd.f32 0.0, %v3142
      %v3144 = vpop.f32.mrf.mxu0
      %v3145 = vpop.f32.mrf.mxu0
      %v3146 = vadd.f32 0.0, %v3145
      %v3147 = vpop.f32.mrf.mxu0
      %3148 = vdwg.mxu0
      %v3149 = vadd.f32 %v2471, %v3023
      %v3150 = vadd.f32 %v2472, %v3026
      %v3151 = vadd.f32 %v2473, %v3031
      %v3152 = vadd.f32 %v2474, %v3034
      %v3153 = vadd.f32 %v2475, %v3039
      %v3154 = vadd.f32 %v2476, %v3042
      %v3155 = vadd.f32 %v2477, %v3047
      %v3156 = vadd.f32 %v2478, %v3050
      %v3157 = vadd.f32 %v2479, %v3055
      %v3158 = vadd.f32 %v2480, %v3058
      %v3159 = vadd.f32 %v2481, %v3063
      %v3160 = vadd.f32 %v2482, %v3066
      %v3161 = vadd.f32 %v2483, %v3071
      %v3162 = vadd.f32 %v2484, %v3074
      %v3163 = vadd.f32 %v2485, %v3079
      %v3164 = vadd.f32 %v2486, %v3082
      %v3165 = vadd.f32 %v2487, %v3087
      %v3166 = vadd.f32 %v2488, %v3090
      %v3167 = vadd.f32 %v2489, %v3095
      %v3168 = vadd.f32 %v2490, %v3098
      %v3169 = vadd.f32 %v2491, %v3103
      %v3170 = vadd.f32 %v2492, %v3106
      %v3171 = vadd.f32 %v2493, %v3111
      %v3172 = vadd.f32 %v2494, %v3114
      %v3173 = vadd.f32 %v2495, %v3119
      %v3174 = vadd.f32 %v2496, %v3122
      %v3175 = vadd.f32 %v2497, %v3127
      %v3176 = vadd.f32 %v2498, %v3130
      %v3177 = vadd.f32 %v2499, %v3135
      %v3178 = vadd.f32 %v2500, %v3138
      %v3179 = vadd.f32 %v2501, %v3143
      %v3180 = vadd.f32 %v2502, %v3146
      %3181 = vst [vmem:[#allocation2] sm:$0xff] %v3149
      %3182 = vst [vmem:[#allocation2 + $0x8] sm:$0xff] %v3150
      %3183 = vst [vmem:[#allocation2 + $0x10] sm:$0xff] %v3151
      %3184 = vst [vmem:[#allocation2 + $0x18] sm:$0xff] %v3152
      %3185 = vst [vmem:[#allocation2 + $0x20] sm:$0xff] %v3153
      %3186 = vst [vmem:[#allocation2 + $0x28] sm:$0xff] %v3154
      %3187 = vst [vmem:[#allocation2 + $0x30] sm:$0xff] %v3155
      %3188 = vst [vmem:[#allocation2 + $0x38] sm:$0xff] %v3156
      %3189 = vst [vmem:[#allocation2 + $0x40] sm:$0xff] %v3157
      %3190 = vst [vmem:[#allocation2 + $0x48] sm:$0xff] %v3158
      %3191 = vst [vmem:[#allocation2 + $0x50] sm:$0xff] %v3159
      %3192 = vst [vmem:[#allocation2 + $0x58] sm:$0xff] %v3160
      %3193 = vst [vmem:[#allocation2 + $0x60] sm:$0xff] %v3161
      %3194 = vst [vmem:[#allocation2 + $0x68] sm:$0xff] %v3162
      %3195 = vst [vmem:[#allocation2 + $0x70] sm:$0xff] %v3163
      %3196 = vst [vmem:[#allocation2 + $0x78] sm:$0xff] %v3164
      %3197 = vst [vmem:[#allocation2 + $0x80] sm:$0xff] %v3165
      %3198 = vst [vmem:[#allocation2 + $0x88] sm:$0xff] %v3166
      %3199 = vst [vmem:[#allocation2 + $0x90] sm:$0xff] %v3167
      %3200 = vst [vmem:[#allocation2 + $0x98] sm:$0xff] %v3168
      %3201 = vst [vmem:[#allocation2 + $0xa0] sm:$0xff] %v3169
      %3202 = vst [vmem:[#allocation2 + $0xa8] sm:$0xff] %v3170
      %3203 = vst [vmem:[#allocation2 + $0xb0] sm:$0xff] %v3171
      %3204 = vst [vmem:[#allocation2 + $0xb8] sm:$0xff] %v3172
      %3205 = vst [vmem:[#allocation2 + $0xc0] sm:$0xff] %v3173
      %3206 = vst [vmem:[#allocation2 + $0xc8] sm:$0xff] %v3174
      %3207 = vst [vmem:[#allocation2 + $0xd0] sm:$0xff] %v3175
      %3208 = vst [vmem:[#allocation2 + $0xd8] sm:$0xff] %v3176
      %3209 = vst [vmem:[#allocation2 + $0xe0] sm:$0xff] %v3177
      %3210 = vst [vmem:[#allocation2 + $0xe8] sm:$0xff] %v3178
      %3211 = vst [vmem:[#allocation2 + $0xf0] sm:$0xff] %v3179
      %3212 = vst [vmem:[#allocation2 + $0xf8] sm:$0xff] %v3180
      %v3213 = vld [vmem:[%s2000] sm:$0xe]
      %v3214 = vld [vmem:[%s2000 + $0x4] sm:$0xf]
      %v3215 = vld [vmem:[%s2000 + $0x8] sm:$0x1]
      %v3216 = vld [vmem:[%s2000 + $0xc] sm:$0xe]
      %v3217 = vld [vmem:[%s2000 + $0x10] sm:$0xf]
      %v3218 = vld [vmem:[%s2000 + $0x14] sm:$0x1]
      %v3219 = vld [vmem:[%s2000 + $0x18] sm:$0xe]
      %v3220 = vld [vmem:[%s2000 + $0x1c] sm:$0xf]
      %v3221 = vld [vmem:[%s2000 + $0x20] sm:$0x1]
      %v3222 = vld [vmem:[%s2000 + $0x24] sm:$0xe]
      %v3223 = vld [vmem:[%s2000 + $0x28] sm:$0xf]
      %v3224 = vld [vmem:[%s2000 + $0x2c] sm:$0x1]
      %v3225 = vld [vmem:[%s2000 + $0x30] sm:$0xe]
      %v3226 = vld [vmem:[%s2000 + $0x34] sm:$0xf]
      %v3227 = vld [vmem:[%s2000 + $0x38] sm:$0x1]
      %v3228 = vld [vmem:[%s2000 + $0x3c] sm:$0xe]
      %v3229 = vld [vmem:[%s2000 + $0x40] sm:$0xf]
      %v3230 = vld [vmem:[%s2000 + $0x44] sm:$0x1]
      %v3231 = vld [vmem:[%s2000 + $0x48] sm:$0xe]
      %v3232 = vld [vmem:[%s2000 + $0x4c] sm:$0xf]
      %v3233 = vld [vmem:[%s2000 + $0x50] sm:$0x1]
      %v3234 = vld [vmem:[%s2000 + $0x54] sm:$0xe]
      %v3235 = vld [vmem:[%s2000 + $0x58] sm:$0xf]
      %v3236 = vld [vmem:[%s2000 + $0x5c] sm:$0x1]
      %v3237 = vld [vmem:[%s2000 + $0x60] sm:$0xe]
      %v3238 = vld [vmem:[%s2000 + $0x64] sm:$0xf]
      %v3239 = vld [vmem:[%s2000 + $0x68] sm:$0x1]
      %v3240 = vld [vmem:[%s2000 + $0x6c] sm:$0xe]
      %v3241 = vld [vmem:[%s2000 + $0x70] sm:$0xf]
      %v3242 = vld [vmem:[%s2000 + $0x74] sm:$0x1]
      %v3243 = vld [vmem:[%s2000 + $0x78] sm:$0xe]
      %v3244 = vld [vmem:[%s2000 + $0x7c] sm:$0xf]
      %v3245 = vld [vmem:[%s2000 + $0x80] sm:$0x1]
      %v3246 = vld [vmem:[%s2000 + $0x84] sm:$0xe]
      %v3247 = vld [vmem:[%s2000 + $0x88] sm:$0xf]
      %v3248 = vld [vmem:[%s2000 + $0x8c] sm:$0x1]
      %v3249 = vld [vmem:[%s2000 + $0x90] sm:$0xe]
      %v3250 = vld [vmem:[%s2000 + $0x94] sm:$0xf]
      %v3251 = vld [vmem:[%s2000 + $0x98] sm:$0x1]
      %v3252 = vld [vmem:[%s2000 + $0x9c] sm:$0xe]
      %v3253 = vld [vmem:[%s2000 + $0xa0] sm:$0xf]
      %v3254 = vld [vmem:[%s2000 + $0xa4] sm:$0x1]
      %v3255 = vld [vmem:[%s2000 + $0xa8] sm:$0xe]
      %v3256 = vld [vmem:[%s2000 + $0xac] sm:$0xf]
      %v3257 = vld [vmem:[%s2000 + $0xb0] sm:$0x1]
      %v3258 = vld [vmem:[%s2000 + $0xb4] sm:$0xe]
      %v3259 = vld [vmem:[%s2000 + $0xb8] sm:$0xf]
      %v3260 = vld [vmem:[%s2000 + $0xbc] sm:$0x1]
      %v3261 = vld [vmem:[#allocation2] sm:$0xff]
      %v3262 = vld [vmem:[#allocation2 + $0x8] sm:$0xff]
      %v3263 = vld [vmem:[#allocation2 + $0x10] sm:$0xff]
      %v3264 = vld [vmem:[#allocation2 + $0x18] sm:$0xff]
      %v3265 = vld [vmem:[#allocation2 + $0x20] sm:$0xff]
      %v3266 = vld [vmem:[#allocation2 + $0x28] sm:$0xff]
      %v3267 = vld [vmem:[#allocation2 + $0x30] sm:$0xff]
      %v3268 = vld [vmem:[#allocation2 + $0x38] sm:$0xff]
      %v3269 = vld [vmem:[#allocation2 + $0x40] sm:$0xff]
      %v3270 = vld [vmem:[#allocation2 + $0x48] sm:$0xff]
      %v3271 = vld [vmem:[#allocation2 + $0x50] sm:$0xff]
      %v3272 = vld [vmem:[#allocation2 + $0x58] sm:$0xff]
      %v3273 = vld [vmem:[#allocation2 + $0x60] sm:$0xff]
      %v3274 = vld [vmem:[#allocation2 + $0x68] sm:$0xff]
      %v3275 = vld [vmem:[#allocation2 + $0x70] sm:$0xff]
      %v3276 = vld [vmem:[#allocation2 + $0x78] sm:$0xff]
      %v3277 = vld [vmem:[#allocation2 + $0x80] sm:$0xff]
      %v3278 = vld [vmem:[#allocation2 + $0x88] sm:$0xff]
      %v3279 = vld [vmem:[#allocation2 + $0x90] sm:$0xff]
      %v3280 = vld [vmem:[#allocation2 + $0x98] sm:$0xff]
      %v3281 = vld [vmem:[#allocation2 + $0xa0] sm:$0xff]
      %v3282 = vld [vmem:[#allocation2 + $0xa8] sm:$0xff]
      %v3283 = vld [vmem:[#allocation2 + $0xb0] sm:$0xff]
      %v3284 = vld [vmem:[#allocation2 + $0xb8] sm:$0xff]
      %v3285 = vld [vmem:[#allocation2 + $0xc0] sm:$0xff]
      %v3286 = vld [vmem:[#allocation2 + $0xc8] sm:$0xff]
      %v3287 = vld [vmem:[#allocation2 + $0xd0] sm:$0xff]
      %v3288 = vld [vmem:[#allocation2 + $0xd8] sm:$0xff]
      %v3289 = vld [vmem:[#allocation2 + $0xe0] sm:$0xff]
      %v3290 = vld [vmem:[#allocation2 + $0xe8] sm:$0xff]
      %v3291 = vld [vmem:[#allocation2 + $0xf0] sm:$0xff]
      %v3292 = vld [vmem:[#allocation2 + $0xf8] sm:$0xff]
      %v3341 = vrot.slane %v3213, 5
      %v3342 = vrot.slane %v3341, 4
      %v3343 = vrot.slane %v3214, 5
      %v3344 = vsel %vm1561, %v3342, %v3343
      %v3345 = vrot.slane %v3343, 4
      %v3346 = vrot.slane %v3215, 5
      %v3347 = vsel %vm1561, %v3345, %v3346
      %v3348 = vrot.slane %v3216, 5
      %v3349 = vrot.slane %v3348, 4
      %v3350 = vrot.slane %v3217, 5
      %v3351 = vsel %vm1561, %v3349, %v3350
      %v3352 = vrot.slane %v3350, 4
      %v3353 = vrot.slane %v3218, 5
      %v3354 = vsel %vm1561, %v3352, %v3353
      %v3355 = vrot.slane %v3219, 5
      %v3356 = vrot.slane %v3355, 4
      %v3357 = vrot.slane %v3220, 5
      %v3358 = vsel %vm1561, %v3356, %v3357
      %v3359 = vrot.slane %v3357, 4
      %v3360 = vrot.slane %v3221, 5
      %v3361 = vsel %vm1561, %v3359, %v3360
      %v3362 = vrot.slane %v3222, 5
      %v3363 = vrot.slane %v3362, 4
      %v3364 = vrot.slane %v3223, 5
      %v3365 = vsel %vm1561, %v3363, %v3364
      %v3366 = vrot.slane %v3364, 4
      %v3367 = vrot.slane %v3224, 5
      %v3368 = vsel %vm1561, %v3366, %v3367
      %v3369 = vrot.slane %v3225, 5
      %v3370 = vrot.slane %v3369, 4
      %v3371 = vrot.slane %v3226, 5
      %v3372 = vsel %vm1561, %v3370, %v3371
      %v3373 = vrot.slane %v3371, 4
      %v3374 = vrot.slane %v3227, 5
      %v3375 = vsel %vm1561, %v3373, %v3374
      %v3376 = vrot.slane %v3228, 5
      %v3377 = vrot.slane %v3376, 4
      %v3378 = vrot.slane %v3229, 5
      %v3379 = vsel %vm1561, %v3377, %v3378
      %v3380 = vrot.slane %v3378, 4
      %v3381 = vrot.slane %v3230, 5
      %v3382 = vsel %vm1561, %v3380, %v3381
      %v3383 = vrot.slane %v3231, 5
      %v3384 = vrot.slane %v3383, 4
      %v3385 = vrot.slane %v3232, 5
      %v3386 = vsel %vm1561, %v3384, %v3385
      %v3387 = vrot.slane %v3385, 4
      %v3388 = vrot.slane %v3233, 5
      %v3389 = vsel %vm1561, %v3387, %v3388
      %v3390 = vrot.slane %v3234, 5
      %v3391 = vrot.slane %v3390, 4
      %v3392 = vrot.slane %v3235, 5
      %v3393 = vsel %vm1561, %v3391, %v3392
      %v3394 = vrot.slane %v3392, 4
      %v3395 = vrot.slane %v3236, 5
      %v3396 = vsel %vm1561, %v3394, %v3395
      %v3397 = vrot.slane %v3237, 5
      %v3398 = vrot.slane %v3397, 4
      %v3399 = vrot.slane %v3238, 5
      %v3400 = vsel %vm1561, %v3398, %v3399
      %v3401 = vrot.slane %v3399, 4
      %v3402 = vrot.slane %v3239, 5
      %v3403 = vsel %vm1561, %v3401, %v3402
      %v3404 = vrot.slane %v3240, 5
      %v3405 = vrot.slane %v3404, 4
      %v3406 = vrot.slane %v3241, 5
      %v3407 = vsel %vm1561, %v3405, %v3406
      %v3408 = vrot.slane %v3406, 4
      %v3409 = vrot.slane %v3242, 5
      %v3410 = vsel %vm1561, %v3408, %v3409
      %v3411 = vrot.slane %v3243, 5
      %v3412 = vrot.slane %v3411, 4
      %v3413 = vrot.slane %v3244, 5
      %v3414 = vsel %vm1561, %v3412, %v3413
      %v3415 = vrot.slane %v3413, 4
      %v3416 = vrot.slane %v3245, 5
      %v3417 = vsel %vm1561, %v3415, %v3416
      %v3418 = vrot.slane %v3246, 5
      %v3419 = vrot.slane %v3418, 4
      %v3420 = vrot.slane %v3247, 5
      %v3421 = vsel %vm1561, %v3419, %v3420
      %v3422 = vrot.slane %v3420, 4
      %v3423 = vrot.slane %v3248, 5
      %v3424 = vsel %vm1561, %v3422, %v3423
      %v3425 = vrot.slane %v3249, 5
      %v3426 = vrot.slane %v3425, 4
      %v3427 = vrot.slane %v3250, 5
      %v3428 = vsel %vm1561, %v3426, %v3427
      %v3429 = vrot.slane %v3427, 4
      %v3430 = vrot.slane %v3251, 5
      %v3431 = vsel %vm1561, %v3429, %v3430
      %v3432 = vrot.slane %v3252, 5
      %v3433 = vrot.slane %v3432, 4
      %v3434 = vrot.slane %v3253, 5
      %v3435 = vsel %vm1561, %v3433, %v3434
      %v3436 = vrot.slane %v3434, 4
      %v3437 = vrot.slane %v3254, 5
      %v3438 = vsel %vm1561, %v3436, %v3437
      %v3439 = vrot.slane %v3255, 5
      %v3440 = vrot.slane %v3439, 4
      %v3441 = vrot.slane %v3256, 5
      %v3442 = vsel %vm1561, %v3440, %v3441
      %v3443 = vrot.slane %v3441, 4
      %v3444 = vrot.slane %v3257, 5
      %v3445 = vsel %vm1561, %v3443, %v3444
      %v3446 = vrot.slane %v3258, 5
      %v3447 = vrot.slane %v3446, 4
      %v3448 = vrot.slane %v3259, 5
      %v3449 = vsel %vm1561, %v3447, %v3448
      %v3450 = vrot.slane %v3448, 4
      %v3451 = vrot.slane %v3260, 5
      %v3452 = vsel %vm1561, %v3450, %v3451
      %s3453 = scalar_lea.vmem %s1, 10
      %v3454 = vld [vmem:[%s3453] sm:$0x3]
      %v3455 = vunpack.c.l.b16 %v3344
      %v3456 = vunpack.c.l.b16 %v3347
      %v3457 = vunpack.c.l.b16 %v3351
      %v3458 = vunpack.c.l.b16 %v3354
      %v3459 = vunpack.c.l.b16 %v3358
      %v3460 = vunpack.c.l.b16 %v3361
      %v3461 = vunpack.c.l.b16 %v3365
      %v3462 = vunpack.c.l.b16 %v3368
      %v3463 = vunpack.c.l.b16 %v3372
      %v3464 = vunpack.c.l.b16 %v3375
      %v3465 = vunpack.c.l.b16 %v3379
      %v3466 = vunpack.c.l.b16 %v3382
      %v3467 = vunpack.c.l.b16 %v3386
      %v3468 = vunpack.c.l.b16 %v3389
      %v3469 = vunpack.c.l.b16 %v3393
      %v3470 = vunpack.c.l.b16 %v3396
      %v3471 = vunpack.c.l.b16 %v3400
      %v3472 = vunpack.c.l.b16 %v3403
      %v3473 = vunpack.c.l.b16 %v3407
      %v3474 = vunpack.c.l.b16 %v3410
      %v3475 = vunpack.c.l.b16 %v3414
      %v3476 = vunpack.c.l.b16 %v3417
      %v3477 = vunpack.c.l.b16 %v3421
      %v3478 = vunpack.c.l.b16 %v3424
      %v3479 = vunpack.c.l.b16 %v3428
      %v3480 = vunpack.c.l.b16 %v3431
      %v3481 = vunpack.c.l.b16 %v3435
      %v3482 = vunpack.c.l.b16 %v3438
      %v3483 = vunpack.c.l.b16 %v3442
      %v3484 = vunpack.c.l.b16 %v3445
      %v3485 = vunpack.c.l.b16 %v3449
      %v3486 = vunpack.c.l.b16 %v3452
      %v3487 = vpack.c.b16 %v3456, %v3455
      %v3488 = vpack.c.b16 %v3458, %v3457
      %v3489 = vpack.c.b16 %v3460, %v3459
      %v3490 = vpack.c.b16 %v3462, %v3461
      %v3491 = vpack.c.b16 %v3464, %v3463
      %v3492 = vpack.c.b16 %v3466, %v3465
      %v3493 = vpack.c.b16 %v3468, %v3467
      %v3494 = vpack.c.b16 %v3470, %v3469
      %v3495 = vpack.c.b16 %v3472, %v3471
      %v3496 = vpack.c.b16 %v3474, %v3473
      %v3497 = vpack.c.b16 %v3476, %v3475
      %v3498 = vpack.c.b16 %v3478, %v3477
      %v3499 = vpack.c.b16 %v3480, %v3479
      %v3500 = vpack.c.b16 %v3482, %v3481
      %v3501 = vpack.c.b16 %v3484, %v3483
      %v3502 = vpack.c.b16 %v3486, %v3485
      %v3504 = vsel %vm360, %v3487, 0
      %v3507 = vsel %vm360, %v3488, 0
      %v3510 = vsel %vm360, %v3489, 0
      %v3513 = vsel %vm360, %v3490, 0
      %v3516 = vsel %vm360, %v3491, 0
      %v3519 = vsel %vm360, %v3492, 0
      %v3522 = vsel %vm360, %v3493, 0
      %v3525 = vsel %vm360, %v3494, 0
      %v3528 = vsel %vm360, %v3495, 0
      %v3531 = vsel %vm360, %v3496, 0
      %v3534 = vsel %vm360, %v3497, 0
      %v3537 = vsel %vm360, %v3498, 0
      %v3540 = vsel %vm360, %v3499, 0
      %v3543 = vsel %vm360, %v3500, 0
      %v3546 = vsel %vm360, %v3501, 0
      %v3549 = vsel %vm360, %v3502, 0
      %v3552 = vsel %vm409, %v3454, 0
      %3554 = vmatprep.subr.bf16.mxu0 0
      %3555 = vmatpush1.bf16.msra.mxu0 0
      %3556 = vmatprep.subr.bf16.mxu0 0
      %3557 = vmatpush1.bf16.msra.mxu0 0
      %3558 = vmatprep.subr.bf16.mxu0 0
      %3559 = vmatpush1.bf16.msra.mxu0 0
      %3560 = vmatprep.subr.bf16.mxu0 0
      %3561 = vmatpush1.bf16.msra.mxu0 0
      %3562 = vmatprep.subr.bf16.mxu0 0
      %3563 = vmatpush1.bf16.msra.mxu0 0
      %3564 = vmatprep.subr.bf16.mxu0 0
      %3565 = vmatpush1.bf16.msra.mxu0 0
      %3566 = vmatprep.subr.bf16.mxu0 0
      %3567 = vmatpush1.bf16.msra.mxu0 0
      %3568 = vmatprep.subr.bf16.mxu0 0
      %3569 = vmatpush1.bf16.msra.mxu0 %v3552
      %3570 = vmatprep.subr.bf16.mxu0 0
      %3571 = vmatpush2.bf16.msra.mxu0 0
      %3572 = vmatprep.subr.bf16.mxu0 0
      %3573 = vmatpush2.bf16.msra.mxu0 0
      %3574 = vmatprep.subr.bf16.mxu0 0
      %3575 = vmatpush2.bf16.msra.mxu0 0
      %3576 = vmatprep.subr.bf16.mxu0 0
      %3577 = vmatpush2.bf16.msra.mxu0 0
      %3578 = vmatprep.subr.bf16.mxu0 0
      %3579 = vmatpush2.bf16.msra.mxu0 0
      %3580 = vmatprep.subr.bf16.mxu0 0
      %3581 = vmatpush2.bf16.msra.mxu0 0
      %3582 = vmatprep.subr.bf16.mxu0 0
      %3583 = vmatpush2.bf16.msra.mxu0 0
      %3584 = vmatprep.subr.bf16.mxu0 0
      %3585 = vmatpush2.bf16.msra.mxu0 0
      %3586 = vmatprep.mubr.bf16.mxu0 0
      %3587 = vmatmul.mubr.bf16.gmra.mxu0 %v3504
      %v3588 = vpop.f32.mrf.mxu0
      %v3589 = vadd.f32 0.0, %v3588
      %v3590 = vpop.f32.mrf.mxu0
      %v3591 = vpop.f32.mrf.mxu0
      %v3592 = vadd.f32 0.0, %v3591
      %v3593 = vpop.f32.mrf.mxu0
      %3594 = vmatprep.mubr.bf16.mxu0 0
      %3595 = vmatmul.mubr.bf16.gmra.mxu0 %v3507
      %v3596 = vpop.f32.mrf.mxu0
      %v3597 = vadd.f32 0.0, %v3596
      %v3598 = vpop.f32.mrf.mxu0
      %v3599 = vpop.f32.mrf.mxu0
      %v3600 = vadd.f32 0.0, %v3599
      %v3601 = vpop.f32.mrf.mxu0
      %3602 = vmatprep.mubr.bf16.mxu0 0
      %3603 = vmatmul.mubr.bf16.gmra.mxu0 %v3510
      %v3604 = vpop.f32.mrf.mxu0
      %v3605 = vadd.f32 0.0, %v3604
      %v3606 = vpop.f32.mrf.mxu0
      %v3607 = vpop.f32.mrf.mxu0
      %v3608 = vadd.f32 0.0, %v3607
      %v3609 = vpop.f32.mrf.mxu0
      %3610 = vmatprep.mubr.bf16.mxu0 0
      %3611 = vmatmul.mubr.bf16.gmra.mxu0 %v3513
      %v3612 = vpop.f32.mrf.mxu0
      %v3613 = vadd.f32 0.0, %v3612
      %v3614 = vpop.f32.mrf.mxu0
      %v3615 = vpop.f32.mrf.mxu0
      %v3616 = vadd.f32 0.0, %v3615
      %v3617 = vpop.f32.mrf.mxu0
      %3618 = vmatprep.mubr.bf16.mxu0 0
      %3619 = vmatmul.mubr.bf16.gmra.mxu0 %v3516
      %v3620 = vpop.f32.mrf.mxu0
      %v3621 = vadd.f32 0.0, %v3620
      %v3622 = vpop.f32.mrf.mxu0
      %v3623 = vpop.f32.mrf.mxu0
      %v3624 = vadd.f32 0.0, %v3623
      %v3625 = vpop.f32.mrf.mxu0
      %3626 = vmatprep.mubr.bf16.mxu0 0
      %3627 = vmatmul.mubr.bf16.gmra.mxu0 %v3519
      %v3628 = vpop.f32.mrf.mxu0
      %v3629 = vadd.f32 0.0, %v3628
      %v3630 = vpop.f32.mrf.mxu0
      %v3631 = vpop.f32.mrf.mxu0
      %v3632 = vadd.f32 0.0, %v3631
      %v3633 = vpop.f32.mrf.mxu0
      %3634 = vmatprep.mubr.bf16.mxu0 0
      %3635 = vmatmul.mubr.bf16.gmra.mxu0 %v3522
      %v3636 = vpop.f32.mrf.mxu0
      %v3637 = vadd.f32 0.0, %v3636
      %v3638 = vpop.f32.mrf.mxu0
      %v3639 = vpop.f32.mrf.mxu0
      %v3640 = vadd.f32 0.0, %v3639
      %v3641 = vpop.f32.mrf.mxu0
      %3642 = vmatprep.mubr.bf16.mxu0 0
      %3643 = vmatmul.mubr.bf16.gmra.mxu0 %v3525
      %v3644 = vpop.f32.mrf.mxu0
      %v3645 = vadd.f32 0.0, %v3644
      %v3646 = vpop.f32.mrf.mxu0
      %v3647 = vpop.f32.mrf.mxu0
      %v3648 = vadd.f32 0.0, %v3647
      %v3649 = vpop.f32.mrf.mxu0
      %3650 = vmatprep.mubr.bf16.mxu0 0
      %3651 = vmatmul.mubr.bf16.gmra.mxu0 %v3528
      %v3652 = vpop.f32.mrf.mxu0
      %v3653 = vadd.f32 0.0, %v3652
      %v3654 = vpop.f32.mrf.mxu0
      %v3655 = vpop.f32.mrf.mxu0
      %v3656 = vadd.f32 0.0, %v3655
      %v3657 = vpop.f32.mrf.mxu0
      %3658 = vmatprep.mubr.bf16.mxu0 0
      %3659 = vmatmul.mubr.bf16.gmra.mxu0 %v3531
      %v3660 = vpop.f32.mrf.mxu0
      %v3661 = vadd.f32 0.0, %v3660
      %v3662 = vpop.f32.mrf.mxu0
      %v3663 = vpop.f32.mrf.mxu0
      %v3664 = vadd.f32 0.0, %v3663
      %v3665 = vpop.f32.mrf.mxu0
      %3666 = vmatprep.mubr.bf16.mxu0 0
      %3667 = vmatmul.mubr.bf16.gmra.mxu0 %v3534
      %v3668 = vpop.f32.mrf.mxu0
      %v3669 = vadd.f32 0.0, %v3668
      %v3670 = vpop.f32.mrf.mxu0
      %v3671 = vpop.f32.mrf.mxu0
      %v3672 = vadd.f32 0.0, %v3671
      %v3673 = vpop.f32.mrf.mxu0
      %3674 = vmatprep.mubr.bf16.mxu0 0
      %3675 = vmatmul.mubr.bf16.gmra.mxu0 %v3537
      %v3676 = vpop.f32.mrf.mxu0
      %v3677 = vadd.f32 0.0, %v3676
      %v3678 = vpop.f32.mrf.mxu0
      %v3679 = vpop.f32.mrf.mxu0
      %v3680 = vadd.f32 0.0, %v3679
      %v3681 = vpop.f32.mrf.mxu0
      %3682 = vmatprep.mubr.bf16.mxu0 0
      %3683 = vmatmul.mubr.bf16.gmra.mxu0 %v3540
      %v3684 = vpop.f32.mrf.mxu0
      %v3685 = vadd.f32 0.0, %v3684
      %v3686 = vpop.f32.mrf.mxu0
      %v3687 = vpop.f32.mrf.mxu0
      %v3688 = vadd.f32 0.0, %v3687
      %v3689 = vpop.f32.mrf.mxu0
      %3690 = vmatprep.mubr.bf16.mxu0 0
      %3691 = vmatmul.mubr.bf16.gmra.mxu0 %v3543
      %v3692 = vpop.f32.mrf.mxu0
      %v3693 = vadd.f32 0.0, %v3692
      %v3694 = vpop.f32.mrf.mxu0
      %v3695 = vpop.f32.mrf.mxu0
      %v3696 = vadd.f32 0.0, %v3695
      %v3697 = vpop.f32.mrf.mxu0
      %3698 = vmatprep.mubr.bf16.mxu0 0
      %3699 = vmatmul.mubr.bf16.gmra.mxu0 %v3546
      %v3700 = vpop.f32.mrf.mxu0
      %v3701 = vadd.f32 0.0, %v3700
      %v3702 = vpop.f32.mrf.mxu0
      %v3703 = vpop.f32.mrf.mxu0
      %v3704 = vadd.f32 0.0, %v3703
      %v3705 = vpop.f32.mrf.mxu0
      %3706 = vmatprep.mubr.bf16.mxu0 0
      %3707 = vmatmul.mubr.bf16.gmra.mxu0 %v3549
      %v3708 = vpop.f32.mrf.mxu0
      %v3709 = vadd.f32 0.0, %v3708
      %v3710 = vpop.f32.mrf.mxu0
      %v3711 = vpop.f32.mrf.mxu0
      %v3712 = vadd.f32 0.0, %v3711
      %v3713 = vpop.f32.mrf.mxu0
      %3714 = vdwg.mxu0
      %v3715 = vadd.f32 %v3261, %v3589
      %v3716 = vadd.f32 %v3262, %v3592
      %v3717 = vadd.f32 %v3263, %v3597
      %v3718 = vadd.f32 %v3264, %v3600
      %v3719 = vadd.f32 %v3265, %v3605
      %v3720 = vadd.f32 %v3266, %v3608
      %v3721 = vadd.f32 %v3267, %v3613
      %v3722 = vadd.f32 %v3268, %v3616
      %v3723 = vadd.f32 %v3269, %v3621
      %v3724 = vadd.f32 %v3270, %v3624
      %v3725 = vadd.f32 %v3271, %v3629
      %v3726 = vadd.f32 %v3272, %v3632
      %v3727 = vadd.f32 %v3273, %v3637
      %v3728 = vadd.f32 %v3274, %v3640
      %v3729 = vadd.f32 %v3275, %v3645
      %v3730 = vadd.f32 %v3276, %v3648
      %v3731 = vadd.f32 %v3277, %v3653
      %v3732 = vadd.f32 %v3278, %v3656
      %v3733 = vadd.f32 %v3279, %v3661
      %v3734 = vadd.f32 %v3280, %v3664
      %v3735 = vadd.f32 %v3281, %v3669
      %v3736 = vadd.f32 %v3282, %v3672
      %v3737 = vadd.f32 %v3283, %v3677
      %v3738 = vadd.f32 %v3284, %v3680
      %v3739 = vadd.f32 %v3285, %v3685
      %v3740 = vadd.f32 %v3286, %v3688
      %v3741 = vadd.f32 %v3287, %v3693
      %v3742 = vadd.f32 %v3288, %v3696
      %v3743 = vadd.f32 %v3289, %v3701
      %v3744 = vadd.f32 %v3290, %v3704
      %v3745 = vadd.f32 %v3291, %v3709
      %v3746 = vadd.f32 %v3292, %v3712
      %3747 = vst [vmem:[#allocation2] sm:$0xff] %v3715
      %3748 = vst [vmem:[#allocation2 + $0x8] sm:$0xff] %v3716
      %3749 = vst [vmem:[#allocation2 + $0x10] sm:$0xff] %v3717
      %3750 = vst [vmem:[#allocation2 + $0x18] sm:$0xff] %v3718
      %3751 = vst [vmem:[#allocation2 + $0x20] sm:$0xff] %v3719
      %3752 = vst [vmem:[#allocation2 + $0x28] sm:$0xff] %v3720
      %3753 = vst [vmem:[#allocation2 + $0x30] sm:$0xff] %v3721
      %3754 = vst [vmem:[#allocation2 + $0x38] sm:$0xff] %v3722
      %3755 = vst [vmem:[#allocation2 + $0x40] sm:$0xff] %v3723
      %3756 = vst [vmem:[#allocation2 + $0x48] sm:$0xff] %v3724
      %3757 = vst [vmem:[#allocation2 + $0x50] sm:$0xff] %v3725
      %3758 = vst [vmem:[#allocation2 + $0x58] sm:$0xff] %v3726
      %3759 = vst [vmem:[#allocation2 + $0x60] sm:$0xff] %v3727
      %3760 = vst [vmem:[#allocation2 + $0x68] sm:$0xff] %v3728
      %3761 = vst [vmem:[#allocation2 + $0x70] sm:$0xff] %v3729
      %3762 = vst [vmem:[#allocation2 + $0x78] sm:$0xff] %v3730
      %3763 = vst [vmem:[#allocation2 + $0x80] sm:$0xff] %v3731
      %3764 = vst [vmem:[#allocation2 + $0x88] sm:$0xff] %v3732
      %3765 = vst [vmem:[#allocation2 + $0x90] sm:$0xff] %v3733
      %3766 = vst [vmem:[#allocation2 + $0x98] sm:$0xff] %v3734
      %3767 = vst [vmem:[#allocation2 + $0xa0] sm:$0xff] %v3735
      %3768 = vst [vmem:[#allocation2 + $0xa8] sm:$0xff] %v3736
      %3769 = vst [vmem:[#allocation2 + $0xb0] sm:$0xff] %v3737
      %3770 = vst [vmem:[#allocation2 + $0xb8] sm:$0xff] %v3738
      %3771 = vst [vmem:[#allocation2 + $0xc0] sm:$0xff] %v3739
      %3772 = vst [vmem:[#allocation2 + $0xc8] sm:$0xff] %v3740
      %3773 = vst [vmem:[#allocation2 + $0xd0] sm:$0xff] %v3741
      %3774 = vst [vmem:[#allocation2 + $0xd8] sm:$0xff] %v3742
      %3775 = vst [vmem:[#allocation2 + $0xe0] sm:$0xff] %v3743
      %3776 = vst [vmem:[#allocation2 + $0xe8] sm:$0xff] %v3744
      %3777 = vst [vmem:[#allocation2 + $0xf0] sm:$0xff] %v3745
      %3778 = vst [vmem:[#allocation2 + $0xf8] sm:$0xff] %v3746
      %s3779 = scalar_lea.vmem %s172, 24
      %v3780 = vld [vmem:[%s3779] sm:$0xf]
      %v3781 = vld [vmem:[%s3779 + $0x4] sm:$0xf]
      %v3782 = vld [vmem:[%s3779 + $0xc] sm:$0xf]
      %v3783 = vld [vmem:[%s3779 + $0x10] sm:$0xf]
      %v3784 = vld [vmem:[%s3779 + $0x18] sm:$0xf]
      %v3785 = vld [vmem:[%s3779 + $0x1c] sm:$0xf]
      %v3786 = vld [vmem:[%s3779 + $0x24] sm:$0xf]
      %v3787 = vld [vmem:[%s3779 + $0x28] sm:$0xf]
      %v3788 = vld [vmem:[%s3779 + $0x30] sm:$0xf]
      %v3789 = vld [vmem:[%s3779 + $0x34] sm:$0xf]
      %v3790 = vld [vmem:[%s3779 + $0x3c] sm:$0xf]
      %v3791 = vld [vmem:[%s3779 + $0x40] sm:$0xf]
      %v3792 = vld [vmem:[%s3779 + $0x48] sm:$0xf]
      %v3793 = vld [vmem:[%s3779 + $0x4c] sm:$0xf]
      %v3794 = vld [vmem:[%s3779 + $0x54] sm:$0xf]
      %v3795 = vld [vmem:[%s3779 + $0x58] sm:$0xf]
      %v3796 = vld [vmem:[%s3779 + $0x60] sm:$0xf]
      %v3797 = vld [vmem:[%s3779 + $0x64] sm:$0xf]
      %v3798 = vld [vmem:[%s3779 + $0x6c] sm:$0xf]
      %v3799 = vld [vmem:[%s3779 + $0x70] sm:$0xf]
      %v3800 = vld [vmem:[%s3779 + $0x78] sm:$0xf]
      %v3801 = vld [vmem:[%s3779 + $0x7c] sm:$0xf]
      %v3802 = vld [vmem:[%s3779 + $0x84] sm:$0xf]
      %v3803 = vld [vmem:[%s3779 + $0x88] sm:$0xf]
      %v3804 = vld [vmem:[%s3779 + $0x90] sm:$0xf]
      %v3805 = vld [vmem:[%s3779 + $0x94] sm:$0xf]
      %v3806 = vld [vmem:[%s3779 + $0x9c] sm:$0xf]
      %v3807 = vld [vmem:[%s3779 + $0xa0] sm:$0xf]
      %v3808 = vld [vmem:[%s3779 + $0xa8] sm:$0xf]
      %v3809 = vld [vmem:[%s3779 + $0xac] sm:$0xf]
      %v3810 = vld [vmem:[%s3779 + $0xb4] sm:$0xf]
      %v3811 = vld [vmem:[%s3779 + $0xb8] sm:$0xf]
      %v3812 = vld [vmem:[#allocation2] sm:$0xff]
      %v3813 = vld [vmem:[#allocation2 + $0x8] sm:$0xff]
      %v3814 = vld [vmem:[#allocation2 + $0x10] sm:$0xff]
      %v3815 = vld [vmem:[#allocation2 + $0x18] sm:$0xff]
      %v3816 = vld [vmem:[#allocation2 + $0x20] sm:$0xff]
      %v3817 = vld [vmem:[#allocation2 + $0x28] sm:$0xff]
      %v3818 = vld [vmem:[#allocation2 + $0x30] sm:$0xff]
      %v3819 = vld [vmem:[#allocation2 + $0x38] sm:$0xff]
      %v3820 = vld [vmem:[#allocation2 + $0x40] sm:$0xff]
      %v3821 = vld [vmem:[#allocation2 + $0x48] sm:$0xff]
      %v3822 = vld [vmem:[#allocation2 + $0x50] sm:$0xff]
      %v3823 = vld [vmem:[#allocation2 + $0x58] sm:$0xff]
      %v3824 = vld [vmem:[#allocation2 + $0x60] sm:$0xff]
      %v3825 = vld [vmem:[#allocation2 + $0x68] sm:$0xff]
      %v3826 = vld [vmem:[#allocation2 + $0x70] sm:$0xff]
      %v3827 = vld [vmem:[#allocation2 + $0x78] sm:$0xff]
      %v3828 = vld [vmem:[#allocation2 + $0x80] sm:$0xff]
      %v3829 = vld [vmem:[#allocation2 + $0x88] sm:$0xff]
      %v3830 = vld [vmem:[#allocation2 + $0x90] sm:$0xff]
      %v3831 = vld [vmem:[#allocation2 + $0x98] sm:$0xff]
      %v3832 = vld [vmem:[#allocation2 + $0xa0] sm:$0xff]
      %v3833 = vld [vmem:[#allocation2 + $0xa8] sm:$0xff]
      %v3834 = vld [vmem:[#allocation2 + $0xb0] sm:$0xff]
      %v3835 = vld [vmem:[#allocation2 + $0xb8] sm:$0xff]
      %v3836 = vld [vmem:[#allocation2 + $0xc0] sm:$0xff]
      %v3837 = vld [vmem:[#allocation2 + $0xc8] sm:$0xff]
      %v3838 = vld [vmem:[#allocation2 + $0xd0] sm:$0xff]
      %v3839 = vld [vmem:[#allocation2 + $0xd8] sm:$0xff]
      %v3840 = vld [vmem:[#allocation2 + $0xe0] sm:$0xff]
      %v3841 = vld [vmem:[#allocation2 + $0xe8] sm:$0xff]
      %v3842 = vld [vmem:[#allocation2 + $0xf0] sm:$0xff]
      %v3843 = vld [vmem:[#allocation2 + $0xf8] sm:$0xff]
      %s3844 = scalar_lea.vmem %s1, 12
      %v3845 = vld [vmem:[%s3844] sm:$0x3]
      %v3878 = vunpack.c.l.b16 %v3780
      %v3879 = vunpack.c.l.b16 %v3781
      %v3880 = vunpack.c.l.b16 %v3782
      %v3881 = vunpack.c.l.b16 %v3783
      %v3882 = vunpack.c.l.b16 %v3784
      %v3883 = vunpack.c.l.b16 %v3785
      %v3884 = vunpack.c.l.b16 %v3786
      %v3885 = vunpack.c.l.b16 %v3787
      %v3886 = vunpack.c.l.b16 %v3788
      %v3887 = vunpack.c.l.b16 %v3789
      %v3888 = vunpack.c.l.b16 %v3790
      %v3889 = vunpack.c.l.b16 %v3791
      %v3890 = vunpack.c.l.b16 %v3792
      %v3891 = vunpack.c.l.b16 %v3793
      %v3892 = vunpack.c.l.b16 %v3794
      %v3893 = vunpack.c.l.b16 %v3795
      %v3894 = vunpack.c.l.b16 %v3796
      %v3895 = vunpack.c.l.b16 %v3797
      %v3896 = vunpack.c.l.b16 %v3798
      %v3897 = vunpack.c.l.b16 %v3799
      %v3898 = vunpack.c.l.b16 %v3800
      %v3899 = vunpack.c.l.b16 %v3801
      %v3900 = vunpack.c.l.b16 %v3802
      %v3901 = vunpack.c.l.b16 %v3803
      %v3902 = vunpack.c.l.b16 %v3804
      %v3903 = vunpack.c.l.b16 %v3805
      %v3904 = vunpack.c.l.b16 %v3806
      %v3905 = vunpack.c.l.b16 %v3807
      %v3906 = vunpack.c.l.b16 %v3808
      %v3907 = vunpack.c.l.b16 %v3809
      %v3908 = vunpack.c.l.b16 %v3810
      %v3909 = vunpack.c.l.b16 %v3811
      %v3910 = vpack.c.b16 %v3879, %v3878
      %v3911 = vpack.c.b16 %v3881, %v3880
      %v3912 = vpack.c.b16 %v3883, %v3882
      %v3913 = vpack.c.b16 %v3885, %v3884
      %v3914 = vpack.c.b16 %v3887, %v3886
      %v3915 = vpack.c.b16 %v3889, %v3888
      %v3916 = vpack.c.b16 %v3891, %v3890
      %v3917 = vpack.c.b16 %v3893, %v3892
      %v3918 = vpack.c.b16 %v3895, %v3894
      %v3919 = vpack.c.b16 %v3897, %v3896
      %v3920 = vpack.c.b16 %v3899, %v3898
      %v3921 = vpack.c.b16 %v3901, %v3900
      %v3922 = vpack.c.b16 %v3903, %v3902
      %v3923 = vpack.c.b16 %v3905, %v3904
      %v3924 = vpack.c.b16 %v3907, %v3906
      %v3925 = vpack.c.b16 %v3909, %v3908
      %v3927 = vsel %vm360, %v3910, 0
      %v3930 = vsel %vm360, %v3911, 0
      %v3933 = vsel %vm360, %v3912, 0
      %v3936 = vsel %vm360, %v3913, 0
      %v3939 = vsel %vm360, %v3914, 0
      %v3942 = vsel %vm360, %v3915, 0
      %v3945 = vsel %vm360, %v3916, 0
      %v3948 = vsel %vm360, %v3917, 0
      %v3951 = vsel %vm360, %v3918, 0
      %v3954 = vsel %vm360, %v3919, 0
      %v3957 = vsel %vm360, %v3920, 0
      %v3960 = vsel %vm360, %v3921, 0
      %v3963 = vsel %vm360, %v3922, 0
      %v3966 = vsel %vm360, %v3923, 0
      %v3969 = vsel %vm360, %v3924, 0
      %v3972 = vsel %vm360, %v3925, 0
      %v3975 = vsel %vm409, %v3845, 0
      %3977 = vmatprep.subr.bf16.mxu0 0
      %3978 = vmatpush1.bf16.msra.mxu0 0
      %3979 = vmatprep.subr.bf16.mxu0 0
      %3980 = vmatpush1.bf16.msra.mxu0 0
      %3981 = vmatprep.subr.bf16.mxu0 0
      %3982 = vmatpush1.bf16.msra.mxu0 0
      %3983 = vmatprep.subr.bf16.mxu0 0
      %3984 = vmatpush1.bf16.msra.mxu0 0
      %3985 = vmatprep.subr.bf16.mxu0 0
      %3986 = vmatpush1.bf16.msra.mxu0 0
      %3987 = vmatprep.subr.bf16.mxu0 0
      %3988 = vmatpush1.bf16.msra.mxu0 0
      %3989 = vmatprep.subr.bf16.mxu0 0
      %3990 = vmatpush1.bf16.msra.mxu0 0
      %3991 = vmatprep.subr.bf16.mxu0 0
      %3992 = vmatpush1.bf16.msra.mxu0 %v3975
      %3993 = vmatprep.subr.bf16.mxu0 0
      %3994 = vmatpush2.bf16.msra.mxu0 0
      %3995 = vmatprep.subr.bf16.mxu0 0
      %3996 = vmatpush2.bf16.msra.mxu0 0
      %3997 = vmatprep.subr.bf16.mxu0 0
      %3998 = vmatpush2.bf16.msra.mxu0 0
      %3999 = vmatprep.subr.bf16.mxu0 0
      %4000 = vmatpush2.bf16.msra.mxu0 0
      %4001 = vmatprep.subr.bf16.mxu0 0
      %4002 = vmatpush2.bf16.msra.mxu0 0
      %4003 = vmatprep.subr.bf16.mxu0 0
      %4004 = vmatpush2.bf16.msra.mxu0 0
      %4005 = vmatprep.subr.bf16.mxu0 0
      %4006 = vmatpush2.bf16.msra.mxu0 0
      %4007 = vmatprep.subr.bf16.mxu0 0
      %4008 = vmatpush2.bf16.msra.mxu0 0
      %4009 = vmatprep.mubr.bf16.mxu0 0
      %4010 = vmatmul.mubr.bf16.gmra.mxu0 %v3927
      %v4011 = vpop.f32.mrf.mxu0
      %v4012 = vadd.f32 0.0, %v4011
      %v4013 = vpop.f32.mrf.mxu0
      %v4014 = vpop.f32.mrf.mxu0
      %v4015 = vadd.f32 0.0, %v4014
      %v4016 = vpop.f32.mrf.mxu0
      %4017 = vmatprep.mubr.bf16.mxu0 0
      %4018 = vmatmul.mubr.bf16.gmra.mxu0 %v3930
      %v4019 = vpop.f32.mrf.mxu0
      %v4020 = vadd.f32 0.0, %v4019
      %v4021 = vpop.f32.mrf.mxu0
      %v4022 = vpop.f32.mrf.mxu0
      %v4023 = vadd.f32 0.0, %v4022
      %v4024 = vpop.f32.mrf.mxu0
      %4025 = vmatprep.mubr.bf16.mxu0 0
      %4026 = vmatmul.mubr.bf16.gmra.mxu0 %v3933
      %v4027 = vpop.f32.mrf.mxu0
      %v4028 = vadd.f32 0.0, %v4027
      %v4029 = vpop.f32.mrf.mxu0
      %v4030 = vpop.f32.mrf.mxu0
      %v4031 = vadd.f32 0.0, %v4030
      %v4032 = vpop.f32.mrf.mxu0
      %4033 = vmatprep.mubr.bf16.mxu0 0
      %4034 = vmatmul.mubr.bf16.gmra.mxu0 %v3936
      %v4035 = vpop.f32.mrf.mxu0
      %v4036 = vadd.f32 0.0, %v4035
      %v4037 = vpop.f32.mrf.mxu0
      %v4038 = vpop.f32.mrf.mxu0
      %v4039 = vadd.f32 0.0, %v4038
      %v4040 = vpop.f32.mrf.mxu0
      %4041 = vmatprep.mubr.bf16.mxu0 0
      %4042 = vmatmul.mubr.bf16.gmra.mxu0 %v3939
      %v4043 = vpop.f32.mrf.mxu0
      %v4044 = vadd.f32 0.0, %v4043
      %v4045 = vpop.f32.mrf.mxu0
      %v4046 = vpop.f32.mrf.mxu0
      %v4047 = vadd.f32 0.0, %v4046
      %v4048 = vpop.f32.mrf.mxu0
      %4049 = vmatprep.mubr.bf16.mxu0 0
      %4050 = vmatmul.mubr.bf16.gmra.mxu0 %v3942
      %v4051 = vpop.f32.mrf.mxu0
      %v4052 = vadd.f32 0.0, %v4051
      %v4053 = vpop.f32.mrf.mxu0
      %v4054 = vpop.f32.mrf.mxu0
      %v4055 = vadd.f32 0.0, %v4054
      %v4056 = vpop.f32.mrf.mxu0
      %4057 = vmatprep.mubr.bf16.mxu0 0
      %4058 = vmatmul.mubr.bf16.gmra.mxu0 %v3945
      %v4059 = vpop.f32.mrf.mxu0
      %v4060 = vadd.f32 0.0, %v4059
      %v4061 = vpop.f32.mrf.mxu0
      %v4062 = vpop.f32.mrf.mxu0
      %v4063 = vadd.f32 0.0, %v4062
      %v4064 = vpop.f32.mrf.mxu0
      %4065 = vmatprep.mubr.bf16.mxu0 0
      %4066 = vmatmul.mubr.bf16.gmra.mxu0 %v3948
      %v4067 = vpop.f32.mrf.mxu0
      %v4068 = vadd.f32 0.0, %v4067
      %v4069 = vpop.f32.mrf.mxu0
      %v4070 = vpop.f32.mrf.mxu0
      %v4071 = vadd.f32 0.0, %v4070
      %v4072 = vpop.f32.mrf.mxu0
      %4073 = vmatprep.mubr.bf16.mxu0 0
      %4074 = vmatmul.mubr.bf16.gmra.mxu0 %v3951
      %v4075 = vpop.f32.mrf.mxu0
      %v4076 = vadd.f32 0.0, %v4075
      %v4077 = vpop.f32.mrf.mxu0
      %v4078 = vpop.f32.mrf.mxu0
      %v4079 = vadd.f32 0.0, %v4078
      %v4080 = vpop.f32.mrf.mxu0
      %4081 = vmatprep.mubr.bf16.mxu0 0
      %4082 = vmatmul.mubr.bf16.gmra.mxu0 %v3954
      %v4083 = vpop.f32.mrf.mxu0
      %v4084 = vadd.f32 0.0, %v4083
      %v4085 = vpop.f32.mrf.mxu0
      %v4086 = vpop.f32.mrf.mxu0
      %v4087 = vadd.f32 0.0, %v4086
      %v4088 = vpop.f32.mrf.mxu0
      %4089 = vmatprep.mubr.bf16.mxu0 0
      %4090 = vmatmul.mubr.bf16.gmra.mxu0 %v3957
      %v4091 = vpop.f32.mrf.mxu0
      %v4092 = vadd.f32 0.0, %v4091
      %v4093 = vpop.f32.mrf.mxu0
      %v4094 = vpop.f32.mrf.mxu0
      %v4095 = vadd.f32 0.0, %v4094
      %v4096 = vpop.f32.mrf.mxu0
      %4097 = vmatprep.mubr.bf16.mxu0 0
      %4098 = vmatmul.mubr.bf16.gmra.mxu0 %v3960
      %v4099 = vpop.f32.mrf.mxu0
      %v4100 = vadd.f32 0.0, %v4099
      %v4101 = vpop.f32.mrf.mxu0
      %v4102 = vpop.f32.mrf.mxu0
      %v4103 = vadd.f32 0.0, %v4102
      %v4104 = vpop.f32.mrf.mxu0
      %4105 = vmatprep.mubr.bf16.mxu0 0
      %4106 = vmatmul.mubr.bf16.gmra.mxu0 %v3963
      %v4107 = vpop.f32.mrf.mxu0
      %v4108 = vadd.f32 0.0, %v4107
      %v4109 = vpop.f32.mrf.mxu0
      %v4110 = vpop.f32.mrf.mxu0
      %v4111 = vadd.f32 0.0, %v4110
      %v4112 = vpop.f32.mrf.mxu0
      %4113 = vmatprep.mubr.bf16.mxu0 0
      %4114 = vmatmul.mubr.bf16.gmra.mxu0 %v3966
      %v4115 = vpop.f32.mrf.mxu0
      %v4116 = vadd.f32 0.0, %v4115
      %v4117 = vpop.f32.mrf.mxu0
      %v4118 = vpop.f32.mrf.mxu0
      %v4119 = vadd.f32 0.0, %v4118
      %v4120 = vpop.f32.mrf.mxu0
      %4121 = vmatprep.mubr.bf16.mxu0 0
      %4122 = vmatmul.mubr.bf16.gmra.mxu0 %v3969
      %v4123 = vpop.f32.mrf.mxu0
      %v4124 = vadd.f32 0.0, %v4123
      %v4125 = vpop.f32.mrf.mxu0
      %v4126 = vpop.f32.mrf.mxu0
      %v4127 = vadd.f32 0.0, %v4126
      %v4128 = vpop.f32.mrf.mxu0
      %4129 = vmatprep.mubr.bf16.mxu0 0
      %4130 = vmatmul.mubr.bf16.gmra.mxu0 %v3972
      %v4131 = vpop.f32.mrf.mxu0
      %v4132 = vadd.f32 0.0, %v4131
      %v4133 = vpop.f32.mrf.mxu0
      %v4134 = vpop.f32.mrf.mxu0
      %v4135 = vadd.f32 0.0, %v4134
      %v4136 = vpop.f32.mrf.mxu0
      %4137 = vdwg.mxu0
      %v4138 = vadd.f32 %v3812, %v4012
      %v4139 = vadd.f32 %v3813, %v4015
      %v4140 = vadd.f32 %v3814, %v4020
      %v4141 = vadd.f32 %v3815, %v4023
      %v4142 = vadd.f32 %v3816, %v4028
      %v4143 = vadd.f32 %v3817, %v4031
      %v4144 = vadd.f32 %v3818, %v4036
      %v4145 = vadd.f32 %v3819, %v4039
      %v4146 = vadd.f32 %v3820, %v4044
      %v4147 = vadd.f32 %v3821, %v4047
      %v4148 = vadd.f32 %v3822, %v4052
      %v4149 = vadd.f32 %v3823, %v4055
      %v4150 = vadd.f32 %v3824, %v4060
      %v4151 = vadd.f32 %v3825, %v4063
      %v4152 = vadd.f32 %v3826, %v4068
      %v4153 = vadd.f32 %v3827, %v4071
      %v4154 = vadd.f32 %v3828, %v4076
      %v4155 = vadd.f32 %v3829, %v4079
      %v4156 = vadd.f32 %v3830, %v4084
      %v4157 = vadd.f32 %v3831, %v4087
      %v4158 = vadd.f32 %v3832, %v4092
      %v4159 = vadd.f32 %v3833, %v4095
      %v4160 = vadd.f32 %v3834, %v4100
      %v4161 = vadd.f32 %v3835, %v4103
      %v4162 = vadd.f32 %v3836, %v4108
      %v4163 = vadd.f32 %v3837, %v4111
      %v4164 = vadd.f32 %v3838, %v4116
      %v4165 = vadd.f32 %v3839, %v4119
      %v4166 = vadd.f32 %v3840, %v4124
      %v4167 = vadd.f32 %v3841, %v4127
      %v4168 = vadd.f32 %v3842, %v4132
      %v4169 = vadd.f32 %v3843, %v4135
      %4170 = vst [vmem:[#allocation2] sm:$0xff] %v4138
      %4171 = vst [vmem:[#allocation2 + $0x8] sm:$0xff] %v4139
      %4172 = vst [vmem:[#allocation2 + $0x10] sm:$0xff] %v4140
      %4173 = vst [vmem:[#allocation2 + $0x18] sm:$0xff] %v4141
      %4174 = vst [vmem:[#allocation2 + $0x20] sm:$0xff] %v4142
      %4175 = vst [vmem:[#allocation2 + $0x28] sm:$0xff] %v4143
      %4176 = vst [vmem:[#allocation2 + $0x30] sm:$0xff] %v4144
      %4177 = vst [vmem:[#allocation2 + $0x38] sm:$0xff] %v4145
      %4178 = vst [vmem:[#allocation2 + $0x40] sm:$0xff] %v4146
      %4179 = vst [vmem:[#allocation2 + $0x48] sm:$0xff] %v4147
      %4180 = vst [vmem:[#allocation2 + $0x50] sm:$0xff] %v4148
      %4181 = vst [vmem:[#allocation2 + $0x58] sm:$0xff] %v4149
      %4182 = vst [vmem:[#allocation2 + $0x60] sm:$0xff] %v4150
      %4183 = vst [vmem:[#allocation2 + $0x68] sm:$0xff] %v4151
      %4184 = vst [vmem:[#allocation2 + $0x70] sm:$0xff] %v4152
      %4185 = vst [vmem:[#allocation2 + $0x78] sm:$0xff] %v4153
      %4186 = vst [vmem:[#allocation2 + $0x80] sm:$0xff] %v4154
      %4187 = vst [vmem:[#allocation2 + $0x88] sm:$0xff] %v4155
      %4188 = vst [vmem:[#allocation2 + $0x90] sm:$0xff] %v4156
      %4189 = vst [vmem:[#allocation2 + $0x98] sm:$0xff] %v4157
      %4190 = vst [vmem:[#allocation2 + $0xa0] sm:$0xff] %v4158
      %4191 = vst [vmem:[#allocation2 + $0xa8] sm:$0xff] %v4159
      %4192 = vst [vmem:[#allocation2 + $0xb0] sm:$0xff] %v4160
      %4193 = vst [vmem:[#allocation2 + $0xb8] sm:$0xff] %v4161
      %4194 = vst [vmem:[#allocation2 + $0xc0] sm:$0xff] %v4162
      %4195 = vst [vmem:[#allocation2 + $0xc8] sm:$0xff] %v4163
      %4196 = vst [vmem:[#allocation2 + $0xd0] sm:$0xff] %v4164
      %4197 = vst [vmem:[#allocation2 + $0xd8] sm:$0xff] %v4165
      %4198 = vst [vmem:[#allocation2 + $0xe0] sm:$0xff] %v4166
      %4199 = vst [vmem:[#allocation2 + $0xe8] sm:$0xff] %v4167
      %4200 = vst [vmem:[#allocation2 + $0xf0] sm:$0xff] %v4168
      %4201 = vst [vmem:[#allocation2 + $0xf8] sm:$0xff] %v4169
      %v4202 = vld [vmem:[%s3779] sm:$0xf]
      %v4203 = vld [vmem:[%s3779 + $0x4] sm:$0xf]
      %v4204 = vld [vmem:[%s3779 + $0x8] sm:$0x1]
      %v4205 = vld [vmem:[%s3779 + $0xc] sm:$0xf]
      %v4206 = vld [vmem:[%s3779 + $0x10] sm:$0xf]
      %v4207 = vld [vmem:[%s3779 + $0x14] sm:$0x1]
      %v4208 = vld [vmem:[%s3779 + $0x18] sm:$0xf]
      %v4209 = vld [vmem:[%s3779 + $0x1c] sm:$0xf]
      %v4210 = vld [vmem:[%s3779 + $0x20] sm:$0x1]
      %v4211 = vld [vmem:[%s3779 + $0x24] sm:$0xf]
      %v4212 = vld [vmem:[%s3779 + $0x28] sm:$0xf]
      %v4213 = vld [vmem:[%s3779 + $0x2c] sm:$0x1]
      %v4214 = vld [vmem:[%s3779 + $0x30] sm:$0xf]
      %v4215 = vld [vmem:[%s3779 + $0x34] sm:$0xf]
      %v4216 = vld [vmem:[%s3779 + $0x38] sm:$0x1]
      %v4217 = vld [vmem:[%s3779 + $0x3c] sm:$0xf]
      %v4218 = vld [vmem:[%s3779 + $0x40] sm:$0xf]
      %v4219 = vld [vmem:[%s3779 + $0x44] sm:$0x1]
      %v4220 = vld [vmem:[%s3779 + $0x48] sm:$0xf]
      %v4221 = vld [vmem:[%s3779 + $0x4c] sm:$0xf]
      %v4222 = vld [vmem:[%s3779 + $0x50] sm:$0x1]
      %v4223 = vld [vmem:[%s3779 + $0x54] sm:$0xf]
      %v4224 = vld [vmem:[%s3779 + $0x58] sm:$0xf]
      %v4225 = vld [vmem:[%s3779 + $0x5c] sm:$0x1]
      %v4226 = vld [vmem:[%s3779 + $0x60] sm:$0xf]
      %v4227 = vld [vmem:[%s3779 + $0x64] sm:$0xf]
      %v4228 = vld [vmem:[%s3779 + $0x68] sm:$0x1]
      %v4229 = vld [vmem:[%s3779 + $0x6c] sm:$0xf]
      %v4230 = vld [vmem:[%s3779 + $0x70] sm:$0xf]
      %v4231 = vld [vmem:[%s3779 + $0x74] sm:$0x1]
      %v4232 = vld [vmem:[%s3779 + $0x78] sm:$0xf]
      %v4233 = vld [vmem:[%s3779 + $0x7c] sm:$0xf]
      %v4234 = vld [vmem:[%s3779 + $0x80] sm:$0x1]
      %v4235 = vld [vmem:[%s3779 + $0x84] sm:$0xf]
      %v4236 = vld [vmem:[%s3779 + $0x88] sm:$0xf]
      %v4237 = vld [vmem:[%s3779 + $0x8c] sm:$0x1]
      %v4238 = vld [vmem:[%s3779 + $0x90] sm:$0xf]
      %v4239 = vld [vmem:[%s3779 + $0x94] sm:$0xf]
      %v4240 = vld [vmem:[%s3779 + $0x98] sm:$0x1]
      %v4241 = vld [vmem:[%s3779 + $0x9c] sm:$0xf]
      %v4242 = vld [vmem:[%s3779 + $0xa0] sm:$0xf]
      %v4243 = vld [vmem:[%s3779 + $0xa4] sm:$0x1]
      %v4244 = vld [vmem:[%s3779 + $0xa8] sm:$0xf]
      %v4245 = vld [vmem:[%s3779 + $0xac] sm:$0xf]
      %v4246 = vld [vmem:[%s3779 + $0xb0] sm:$0x1]
      %v4247 = vld [vmem:[%s3779 + $0xb4] sm:$0xf]
      %v4248 = vld [vmem:[%s3779 + $0xb8] sm:$0xf]
      %v4249 = vld [vmem:[%s3779 + $0xbc] sm:$0x1]
      %v4250 = vld [vmem:[#allocation2] sm:$0xff]
      %v4251 = vld [vmem:[#allocation2 + $0x8] sm:$0xff]
      %v4252 = vld [vmem:[#allocation2 + $0x10] sm:$0xff]
      %v4253 = vld [vmem:[#allocation2 + $0x18] sm:$0xff]
      %v4254 = vld [vmem:[#allocation2 + $0x20] sm:$0xff]
      %v4255 = vld [vmem:[#allocation2 + $0x28] sm:$0xff]
      %v4256 = vld [vmem:[#allocation2 + $0x30] sm:$0xff]
      %v4257 = vld [vmem:[#allocation2 + $0x38] sm:$0xff]
      %v4258 = vld [vmem:[#allocation2 + $0x40] sm:$0xff]
      %v4259 = vld [vmem:[#allocation2 + $0x48] sm:$0xff]
      %v4260 = vld [vmem:[#allocation2 + $0x50] sm:$0xff]
      %v4261 = vld [vmem:[#allocation2 + $0x58] sm:$0xff]
      %v4262 = vld [vmem:[#allocation2 + $0x60] sm:$0xff]
      %v4263 = vld [vmem:[#allocation2 + $0x68] sm:$0xff]
      %v4264 = vld [vmem:[#allocation2 + $0x70] sm:$0xff]
      %v4265 = vld [vmem:[#allocation2 + $0x78] sm:$0xff]
      %v4266 = vld [vmem:[#allocation2 + $0x80] sm:$0xff]
      %v4267 = vld [vmem:[#allocation2 + $0x88] sm:$0xff]
      %v4268 = vld [vmem:[#allocation2 + $0x90] sm:$0xff]
      %v4269 = vld [vmem:[#allocation2 + $0x98] sm:$0xff]
      %v4270 = vld [vmem:[#allocation2 + $0xa0] sm:$0xff]
      %v4271 = vld [vmem:[#allocation2 + $0xa8] sm:$0xff]
      %v4272 = vld [vmem:[#allocation2 + $0xb0] sm:$0xff]
      %v4273 = vld [vmem:[#allocation2 + $0xb8] sm:$0xff]
      %v4274 = vld [vmem:[#allocation2 + $0xc0] sm:$0xff]
      %v4275 = vld [vmem:[#allocation2 + $0xc8] sm:$0xff]
      %v4276 = vld [vmem:[#allocation2 + $0xd0] sm:$0xff]
      %v4277 = vld [vmem:[#allocation2 + $0xd8] sm:$0xff]
      %v4278 = vld [vmem:[#allocation2 + $0xe0] sm:$0xff]
      %v4279 = vld [vmem:[#allocation2 + $0xe8] sm:$0xff]
      %v4280 = vld [vmem:[#allocation2 + $0xf0] sm:$0xff]
      %v4281 = vld [vmem:[#allocation2 + $0xf8] sm:$0xff]
      %v4283 = vshrl.u32 %v4202, 16
      %v4285 = vrot.slane %v4283, 4
      %v4286 = vshll.u32 %v4202, 16
      %v4288 = vrot.slane %v4286, 5
      %v4289 = vor.u32 %v4285, %v4288
      %v4290 = vrot.slane %v4289, 4
      %v4292 = vshll.u32 %v4203, 16
      %v4294 = vrot.slane %v4292, 5
      %v4295 = vsel %vm720, %v4290, %v4294
      %v4296 = vshrl.u32 %v4203, 16
      %v4298 = vrot.slane %v4296, 4
      %v4299 = vor.u32 %v4298, %v4294
      %v4300 = vrot.slane %v4299, 4
      %v4302 = vshll.u32 %v4204, 16
      %v4304 = vrot.slane %v4302, 5
      %v4305 = vsel %vm720, %v4300, %v4304
      %v4307 = vshrl.u32 %v4205, 16
      %v4309 = vrot.slane %v4307, 4
      %v4310 = vshll.u32 %v4205, 16
      %v4312 = vrot.slane %v4310, 5
      %v4313 = vor.u32 %v4309, %v4312
      %v4314 = vrot.slane %v4313, 4
      %v4316 = vshll.u32 %v4206, 16
      %v4318 = vrot.slane %v4316, 5
      %v4319 = vsel %vm720, %v4314, %v4318
      %v4320 = vshrl.u32 %v4206, 16
      %v4322 = vrot.slane %v4320, 4
      %v4323 = vor.u32 %v4322, %v4318
      %v4324 = vrot.slane %v4323, 4
      %v4326 = vshll.u32 %v4207, 16
      %v4328 = vrot.slane %v4326, 5
      %v4329 = vsel %vm720, %v4324, %v4328
      %v4331 = vshrl.u32 %v4208, 16
      %v4333 = vrot.slane %v4331, 4
      %v4334 = vshll.u32 %v4208, 16
      %v4336 = vrot.slane %v4334, 5
      %v4337 = vor.u32 %v4333, %v4336
      %v4338 = vrot.slane %v4337, 4
      %v4340 = vshll.u32 %v4209, 16
      %v4342 = vrot.slane %v4340, 5
      %v4343 = vsel %vm720, %v4338, %v4342
      %v4344 = vshrl.u32 %v4209, 16
      %v4346 = vrot.slane %v4344, 4
      %v4347 = vor.u32 %v4346, %v4342
      %v4348 = vrot.slane %v4347, 4
      %v4350 = vshll.u32 %v4210, 16
      %v4352 = vrot.slane %v4350, 5
      %v4353 = vsel %vm720, %v4348, %v4352
      %v4355 = vshrl.u32 %v4211, 16
      %v4357 = vrot.slane %v4355, 4
      %v4358 = vshll.u32 %v4211, 16
      %v4360 = vrot.slane %v4358, 5
      %v4361 = vor.u32 %v4357, %v4360
      %v4362 = vrot.slane %v4361, 4
      %v4364 = vshll.u32 %v4212, 16
      %v4366 = vrot.slane %v4364, 5
      %v4367 = vsel %vm720, %v4362, %v4366
      %v4368 = vshrl.u32 %v4212, 16
      %v4370 = vrot.slane %v4368, 4
      %v4371 = vor.u32 %v4370, %v4366
      %v4372 = vrot.slane %v4371, 4
      %v4374 = vshll.u32 %v4213, 16
      %v4376 = vrot.slane %v4374, 5
      %v4377 = vsel %vm720, %v4372, %v4376
      %v4379 = vshrl.u32 %v4214, 16
      %v4381 = vrot.slane %v4379, 4
      %v4382 = vshll.u32 %v4214, 16
      %v4384 = vrot.slane %v4382, 5
      %v4385 = vor.u32 %v4381, %v4384
      %v4386 = vrot.slane %v4385, 4
      %v4388 = vshll.u32 %v4215, 16
      %v4390 = vrot.slane %v4388, 5
      %v4391 = vsel %vm720, %v4386, %v4390
      %v4392 = vshrl.u32 %v4215, 16
      %v4394 = vrot.slane %v4392, 4
      %v4395 = vor.u32 %v4394, %v4390
      %v4396 = vrot.slane %v4395, 4
      %v4398 = vshll.u32 %v4216, 16
      %v4400 = vrot.slane %v4398, 5
      %v4401 = vsel %vm720, %v4396, %v4400
      %v4403 = vshrl.u32 %v4217, 16
      %v4405 = vrot.slane %v4403, 4
      %v4406 = vshll.u32 %v4217, 16
      %v4408 = vrot.slane %v4406, 5
      %v4409 = vor.u32 %v4405, %v4408
      %v4410 = vrot.slane %v4409, 4
      %v4412 = vshll.u32 %v4218, 16
      %v4414 = vrot.slane %v4412, 5
      %v4415 = vsel %vm720, %v4410, %v4414
      %v4416 = vshrl.u32 %v4218, 16
      %v4418 = vrot.slane %v4416, 4
      %v4419 = vor.u32 %v4418, %v4414
      %v4420 = vrot.slane %v4419, 4
      %v4422 = vshll.u32 %v4219, 16
      %v4424 = vrot.slane %v4422, 5
      %v4425 = vsel %vm720, %v4420, %v4424
      %v4427 = vshrl.u32 %v4220, 16
      %v4429 = vrot.slane %v4427, 4
      %v4430 = vshll.u32 %v4220, 16
      %v4432 = vrot.slane %v4430, 5
      %v4433 = vor.u32 %v4429, %v4432
      %v4434 = vrot.slane %v4433, 4
      %v4436 = vshll.u32 %v4221, 16
      %v4438 = vrot.slane %v4436, 5
      %v4439 = vsel %vm720, %v4434, %v4438
      %v4440 = vshrl.u32 %v4221, 16
      %v4442 = vrot.slane %v4440, 4
      %v4443 = vor.u32 %v4442, %v4438
      %v4444 = vrot.slane %v4443, 4
      %v4446 = vshll.u32 %v4222, 16
      %v4448 = vrot.slane %v4446, 5
      %v4449 = vsel %vm720, %v4444, %v4448
      %v4451 = vshrl.u32 %v4223, 16
      %v4453 = vrot.slane %v4451, 4
      %v4454 = vshll.u32 %v4223, 16
      %v4456 = vrot.slane %v4454, 5
      %v4457 = vor.u32 %v4453, %v4456
      %v4458 = vrot.slane %v4457, 4
      %v4460 = vshll.u32 %v4224, 16
      %v4462 = vrot.slane %v4460, 5
      %v4463 = vsel %vm720, %v4458, %v4462
      %v4464 = vshrl.u32 %v4224, 16
      %v4466 = vrot.slane %v4464, 4
      %v4467 = vor.u32 %v4466, %v4462
      %v4468 = vrot.slane %v4467, 4
      %v4470 = vshll.u32 %v4225, 16
      %v4472 = vrot.slane %v4470, 5
      %v4473 = vsel %vm720, %v4468, %v4472
      %v4475 = vshrl.u32 %v4226, 16
      %v4477 = vrot.slane %v4475, 4
      %v4478 = vshll.u32 %v4226, 16
      %v4480 = vrot.slane %v4478, 5
      %v4481 = vor.u32 %v4477, %v4480
      %v4482 = vrot.slane %v4481, 4
      %v4484 = vshll.u32 %v4227, 16
      %v4486 = vrot.slane %v4484, 5
      %v4487 = vsel %vm720, %v4482, %v4486
      %v4488 = vshrl.u32 %v4227, 16
      %v4490 = vrot.slane %v4488, 4
      %v4491 = vor.u32 %v4490, %v4486
      %v4492 = vrot.slane %v4491, 4
      %v4494 = vshll.u32 %v4228, 16
      %v4496 = vrot.slane %v4494, 5
      %v4497 = vsel %vm720, %v4492, %v4496
      %v4499 = vshrl.u32 %v4229, 16
      %v4501 = vrot.slane %v4499, 4
      %v4502 = vshll.u32 %v4229, 16
      %v4504 = vrot.slane %v4502, 5
      %v4505 = vor.u32 %v4501, %v4504
      %v4506 = vrot.slane %v4505, 4
      %v4508 = vshll.u32 %v4230, 16
      %v4510 = vrot.slane %v4508, 5
      %v4511 = vsel %vm720, %v4506, %v4510
      %v4512 = vshrl.u32 %v4230, 16
      %v4514 = vrot.slane %v4512, 4
      %v4515 = vor.u32 %v4514, %v4510
      %v4516 = vrot.slane %v4515, 4
      %v4518 = vshll.u32 %v4231, 16
      %v4520 = vrot.slane %v4518, 5
      %v4521 = vsel %vm720, %v4516, %v4520
      %v4523 = vshrl.u32 %v4232, 16
      %v4525 = vrot.slane %v4523, 4
      %v4526 = vshll.u32 %v4232, 16
      %v4528 = vrot.slane %v4526, 5
      %v4529 = vor.u32 %v4525, %v4528
      %v4530 = vrot.slane %v4529, 4
      %v4532 = vshll.u32 %v4233, 16
      %v4534 = vrot.slane %v4532, 5
      %v4535 = vsel %vm720, %v4530, %v4534
      %v4536 = vshrl.u32 %v4233, 16
      %v4538 = vrot.slane %v4536, 4
      %v4539 = vor.u32 %v4538, %v4534
      %v4540 = vrot.slane %v4539, 4
      %v4542 = vshll.u32 %v4234, 16
      %v4544 = vrot.slane %v4542, 5
      %v4545 = vsel %vm720, %v4540, %v4544
      %v4547 = vshrl.u32 %v4235, 16
      %v4549 = vrot.slane %v4547, 4
      %v4550 = vshll.u32 %v4235, 16
      %v4552 = vrot.slane %v4550, 5
      %v4553 = vor.u32 %v4549, %v4552
      %v4554 = vrot.slane %v4553, 4
      %v4556 = vshll.u32 %v4236, 16
      %v4558 = vrot.slane %v4556, 5
      %v4559 = vsel %vm720, %v4554, %v4558
      %v4560 = vshrl.u32 %v4236, 16
      %v4562 = vrot.slane %v4560, 4
      %v4563 = vor.u32 %v4562, %v4558
      %v4564 = vrot.slane %v4563, 4
      %v4566 = vshll.u32 %v4237, 16
      %v4568 = vrot.slane %v4566, 5
      %v4569 = vsel %vm720, %v4564, %v4568
      %v4571 = vshrl.u32 %v4238, 16
      %v4573 = vrot.slane %v4571, 4
      %v4574 = vshll.u32 %v4238, 16
      %v4576 = vrot.slane %v4574, 5
      %v4577 = vor.u32 %v4573, %v4576
      %v4578 = vrot.slane %v4577, 4
      %v4580 = vshll.u32 %v4239, 16
      %v4582 = vrot.slane %v4580, 5
      %v4583 = vsel %vm720, %v4578, %v4582
      %v4584 = vshrl.u32 %v4239, 16
      %v4586 = vrot.slane %v4584, 4
      %v4587 = vor.u32 %v4586, %v4582
      %v4588 = vrot.slane %v4587, 4
      %v4590 = vshll.u32 %v4240, 16
      %v4592 = vrot.slane %v4590, 5
      %v4593 = vsel %vm720, %v4588, %v4592
      %v4595 = vshrl.u32 %v4241, 16
      %v4597 = vrot.slane %v4595, 4
      %v4598 = vshll.u32 %v4241, 16
      %v4600 = vrot.slane %v4598, 5
      %v4601 = vor.u32 %v4597, %v4600
      %v4602 = vrot.slane %v4601, 4
      %v4604 = vshll.u32 %v4242, 16
      %v4606 = vrot.slane %v4604, 5
      %v4607 = vsel %vm720, %v4602, %v4606
      %v4608 = vshrl.u32 %v4242, 16
      %v4610 = vrot.slane %v4608, 4
      %v4611 = vor.u32 %v4610, %v4606
      %v4612 = vrot.slane %v4611, 4
      %v4614 = vshll.u32 %v4243, 16
      %v4616 = vrot.slane %v4614, 5
      %v4617 = vsel %vm720, %v4612, %v4616
      %v4619 = vshrl.u32 %v4244, 16
      %v4621 = vrot.slane %v4619, 4
      %v4622 = vshll.u32 %v4244, 16
      %v4624 = vrot.slane %v4622, 5
      %v4625 = vor.u32 %v4621, %v4624
      %v4626 = vrot.slane %v4625, 4
      %v4628 = vshll.u32 %v4245, 16
      %v4630 = vrot.slane %v4628, 5
      %v4631 = vsel %vm720, %v4626, %v4630
      %v4632 = vshrl.u32 %v4245, 16
      %v4634 = vrot.slane %v4632, 4
      %v4635 = vor.u32 %v4634, %v4630
      %v4636 = vrot.slane %v4635, 4
      %v4638 = vshll.u32 %v4246, 16
      %v4640 = vrot.slane %v4638, 5
      %v4641 = vsel %vm720, %v4636, %v4640
      %v4643 = vshrl.u32 %v4247, 16
      %v4645 = vrot.slane %v4643, 4
      %v4646 = vshll.u32 %v4247, 16
      %v4648 = vrot.slane %v4646, 5
      %v4649 = vor.u32 %v4645, %v4648
      %v4650 = vrot.slane %v4649, 4
      %v4652 = vshll.u32 %v4248, 16
      %v4654 = vrot.slane %v4652, 5
      %v4655 = vsel %vm720, %v4650, %v4654
      %v4656 = vshrl.u32 %v4248, 16
      %v4658 = vrot.slane %v4656, 4
      %v4659 = vor.u32 %v4658, %v4654
      %v4660 = vrot.slane %v4659, 4
      %v4662 = vshll.u32 %v4249, 16
      %v4664 = vrot.slane %v4662, 5
      %v4665 = vsel %vm720, %v4660, %v4664
      %s4666 = scalar_lea.vmem %s1, 14
      %v4667 = vld [vmem:[%s4666] sm:$0x3]
      %v4668 = vunpack.c.l.b16 %v4295
      %v4669 = vunpack.c.l.b16 %v4305
      %v4670 = vunpack.c.l.b16 %v4319
      %v4671 = vunpack.c.l.b16 %v4329
      %v4672 = vunpack.c.l.b16 %v4343
      %v4673 = vunpack.c.l.b16 %v4353
      %v4674 = vunpack.c.l.b16 %v4367
      %v4675 = vunpack.c.l.b16 %v4377
      %v4676 = vunpack.c.l.b16 %v4391
      %v4677 = vunpack.c.l.b16 %v4401
      %v4678 = vunpack.c.l.b16 %v4415
      %v4679 = vunpack.c.l.b16 %v4425
      %v4680 = vunpack.c.l.b16 %v4439
      %v4681 = vunpack.c.l.b16 %v4449
      %v4682 = vunpack.c.l.b16 %v4463
      %v4683 = vunpack.c.l.b16 %v4473
      %v4684 = vunpack.c.l.b16 %v4487
      %v4685 = vunpack.c.l.b16 %v4497
      %v4686 = vunpack.c.l.b16 %v4511
      %v4687 = vunpack.c.l.b16 %v4521
      %v4688 = vunpack.c.l.b16 %v4535
      %v4689 = vunpack.c.l.b16 %v4545
      %v4690 = vunpack.c.l.b16 %v4559
      %v4691 = vunpack.c.l.b16 %v4569
      %v4692 = vunpack.c.l.b16 %v4583
      %v4693 = vunpack.c.l.b16 %v4593
      %v4694 = vunpack.c.l.b16 %v4607
      %v4695 = vunpack.c.l.b16 %v4617
      %v4696 = vunpack.c.l.b16 %v4631
      %v4697 = vunpack.c.l.b16 %v4641
      %v4698 = vunpack.c.l.b16 %v4655
      %v4699 = vunpack.c.l.b16 %v4665
      %v4700 = vpack.c.b16 %v4669, %v4668
      %v4701 = vpack.c.b16 %v4671, %v4670
      %v4702 = vpack.c.b16 %v4673, %v4672
      %v4703 = vpack.c.b16 %v4675, %v4674
      %v4704 = vpack.c.b16 %v4677, %v4676
      %v4705 = vpack.c.b16 %v4679, %v4678
      %v4706 = vpack.c.b16 %v4681, %v4680
      %v4707 = vpack.c.b16 %v4683, %v4682
      %v4708 = vpack.c.b16 %v4685, %v4684
      %v4709 = vpack.c.b16 %v4687, %v4686
      %v4710 = vpack.c.b16 %v4689, %v4688
      %v4711 = vpack.c.b16 %v4691, %v4690
      %v4712 = vpack.c.b16 %v4693, %v4692
      %v4713 = vpack.c.b16 %v4695, %v4694
      %v4714 = vpack.c.b16 %v4697, %v4696
      %v4715 = vpack.c.b16 %v4699, %v4698
      %v4717 = vsel %vm360, %v4700, 0
      %v4720 = vsel %vm360, %v4701, 0
      %v4723 = vsel %vm360, %v4702, 0
      %v4726 = vsel %vm360, %v4703, 0
      %v4729 = vsel %vm360, %v4704, 0
      %v4732 = vsel %vm360, %v4705, 0
      %v4735 = vsel %vm360, %v4706, 0
      %v4738 = vsel %vm360, %v4707, 0
      %v4741 = vsel %vm360, %v4708, 0
      %v4744 = vsel %vm360, %v4709, 0
      %v4747 = vsel %vm360, %v4710, 0
      %v4750 = vsel %vm360, %v4711, 0
      %v4753 = vsel %vm360, %v4712, 0
      %v4756 = vsel %vm360, %v4713, 0
      %v4759 = vsel %vm360, %v4714, 0
      %v4762 = vsel %vm360, %v4715, 0
      %v4765 = vsel %vm409, %v4667, 0
      %4767 = vmatprep.subr.bf16.mxu0 0
      %4768 = vmatpush1.bf16.msra.mxu0 0
      %4769 = vmatprep.subr.bf16.mxu0 0
      %4770 = vmatpush1.bf16.msra.mxu0 0
      %4771 = vmatprep.subr.bf16.mxu0 0
      %4772 = vmatpush1.bf16.msra.mxu0 0
      %4773 = vmatprep.subr.bf16.mxu0 0
      %4774 = vmatpush1.bf16.msra.mxu0 0
      %4775 = vmatprep.subr.bf16.mxu0 0
      %4776 = vmatpush1.bf16.msra.mxu0 0
      %4777 = vmatprep.subr.bf16.mxu0 0
      %4778 = vmatpush1.bf16.msra.mxu0 0
      %4779 = vmatprep.subr.bf16.mxu0 0
      %4780 = vmatpush1.bf16.msra.mxu0 0
      %4781 = vmatprep.subr.bf16.mxu0 0
      %4782 = vmatpush1.bf16.msra.mxu0 %v4765
      %4783 = vmatprep.subr.bf16.mxu0 0
      %4784 = vmatpush2.bf16.msra.mxu0 0
      %4785 = vmatprep.subr.bf16.mxu0 0
      %4786 = vmatpush2.bf16.msra.mxu0 0
      %4787 = vmatprep.subr.bf16.mxu0 0
      %4788 = vmatpush2.bf16.msra.mxu0 0
      %4789 = vmatprep.subr.bf16.mxu0 0
      %4790 = vmatpush2.bf16.msra.mxu0 0
      %4791 = vmatprep.subr.bf16.mxu0 0
      %4792 = vmatpush2.bf16.msra.mxu0 0
      %4793 = vmatprep.subr.bf16.mxu0 0
      %4794 = vmatpush2.bf16.msra.mxu0 0
      %4795 = vmatprep.subr.bf16.mxu0 0
      %4796 = vmatpush2.bf16.msra.mxu0 0
      %4797 = vmatprep.subr.bf16.mxu0 0
      %4798 = vmatpush2.bf16.msra.mxu0 0
      %4799 = vmatprep.mubr.bf16.mxu0 0
      %4800 = vmatmul.mubr.bf16.gmra.mxu0 %v4717
      %v4801 = vpop.f32.mrf.mxu0
      %v4802 = vadd.f32 0.0, %v4801
      %v4803 = vpop.f32.mrf.mxu0
      %v4804 = vpop.f32.mrf.mxu0
      %v4805 = vadd.f32 0.0, %v4804
      %v4806 = vpop.f32.mrf.mxu0
      %4807 = vmatprep.mubr.bf16.mxu0 0
      %4808 = vmatmul.mubr.bf16.gmra.mxu0 %v4720
      %v4809 = vpop.f32.mrf.mxu0
      %v4810 = vadd.f32 0.0, %v4809
      %v4811 = vpop.f32.mrf.mxu0
      %v4812 = vpop.f32.mrf.mxu0
      %v4813 = vadd.f32 0.0, %v4812
      %v4814 = vpop.f32.mrf.mxu0
      %4815 = vmatprep.mubr.bf16.mxu0 0
      %4816 = vmatmul.mubr.bf16.gmra.mxu0 %v4723
      %v4817 = vpop.f32.mrf.mxu0
      %v4818 = vadd.f32 0.0, %v4817
      %v4819 = vpop.f32.mrf.mxu0
      %v4820 = vpop.f32.mrf.mxu0
      %v4821 = vadd.f32 0.0, %v4820
      %v4822 = vpop.f32.mrf.mxu0
      %4823 = vmatprep.mubr.bf16.mxu0 0
      %4824 = vmatmul.mubr.bf16.gmra.mxu0 %v4726
      %v4825 = vpop.f32.mrf.mxu0
      %v4826 = vadd.f32 0.0, %v4825
      %v4827 = vpop.f32.mrf.mxu0
      %v4828 = vpop.f32.mrf.mxu0
      %v4829 = vadd.f32 0.0, %v4828
      %v4830 = vpop.f32.mrf.mxu0
      %4831 = vmatprep.mubr.bf16.mxu0 0
      %4832 = vmatmul.mubr.bf16.gmra.mxu0 %v4729
      %v4833 = vpop.f32.mrf.mxu0
      %v4834 = vadd.f32 0.0, %v4833
      %v4835 = vpop.f32.mrf.mxu0
      %v4836 = vpop.f32.mrf.mxu0
      %v4837 = vadd.f32 0.0, %v4836
      %v4838 = vpop.f32.mrf.mxu0
      %4839 = vmatprep.mubr.bf16.mxu0 0
      %4840 = vmatmul.mubr.bf16.gmra.mxu0 %v4732
      %v4841 = vpop.f32.mrf.mxu0
      %v4842 = vadd.f32 0.0, %v4841
      %v4843 = vpop.f32.mrf.mxu0
      %v4844 = vpop.f32.mrf.mxu0
      %v4845 = vadd.f32 0.0, %v4844
      %v4846 = vpop.f32.mrf.mxu0
      %4847 = vmatprep.mubr.bf16.mxu0 0
      %4848 = vmatmul.mubr.bf16.gmra.mxu0 %v4735
      %v4849 = vpop.f32.mrf.mxu0
      %v4850 = vadd.f32 0.0, %v4849
      %v4851 = vpop.f32.mrf.mxu0
      %v4852 = vpop.f32.mrf.mxu0
      %v4853 = vadd.f32 0.0, %v4852
      %v4854 = vpop.f32.mrf.mxu0
      %4855 = vmatprep.mubr.bf16.mxu0 0
      %4856 = vmatmul.mubr.bf16.gmra.mxu0 %v4738
      %v4857 = vpop.f32.mrf.mxu0
      %v4858 = vadd.f32 0.0, %v4857
      %v4859 = vpop.f32.mrf.mxu0
      %v4860 = vpop.f32.mrf.mxu0
      %v4861 = vadd.f32 0.0, %v4860
      %v4862 = vpop.f32.mrf.mxu0
      %4863 = vmatprep.mubr.bf16.mxu0 0
      %4864 = vmatmul.mubr.bf16.gmra.mxu0 %v4741
      %v4865 = vpop.f32.mrf.mxu0
      %v4866 = vadd.f32 0.0, %v4865
      %v4867 = vpop.f32.mrf.mxu0
      %v4868 = vpop.f32.mrf.mxu0
      %v4869 = vadd.f32 0.0, %v4868
      %v4870 = vpop.f32.mrf.mxu0
      %4871 = vmatprep.mubr.bf16.mxu0 0
      %4872 = vmatmul.mubr.bf16.gmra.mxu0 %v4744
      %v4873 = vpop.f32.mrf.mxu0
      %v4874 = vadd.f32 0.0, %v4873
      %v4875 = vpop.f32.mrf.mxu0
      %v4876 = vpop.f32.mrf.mxu0
      %v4877 = vadd.f32 0.0, %v4876
      %v4878 = vpop.f32.mrf.mxu0
      %4879 = vmatprep.mubr.bf16.mxu0 0
      %4880 = vmatmul.mubr.bf16.gmra.mxu0 %v4747
      %v4881 = vpop.f32.mrf.mxu0
      %v4882 = vadd.f32 0.0, %v4881
      %v4883 = vpop.f32.mrf.mxu0
      %v4884 = vpop.f32.mrf.mxu0
      %v4885 = vadd.f32 0.0, %v4884
      %v4886 = vpop.f32.mrf.mxu0
      %4887 = vmatprep.mubr.bf16.mxu0 0
      %4888 = vmatmul.mubr.bf16.gmra.mxu0 %v4750
      %v4889 = vpop.f32.mrf.mxu0
      %v4890 = vadd.f32 0.0, %v4889
      %v4891 = vpop.f32.mrf.mxu0
      %v4892 = vpop.f32.mrf.mxu0
      %v4893 = vadd.f32 0.0, %v4892
      %v4894 = vpop.f32.mrf.mxu0
      %4895 = vmatprep.mubr.bf16.mxu0 0
      %4896 = vmatmul.mubr.bf16.gmra.mxu0 %v4753
      %v4897 = vpop.f32.mrf.mxu0
      %v4898 = vadd.f32 0.0, %v4897
      %v4899 = vpop.f32.mrf.mxu0
      %v4900 = vpop.f32.mrf.mxu0
      %v4901 = vadd.f32 0.0, %v4900
      %v4902 = vpop.f32.mrf.mxu0
      %4903 = vmatprep.mubr.bf16.mxu0 0
      %4904 = vmatmul.mubr.bf16.gmra.mxu0 %v4756
      %v4905 = vpop.f32.mrf.mxu0
      %v4906 = vadd.f32 0.0, %v4905
      %v4907 = vpop.f32.mrf.mxu0
      %v4908 = vpop.f32.mrf.mxu0
      %v4909 = vadd.f32 0.0, %v4908
      %v4910 = vpop.f32.mrf.mxu0
      %4911 = vmatprep.mubr.bf16.mxu0 0
      %4912 = vmatmul.mubr.bf16.gmra.mxu0 %v4759
      %v4913 = vpop.f32.mrf.mxu0
      %v4914 = vadd.f32 0.0, %v4913
      %v4915 = vpop.f32.mrf.mxu0
      %v4916 = vpop.f32.mrf.mxu0
      %v4917 = vadd.f32 0.0, %v4916
      %v4918 = vpop.f32.mrf.mxu0
      %4919 = vmatprep.mubr.bf16.mxu0 0
      %4920 = vmatmul.mubr.bf16.gmra.mxu0 %v4762
      %v4921 = vpop.f32.mrf.mxu0
      %v4922 = vadd.f32 0.0, %v4921
      %v4923 = vpop.f32.mrf.mxu0
      %v4924 = vpop.f32.mrf.mxu0
      %v4925 = vadd.f32 0.0, %v4924
      %v4926 = vpop.f32.mrf.mxu0
      %4927 = vdwg.mxu0
      %v4928 = vadd.f32 %v4250, %v4802
      %v4929 = vadd.f32 %v4251, %v4805
      %v4930 = vadd.f32 %v4252, %v4810
      %v4931 = vadd.f32 %v4253, %v4813
      %v4932 = vadd.f32 %v4254, %v4818
      %v4933 = vadd.f32 %v4255, %v4821
      %v4934 = vadd.f32 %v4256, %v4826
      %v4935 = vadd.f32 %v4257, %v4829
      %v4936 = vadd.f32 %v4258, %v4834
      %v4937 = vadd.f32 %v4259, %v4837
      %v4938 = vadd.f32 %v4260, %v4842
      %v4939 = vadd.f32 %v4261, %v4845
      %v4940 = vadd.f32 %v4262, %v4850
      %v4941 = vadd.f32 %v4263, %v4853
      %v4942 = vadd.f32 %v4264, %v4858
      %v4943 = vadd.f32 %v4265, %v4861
      %v4944 = vadd.f32 %v4266, %v4866
      %v4945 = vadd.f32 %v4267, %v4869
      %v4946 = vadd.f32 %v4268, %v4874
      %v4947 = vadd.f32 %v4269, %v4877
      %v4948 = vadd.f32 %v4270, %v4882
      %v4949 = vadd.f32 %v4271, %v4885
      %v4950 = vadd.f32 %v4272, %v4890
      %v4951 = vadd.f32 %v4273, %v4893
      %v4952 = vadd.f32 %v4274, %v4898
      %v4953 = vadd.f32 %v4275, %v4901
      %v4954 = vadd.f32 %v4276, %v4906
      %v4955 = vadd.f32 %v4277, %v4909
      %v4956 = vadd.f32 %v4278, %v4914
      %v4957 = vadd.f32 %v4279, %v4917
      %v4958 = vadd.f32 %v4280, %v4922
      %v4959 = vadd.f32 %v4281, %v4925
      %4960 = vst [vmem:[#allocation2] sm:$0xff] %v4928
      %4961 = vst [vmem:[#allocation2 + $0x8] sm:$0xff] %v4929
      %4962 = vst [vmem:[#allocation2 + $0x10] sm:$0xff] %v4930
      %4963 = vst [vmem:[#allocation2 + $0x18] sm:$0xff] %v4931
      %4964 = vst [vmem:[#allocation2 + $0x20] sm:$0xff] %v4932
      %4965 = vst [vmem:[#allocation2 + $0x28] sm:$0xff] %v4933
      %4966 = vst [vmem:[#allocation2 + $0x30] sm:$0xff] %v4934
      %4967 = vst [vmem:[#allocation2 + $0x38] sm:$0xff] %v4935
      %4968 = vst [vmem:[#allocation2 + $0x40] sm:$0xff] %v4936
      %4969 = vst [vmem:[#allocation2 + $0x48] sm:$0xff] %v4937
      %4970 = vst [vmem:[#allocation2 + $0x50] sm:$0xff] %v4938
      %4971 = vst [vmem:[#allocation2 + $0x58] sm:$0xff] %v4939
      %4972 = vst [vmem:[#allocation2 + $0x60] sm:$0xff] %v4940
      %4973 = vst [vmem:[#allocation2 + $0x68] sm:$0xff] %v4941
      %4974 = vst [vmem:[#allocation2 + $0x70] sm:$0xff] %v4942
      %4975 = vst [vmem:[#allocation2 + $0x78] sm:$0xff] %v4943
      %4976 = vst [vmem:[#allocation2 + $0x80] sm:$0xff] %v4944
      %4977 = vst [vmem:[#allocation2 + $0x88] sm:$0xff] %v4945
      %4978 = vst [vmem:[#allocation2 + $0x90] sm:$0xff] %v4946
      %4979 = vst [vmem:[#allocation2 + $0x98] sm:$0xff] %v4947
      %4980 = vst [vmem:[#allocation2 + $0xa0] sm:$0xff] %v4948
      %4981 = vst [vmem:[#allocation2 + $0xa8] sm:$0xff] %v4949
      %4982 = vst [vmem:[#allocation2 + $0xb0] sm:$0xff] %v4950
      %4983 = vst [vmem:[#allocation2 + $0xb8] sm:$0xff] %v4951
      %4984 = vst [vmem:[#allocation2 + $0xc0] sm:$0xff] %v4952
      %4985 = vst [vmem:[#allocation2 + $0xc8] sm:$0xff] %v4953
      %4986 = vst [vmem:[#allocation2 + $0xd0] sm:$0xff] %v4954
      %4987 = vst [vmem:[#allocation2 + $0xd8] sm:$0xff] %v4955
      %4988 = vst [vmem:[#allocation2 + $0xe0] sm:$0xff] %v4956
      %4989 = vst [vmem:[#allocation2 + $0xe8] sm:$0xff] %v4957
      %4990 = vst [vmem:[#allocation2 + $0xf0] sm:$0xff] %v4958
      %4991 = vst [vmem:[#allocation2 + $0xf8] sm:$0xff] %v4959
      %v4992 = vld [vmem:[%s3779] sm:$0xe]
      %v4993 = vld [vmem:[%s3779 + $0x4] sm:$0xf]
      %v4994 = vld [vmem:[%s3779 + $0x8] sm:$0x1]
      %v4995 = vld [vmem:[%s3779 + $0xc] sm:$0xe]
      %v4996 = vld [vmem:[%s3779 + $0x10] sm:$0xf]
      %v4997 = vld [vmem:[%s3779 + $0x14] sm:$0x1]
      %v4998 = vld [vmem:[%s3779 + $0x18] sm:$0xe]
      %v4999 = vld [vmem:[%s3779 + $0x1c] sm:$0xf]
      %v5000 = vld [vmem:[%s3779 + $0x20] sm:$0x1]
      %v5001 = vld [vmem:[%s3779 + $0x24] sm:$0xe]
      %v5002 = vld [vmem:[%s3779 + $0x28] sm:$0xf]
      %v5003 = vld [vmem:[%s3779 + $0x2c] sm:$0x1]
      %v5004 = vld [vmem:[%s3779 + $0x30] sm:$0xe]
      %v5005 = vld [vmem:[%s3779 + $0x34] sm:$0xf]
      %v5006 = vld [vmem:[%s3779 + $0x38] sm:$0x1]
      %v5007 = vld [vmem:[%s3779 + $0x3c] sm:$0xe]
      %v5008 = vld [vmem:[%s3779 + $0x40] sm:$0xf]
      %v5009 = vld [vmem:[%s3779 + $0x44] sm:$0x1]
      %v5010 = vld [vmem:[%s3779 + $0x48] sm:$0xe]
      %v5011 = vld [vmem:[%s3779 + $0x4c] sm:$0xf]
      %v5012 = vld [vmem:[%s3779 + $0x50] sm:$0x1]
      %v5013 = vld [vmem:[%s3779 + $0x54] sm:$0xe]
      %v5014 = vld [vmem:[%s3779 + $0x58] sm:$0xf]
      %v5015 = vld [vmem:[%s3779 + $0x5c] sm:$0x1]
      %v5016 = vld [vmem:[%s3779 + $0x60] sm:$0xe]
      %v5017 = vld [vmem:[%s3779 + $0x64] sm:$0xf]
      %v5018 = vld [vmem:[%s3779 + $0x68] sm:$0x1]
      %v5019 = vld [vmem:[%s3779 + $0x6c] sm:$0xe]
      %v5020 = vld [vmem:[%s3779 + $0x70] sm:$0xf]
      %v5021 = vld [vmem:[%s3779 + $0x74] sm:$0x1]
      %v5022 = vld [vmem:[%s3779 + $0x78] sm:$0xe]
      %v5023 = vld [vmem:[%s3779 + $0x7c] sm:$0xf]
      %v5024 = vld [vmem:[%s3779 + $0x80] sm:$0x1]
      %v5025 = vld [vmem:[%s3779 + $0x84] sm:$0xe]
      %v5026 = vld [vmem:[%s3779 + $0x88] sm:$0xf]
      %v5027 = vld [vmem:[%s3779 + $0x8c] sm:$0x1]
      %v5028 = vld [vmem:[%s3779 + $0x90] sm:$0xe]
      %v5029 = vld [vmem:[%s3779 + $0x94] sm:$0xf]
      %v5030 = vld [vmem:[%s3779 + $0x98] sm:$0x1]
      %v5031 = vld [vmem:[%s3779 + $0x9c] sm:$0xe]
      %v5032 = vld [vmem:[%s3779 + $0xa0] sm:$0xf]
      %v5033 = vld [vmem:[%s3779 + $0xa4] sm:$0x1]
      %v5034 = vld [vmem:[%s3779 + $0xa8] sm:$0xe]
      %v5035 = vld [vmem:[%s3779 + $0xac] sm:$0xf]
      %v5036 = vld [vmem:[%s3779 + $0xb0] sm:$0x1]
      %v5037 = vld [vmem:[%s3779 + $0xb4] sm:$0xe]
      %v5038 = vld [vmem:[%s3779 + $0xb8] sm:$0xf]
      %v5039 = vld [vmem:[%s3779 + $0xbc] sm:$0x1]
      %v5040 = vld [vmem:[#allocation2] sm:$0xff]
      %v5041 = vld [vmem:[#allocation2 + $0x8] sm:$0xff]
      %v5042 = vld [vmem:[#allocation2 + $0x10] sm:$0xff]
      %v5043 = vld [vmem:[#allocation2 + $0x18] sm:$0xff]
      %v5044 = vld [vmem:[#allocation2 + $0x20] sm:$0xff]
      %v5045 = vld [vmem:[#allocation2 + $0x28] sm:$0xff]
      %v5046 = vld [vmem:[#allocation2 + $0x30] sm:$0xff]
      %v5047 = vld [vmem:[#allocation2 + $0x38] sm:$0xff]
      %v5048 = vld [vmem:[#allocation2 + $0x40] sm:$0xff]
      %v5049 = vld [vmem:[#allocation2 + $0x48] sm:$0xff]
      %v5050 = vld [vmem:[#allocation2 + $0x50] sm:$0xff]
      %v5051 = vld [vmem:[#allocation2 + $0x58] sm:$0xff]
      %v5052 = vld [vmem:[#allocation2 + $0x60] sm:$0xff]
      %v5053 = vld [vmem:[#allocation2 + $0x68] sm:$0xff]
      %v5054 = vld [vmem:[#allocation2 + $0x70] sm:$0xff]
      %v5055 = vld [vmem:[#allocation2 + $0x78] sm:$0xff]
      %v5056 = vld [vmem:[#allocation2 + $0x80] sm:$0xff]
      %v5057 = vld [vmem:[#allocation2 + $0x88] sm:$0xff]
      %v5058 = vld [vmem:[#allocation2 + $0x90] sm:$0xff]
      %v5059 = vld [vmem:[#allocation2 + $0x98] sm:$0xff]
      %v5060 = vld [vmem:[#allocation2 + $0xa0] sm:$0xff]
      %v5061 = vld [vmem:[#allocation2 + $0xa8] sm:$0xff]
      %v5062 = vld [vmem:[#allocation2 + $0xb0] sm:$0xff]
      %v5063 = vld [vmem:[#allocation2 + $0xb8] sm:$0xff]
      %v5064 = vld [vmem:[#allocation2 + $0xc0] sm:$0xff]
      %v5065 = vld [vmem:[#allocation2 + $0xc8] sm:$0xff]
      %v5066 = vld [vmem:[#allocation2 + $0xd0] sm:$0xff]
      %v5067 = vld [vmem:[#allocation2 + $0xd8] sm:$0xff]
      %v5068 = vld [vmem:[#allocation2 + $0xe0] sm:$0xff]
      %v5069 = vld [vmem:[#allocation2 + $0xe8] sm:$0xff]
      %v5070 = vld [vmem:[#allocation2 + $0xf0] sm:$0xff]
      %v5071 = vld [vmem:[#allocation2 + $0xf8] sm:$0xff]
      %v5120 = vrot.slane %v4992, 5
      %v5121 = vrot.slane %v5120, 4
      %v5122 = vrot.slane %v4993, 5
      %v5123 = vsel %vm1561, %v5121, %v5122
      %v5124 = vrot.slane %v5122, 4
      %v5125 = vrot.slane %v4994, 5
      %v5126 = vsel %vm1561, %v5124, %v5125
      %v5127 = vrot.slane %v4995, 5
      %v5128 = vrot.slane %v5127, 4
      %v5129 = vrot.slane %v4996, 5
      %v5130 = vsel %vm1561, %v5128, %v5129
      %v5131 = vrot.slane %v5129, 4
      %v5132 = vrot.slane %v4997, 5
      %v5133 = vsel %vm1561, %v5131, %v5132
      %v5134 = vrot.slane %v4998, 5
      %v5135 = vrot.slane %v5134, 4
      %v5136 = vrot.slane %v4999, 5
      %v5137 = vsel %vm1561, %v5135, %v5136
      %v5138 = vrot.slane %v5136, 4
      %v5139 = vrot.slane %v5000, 5
      %v5140 = vsel %vm1561, %v5138, %v5139
      %v5141 = vrot.slane %v5001, 5
      %v5142 = vrot.slane %v5141, 4
      %v5143 = vrot.slane %v5002, 5
      %v5144 = vsel %vm1561, %v5142, %v5143
      %v5145 = vrot.slane %v5143, 4
      %v5146 = vrot.slane %v5003, 5
      %v5147 = vsel %vm1561, %v5145, %v5146
      %v5148 = vrot.slane %v5004, 5
      %v5149 = vrot.slane %v5148, 4
      %v5150 = vrot.slane %v5005, 5
      %v5151 = vsel %vm1561, %v5149, %v5150
      %v5152 = vrot.slane %v5150, 4
      %v5153 = vrot.slane %v5006, 5
      %v5154 = vsel %vm1561, %v5152, %v5153
      %v5155 = vrot.slane %v5007, 5
      %v5156 = vrot.slane %v5155, 4
      %v5157 = vrot.slane %v5008, 5
      %v5158 = vsel %vm1561, %v5156, %v5157
      %v5159 = vrot.slane %v5157, 4
      %v5160 = vrot.slane %v5009, 5
      %v5161 = vsel %vm1561, %v5159, %v5160
      %v5162 = vrot.slane %v5010, 5
      %v5163 = vrot.slane %v5162, 4
      %v5164 = vrot.slane %v5011, 5
      %v5165 = vsel %vm1561, %v5163, %v5164
      %v5166 = vrot.slane %v5164, 4
      %v5167 = vrot.slane %v5012, 5
      %v5168 = vsel %vm1561, %v5166, %v5167
      %v5169 = vrot.slane %v5013, 5
      %v5170 = vrot.slane %v5169, 4
      %v5171 = vrot.slane %v5014, 5
      %v5172 = vsel %vm1561, %v5170, %v5171
      %v5173 = vrot.slane %v5171, 4
      %v5174 = vrot.slane %v5015, 5
      %v5175 = vsel %vm1561, %v5173, %v5174
      %v5176 = vrot.slane %v5016, 5
      %v5177 = vrot.slane %v5176, 4
      %v5178 = vrot.slane %v5017, 5
      %v5179 = vsel %vm1561, %v5177, %v5178
      %v5180 = vrot.slane %v5178, 4
      %v5181 = vrot.slane %v5018, 5
      %v5182 = vsel %vm1561, %v5180, %v5181
      %v5183 = vrot.slane %v5019, 5
      %v5184 = vrot.slane %v5183, 4
      %v5185 = vrot.slane %v5020, 5
      %v5186 = vsel %vm1561, %v5184, %v5185
      %v5187 = vrot.slane %v5185, 4
      %v5188 = vrot.slane %v5021, 5
      %v5189 = vsel %vm1561, %v5187, %v5188
      %v5190 = vrot.slane %v5022, 5
      %v5191 = vrot.slane %v5190, 4
      %v5192 = vrot.slane %v5023, 5
      %v5193 = vsel %vm1561, %v5191, %v5192
      %v5194 = vrot.slane %v5192, 4
      %v5195 = vrot.slane %v5024, 5
      %v5196 = vsel %vm1561, %v5194, %v5195
      %v5197 = vrot.slane %v5025, 5
      %v5198 = vrot.slane %v5197, 4
      %v5199 = vrot.slane %v5026, 5
      %v5200 = vsel %vm1561, %v5198, %v5199
      %v5201 = vrot.slane %v5199, 4
      %v5202 = vrot.slane %v5027, 5
      %v5203 = vsel %vm1561, %v5201, %v5202
      %v5204 = vrot.slane %v5028, 5
      %v5205 = vrot.slane %v5204, 4
      %v5206 = vrot.slane %v5029, 5
      %v5207 = vsel %vm1561, %v5205, %v5206
      %v5208 = vrot.slane %v5206, 4
      %v5209 = vrot.slane %v5030, 5
      %v5210 = vsel %vm1561, %v5208, %v5209
      %v5211 = vrot.slane %v5031, 5
      %v5212 = vrot.slane %v5211, 4
      %v5213 = vrot.slane %v5032, 5
      %v5214 = vsel %vm1561, %v5212, %v5213
      %v5215 = vrot.slane %v5213, 4
      %v5216 = vrot.slane %v5033, 5
      %v5217 = vsel %vm1561, %v5215, %v5216
      %v5218 = vrot.slane %v5034, 5
      %v5219 = vrot.slane %v5218, 4
      %v5220 = vrot.slane %v5035, 5
      %v5221 = vsel %vm1561, %v5219, %v5220
      %v5222 = vrot.slane %v5220, 4
      %v5223 = vrot.slane %v5036, 5
      %v5224 = vsel %vm1561, %v5222, %v5223
      %v5225 = vrot.slane %v5037, 5
      %v5226 = vrot.slane %v5225, 4
      %v5227 = vrot.slane %v5038, 5
      %v5228 = vsel %vm1561, %v5226, %v5227
      %v5229 = vrot.slane %v5227, 4
      %v5230 = vrot.slane %v5039, 5
      %v5231 = vsel %vm1561, %v5229, %v5230
      %s5232 = scalar_lea.vmem %s1, 16
      %v5233 = vld [vmem:[%s5232] sm:$0x3]
      %v5234 = vunpack.c.l.b16 %v5123
      %v5235 = vunpack.c.l.b16 %v5126
      %v5236 = vunpack.c.l.b16 %v5130
      %v5237 = vunpack.c.l.b16 %v5133
      %v5238 = vunpack.c.l.b16 %v5137
      %v5239 = vunpack.c.l.b16 %v5140
      %v5240 = vunpack.c.l.b16 %v5144
      %v5241 = vunpack.c.l.b16 %v5147
      %v5242 = vunpack.c.l.b16 %v5151
      %v5243 = vunpack.c.l.b16 %v5154
      %v5244 = vunpack.c.l.b16 %v5158
      %v5245 = vunpack.c.l.b16 %v5161
      %v5246 = vunpack.c.l.b16 %v5165
      %v5247 = vunpack.c.l.b16 %v5168
      %v5248 = vunpack.c.l.b16 %v5172
      %v5249 = vunpack.c.l.b16 %v5175
      %v5250 = vunpack.c.l.b16 %v5179
      %v5251 = vunpack.c.l.b16 %v5182
      %v5252 = vunpack.c.l.b16 %v5186
      %v5253 = vunpack.c.l.b16 %v5189
      %v5254 = vunpack.c.l.b16 %v5193
      %v5255 = vunpack.c.l.b16 %v5196
      %v5256 = vunpack.c.l.b16 %v5200
      %v5257 = vunpack.c.l.b16 %v5203
      %v5258 = vunpack.c.l.b16 %v5207
      %v5259 = vunpack.c.l.b16 %v5210
      %v5260 = vunpack.c.l.b16 %v5214
      %v5261 = vunpack.c.l.b16 %v5217
      %v5262 = vunpack.c.l.b16 %v5221
      %v5263 = vunpack.c.l.b16 %v5224
      %v5264 = vunpack.c.l.b16 %v5228
      %v5265 = vunpack.c.l.b16 %v5231
      %v5266 = vpack.c.b16 %v5235, %v5234
      %v5267 = vpack.c.b16 %v5237, %v5236
      %v5268 = vpack.c.b16 %v5239, %v5238
      %v5269 = vpack.c.b16 %v5241, %v5240
      %v5270 = vpack.c.b16 %v5243, %v5242
      %v5271 = vpack.c.b16 %v5245, %v5244
      %v5272 = vpack.c.b16 %v5247, %v5246
      %v5273 = vpack.c.b16 %v5249, %v5248
      %v5274 = vpack.c.b16 %v5251, %v5250
      %v5275 = vpack.c.b16 %v5253, %v5252
      %v5276 = vpack.c.b16 %v5255, %v5254
      %v5277 = vpack.c.b16 %v5257, %v5256
      %v5278 = vpack.c.b16 %v5259, %v5258
      %v5279 = vpack.c.b16 %v5261, %v5260
      %v5280 = vpack.c.b16 %v5263, %v5262
      %v5281 = vpack.c.b16 %v5265, %v5264
      %v5283 = vsel %vm360, %v5266, 0
      %v5286 = vsel %vm360, %v5267, 0
      %v5289 = vsel %vm360, %v5268, 0
      %v5292 = vsel %vm360, %v5269, 0
      %v5295 = vsel %vm360, %v5270, 0
      %v5298 = vsel %vm360, %v5271, 0
      %v5301 = vsel %vm360, %v5272, 0
      %v5304 = vsel %vm360, %v5273, 0
      %v5307 = vsel %vm360, %v5274, 0
      %v5310 = vsel %vm360, %v5275, 0
      %v5313 = vsel %vm360, %v5276, 0
      %v5316 = vsel %vm360, %v5277, 0
      %v5319 = vsel %vm360, %v5278, 0
      %v5322 = vsel %vm360, %v5279, 0
      %v5325 = vsel %vm360, %v5280, 0
      %v5328 = vsel %vm360, %v5281, 0
      %v5331 = vsel %vm409, %v5233, 0
      %5333 = vmatprep.subr.bf16.mxu0 0
      %5334 = vmatpush1.bf16.msra.mxu0 0
      %5335 = vmatprep.subr.bf16.mxu0 0
      %5336 = vmatpush1.bf16.msra.mxu0 0
      %5337 = vmatprep.subr.bf16.mxu0 0
      %5338 = vmatpush1.bf16.msra.mxu0 0
      %5339 = vmatprep.subr.bf16.mxu0 0
      %5340 = vmatpush1.bf16.msra.mxu0 0
      %5341 = vmatprep.subr.bf16.mxu0 0
      %5342 = vmatpush1.bf16.msra.mxu0 0
      %5343 = vmatprep.subr.bf16.mxu0 0
      %5344 = vmatpush1.bf16.msra.mxu0 0
      %5345 = vmatprep.subr.bf16.mxu0 0
      %5346 = vmatpush1.bf16.msra.mxu0 0
      %5347 = vmatprep.subr.bf16.mxu0 0
      %5348 = vmatpush1.bf16.msra.mxu0 %v5331
      %5349 = vmatprep.subr.bf16.mxu0 0
      %5350 = vmatpush2.bf16.msra.mxu0 0
      %5351 = vmatprep.subr.bf16.mxu0 0
      %5352 = vmatpush2.bf16.msra.mxu0 0
      %5353 = vmatprep.subr.bf16.mxu0 0
      %5354 = vmatpush2.bf16.msra.mxu0 0
      %5355 = vmatprep.subr.bf16.mxu0 0
      %5356 = vmatpush2.bf16.msra.mxu0 0
      %5357 = vmatprep.subr.bf16.mxu0 0
      %5358 = vmatpush2.bf16.msra.mxu0 0
      %5359 = vmatprep.subr.bf16.mxu0 0
      %5360 = vmatpush2.bf16.msra.mxu0 0
      %5361 = vmatprep.subr.bf16.mxu0 0
      %5362 = vmatpush2.bf16.msra.mxu0 0
      %5363 = vmatprep.subr.bf16.mxu0 0
      %5364 = vmatpush2.bf16.msra.mxu0 0
      %5365 = vmatprep.mubr.bf16.mxu0 0
      %5366 = vmatmul.mubr.bf16.gmra.mxu0 %v5283
      %v5367 = vpop.f32.mrf.mxu0
      %v5368 = vadd.f32 0.0, %v5367
      %v5369 = vpop.f32.mrf.mxu0
      %v5370 = vpop.f32.mrf.mxu0
      %v5371 = vadd.f32 0.0, %v5370
      %v5372 = vpop.f32.mrf.mxu0
      %5373 = vmatprep.mubr.bf16.mxu0 0
      %5374 = vmatmul.mubr.bf16.gmra.mxu0 %v5286
      %v5375 = vpop.f32.mrf.mxu0
      %v5376 = vadd.f32 0.0, %v5375
      %v5377 = vpop.f32.mrf.mxu0
      %v5378 = vpop.f32.mrf.mxu0
      %v5379 = vadd.f32 0.0, %v5378
      %v5380 = vpop.f32.mrf.mxu0
      %5381 = vmatprep.mubr.bf16.mxu0 0
      %5382 = vmatmul.mubr.bf16.gmra.mxu0 %v5289
      %v5383 = vpop.f32.mrf.mxu0
      %v5384 = vadd.f32 0.0, %v5383
      %v5385 = vpop.f32.mrf.mxu0
      %v5386 = vpop.f32.mrf.mxu0
      %v5387 = vadd.f32 0.0, %v5386
      %v5388 = vpop.f32.mrf.mxu0
      %5389 = vmatprep.mubr.bf16.mxu0 0
      %5390 = vmatmul.mubr.bf16.gmra.mxu0 %v5292
      %v5391 = vpop.f32.mrf.mxu0
      %v5392 = vadd.f32 0.0, %v5391
      %v5393 = vpop.f32.mrf.mxu0
      %v5394 = vpop.f32.mrf.mxu0
      %v5395 = vadd.f32 0.0, %v5394
      %v5396 = vpop.f32.mrf.mxu0
      %5397 = vmatprep.mubr.bf16.mxu0 0
      %5398 = vmatmul.mubr.bf16.gmra.mxu0 %v5295
      %v5399 = vpop.f32.mrf.mxu0
      %v5400 = vadd.f32 0.0, %v5399
      %v5401 = vpop.f32.mrf.mxu0
      %v5402 = vpop.f32.mrf.mxu0
      %v5403 = vadd.f32 0.0, %v5402
      %v5404 = vpop.f32.mrf.mxu0
      %5405 = vmatprep.mubr.bf16.mxu0 0
      %5406 = vmatmul.mubr.bf16.gmra.mxu0 %v5298
      %v5407 = vpop.f32.mrf.mxu0
      %v5408 = vadd.f32 0.0, %v5407
      %v5409 = vpop.f32.mrf.mxu0
      %v5410 = vpop.f32.mrf.mxu0
      %v5411 = vadd.f32 0.0, %v5410
      %v5412 = vpop.f32.mrf.mxu0
      %5413 = vmatprep.mubr.bf16.mxu0 0
      %5414 = vmatmul.mubr.bf16.gmra.mxu0 %v5301
      %v5415 = vpop.f32.mrf.mxu0
      %v5416 = vadd.f32 0.0, %v5415
      %v5417 = vpop.f32.mrf.mxu0
      %v5418 = vpop.f32.mrf.mxu0
      %v5419 = vadd.f32 0.0, %v5418
      %v5420 = vpop.f32.mrf.mxu0
      %5421 = vmatprep.mubr.bf16.mxu0 0
      %5422 = vmatmul.mubr.bf16.gmra.mxu0 %v5304
      %v5423 = vpop.f32.mrf.mxu0
      %v5424 = vadd.f32 0.0, %v5423
      %v5425 = vpop.f32.mrf.mxu0
      %v5426 = vpop.f32.mrf.mxu0
      %v5427 = vadd.f32 0.0, %v5426
      %v5428 = vpop.f32.mrf.mxu0
      %5429 = vmatprep.mubr.bf16.mxu0 0
      %5430 = vmatmul.mubr.bf16.gmra.mxu0 %v5307
      %v5431 = vpop.f32.mrf.mxu0
      %v5432 = vadd.f32 0.0, %v5431
      %v5433 = vpop.f32.mrf.mxu0
      %v5434 = vpop.f32.mrf.mxu0
      %v5435 = vadd.f32 0.0, %v5434
      %v5436 = vpop.f32.mrf.mxu0
      %5437 = vmatprep.mubr.bf16.mxu0 0
      %5438 = vmatmul.mubr.bf16.gmra.mxu0 %v5310
      %v5439 = vpop.f32.mrf.mxu0
      %v5440 = vadd.f32 0.0, %v5439
      %v5441 = vpop.f32.mrf.mxu0
      %v5442 = vpop.f32.mrf.mxu0
      %v5443 = vadd.f32 0.0, %v5442
      %v5444 = vpop.f32.mrf.mxu0
      %5445 = vmatprep.mubr.bf16.mxu0 0
      %5446 = vmatmul.mubr.bf16.gmra.mxu0 %v5313
      %v5447 = vpop.f32.mrf.mxu0
      %v5448 = vadd.f32 0.0, %v5447
      %v5449 = vpop.f32.mrf.mxu0
      %v5450 = vpop.f32.mrf.mxu0
      %v5451 = vadd.f32 0.0, %v5450
      %v5452 = vpop.f32.mrf.mxu0
      %5453 = vmatprep.mubr.bf16.mxu0 0
      %5454 = vmatmul.mubr.bf16.gmra.mxu0 %v5316
      %v5455 = vpop.f32.mrf.mxu0
      %v5456 = vadd.f32 0.0, %v5455
      %v5457 = vpop.f32.mrf.mxu0
      %v5458 = vpop.f32.mrf.mxu0
      %v5459 = vadd.f32 0.0, %v5458
      %v5460 = vpop.f32.mrf.mxu0
      %5461 = vmatprep.mubr.bf16.mxu0 0
      %5462 = vmatmul.mubr.bf16.gmra.mxu0 %v5319
      %v5463 = vpop.f32.mrf.mxu0
      %v5464 = vadd.f32 0.0, %v5463
      %v5465 = vpop.f32.mrf.mxu0
      %v5466 = vpop.f32.mrf.mxu0
      %v5467 = vadd.f32 0.0, %v5466
      %v5468 = vpop.f32.mrf.mxu0
      %5469 = vmatprep.mubr.bf16.mxu0 0
      %5470 = vmatmul.mubr.bf16.gmra.mxu0 %v5322
      %v5471 = vpop.f32.mrf.mxu0
      %v5472 = vadd.f32 0.0, %v5471
      %v5473 = vpop.f32.mrf.mxu0
      %v5474 = vpop.f32.mrf.mxu0
      %v5475 = vadd.f32 0.0, %v5474
      %v5476 = vpop.f32.mrf.mxu0
      %5477 = vmatprep.mubr.bf16.mxu0 0
      %5478 = vmatmul.mubr.bf16.gmra.mxu0 %v5325
      %v5479 = vpop.f32.mrf.mxu0
      %v5480 = vadd.f32 0.0, %v5479
      %v5481 = vpop.f32.mrf.mxu0
      %v5482 = vpop.f32.mrf.mxu0
      %v5483 = vadd.f32 0.0, %v5482
      %v5484 = vpop.f32.mrf.mxu0
      %5485 = vmatprep.mubr.bf16.mxu0 0
      %5486 = vmatmul.mubr.bf16.gmra.mxu0 %v5328
      %v5487 = vpop.f32.mrf.mxu0
      %v5488 = vadd.f32 0.0, %v5487
      %v5489 = vpop.f32.mrf.mxu0
      %v5490 = vpop.f32.mrf.mxu0
      %v5491 = vadd.f32 0.0, %v5490
      %v5492 = vpop.f32.mrf.mxu0
      %5493 = vdwg.mxu0
      %v5494 = vadd.f32 %v5040, %v5368
      %v5495 = vadd.f32 %v5041, %v5371
      %v5496 = vadd.f32 %v5042, %v5376
      %v5497 = vadd.f32 %v5043, %v5379
      %v5498 = vadd.f32 %v5044, %v5384
      %v5499 = vadd.f32 %v5045, %v5387
      %v5500 = vadd.f32 %v5046, %v5392
      %v5501 = vadd.f32 %v5047, %v5395
      %v5502 = vadd.f32 %v5048, %v5400
      %v5503 = vadd.f32 %v5049, %v5403
      %v5504 = vadd.f32 %v5050, %v5408
      %v5505 = vadd.f32 %v5051, %v5411
      %v5506 = vadd.f32 %v5052, %v5416
      %v5507 = vadd.f32 %v5053, %v5419
      %v5508 = vadd.f32 %v5054, %v5424
      %v5509 = vadd.f32 %v5055, %v5427
      %v5510 = vadd.f32 %v5056, %v5432
      %v5511 = vadd.f32 %v5057, %v5435
      %v5512 = vadd.f32 %v5058, %v5440
      %v5513 = vadd.f32 %v5059, %v5443
      %v5514 = vadd.f32 %v5060, %v5448
      %v5515 = vadd.f32 %v5061, %v5451
      %v5516 = vadd.f32 %v5062, %v5456
      %v5517 = vadd.f32 %v5063, %v5459
      %v5518 = vadd.f32 %v5064, %v5464
      %v5519 = vadd.f32 %v5065, %v5467
      %v5520 = vadd.f32 %v5066, %v5472
      %v5521 = vadd.f32 %v5067, %v5475
      %v5522 = vadd.f32 %v5068, %v5480
      %v5523 = vadd.f32 %v5069, %v5483
      %v5524 = vadd.f32 %v5070, %v5488
      %v5525 = vadd.f32 %v5071, %v5491
      %5526 = vst [vmem:[#allocation2] sm:$0xff] %v5494
      %5527 = vst [vmem:[#allocation2 + $0x8] sm:$0xff] %v5495
      %5528 = vst [vmem:[#allocation2 + $0x10] sm:$0xff] %v5496
      %5529 = vst [vmem:[#allocation2 + $0x18] sm:$0xff] %v5497
      %5530 = vst [vmem:[#allocation2 + $0x20] sm:$0xff] %v5498
      %5531 = vst [vmem:[#allocation2 + $0x28] sm:$0xff] %v5499
      %5532 = vst [vmem:[#allocation2 + $0x30] sm:$0xff] %v5500
      %5533 = vst [vmem:[#allocation2 + $0x38] sm:$0xff] %v5501
      %5534 = vst [vmem:[#allocation2 + $0x40] sm:$0xff] %v5502
      %5535 = vst [vmem:[#allocation2 + $0x48] sm:$0xff] %v5503
      %5536 = vst [vmem:[#allocation2 + $0x50] sm:$0xff] %v5504
      %5537 = vst [vmem:[#allocation2 + $0x58] sm:$0xff] %v5505
      %5538 = vst [vmem:[#allocation2 + $0x60] sm:$0xff] %v5506
      %5539 = vst [vmem:[#allocation2 + $0x68] sm:$0xff] %v5507
      %5540 = vst [vmem:[#allocation2 + $0x70] sm:$0xff] %v5508
      %5541 = vst [vmem:[#allocation2 + $0x78] sm:$0xff] %v5509
      %5542 = vst [vmem:[#allocation2 + $0x80] sm:$0xff] %v5510
      %5543 = vst [vmem:[#allocation2 + $0x88] sm:$0xff] %v5511
      %5544 = vst [vmem:[#allocation2 + $0x90] sm:$0xff] %v5512
      %5545 = vst [vmem:[#allocation2 + $0x98] sm:$0xff] %v5513
      %5546 = vst [vmem:[#allocation2 + $0xa0] sm:$0xff] %v5514
      %5547 = vst [vmem:[#allocation2 + $0xa8] sm:$0xff] %v5515
      %5548 = vst [vmem:[#allocation2 + $0xb0] sm:$0xff] %v5516
      %5549 = vst [vmem:[#allocation2 + $0xb8] sm:$0xff] %v5517
      %5550 = vst [vmem:[#allocation2 + $0xc0] sm:$0xff] %v5518
      %5551 = vst [vmem:[#allocation2 + $0xc8] sm:$0xff] %v5519
      %5552 = vst [vmem:[#allocation2 + $0xd0] sm:$0xff] %v5520
      %5553 = vst [vmem:[#allocation2 + $0xd8] sm:$0xff] %v5521
      %5554 = vst [vmem:[#allocation2 + $0xe0] sm:$0xff] %v5522
      %5555 = vst [vmem:[#allocation2 + $0xe8] sm:$0xff] %v5523
      %5556 = vst [vmem:[#allocation2 + $0xf0] sm:$0xff] %v5524
      %5557 = vst [vmem:[#allocation2 + $0xf8] sm:$0xff] %v5525
      %v5558 = vld [vmem:[#allocation2] sm:$0xff]
      %v5559 = vld [vmem:[#allocation2 + $0x8] sm:$0xff]
      %v5560 = vld [vmem:[#allocation2 + $0x10] sm:$0xff]
      %v5561 = vld [vmem:[#allocation2 + $0x18] sm:$0xff]
      %v5562 = vld [vmem:[#allocation2 + $0x20] sm:$0xff]
      %v5563 = vld [vmem:[#allocation2 + $0x28] sm:$0xff]
      %v5564 = vld [vmem:[#allocation2 + $0x30] sm:$0xff]
      %v5565 = vld [vmem:[#allocation2 + $0x38] sm:$0xff]
      %v5566 = vld [vmem:[#allocation2 + $0x40] sm:$0xff]
      %v5567 = vld [vmem:[#allocation2 + $0x48] sm:$0xff]
      %v5568 = vld [vmem:[#allocation2 + $0x50] sm:$0xff]
      %v5569 = vld [vmem:[#allocation2 + $0x58] sm:$0xff]
      %v5570 = vld [vmem:[#allocation2 + $0x60] sm:$0xff]
      %v5571 = vld [vmem:[#allocation2 + $0x68] sm:$0xff]
      %v5572 = vld [vmem:[#allocation2 + $0x70] sm:$0xff]
      %v5573 = vld [vmem:[#allocation2 + $0x78] sm:$0xff]
      %v5574 = vld [vmem:[#allocation2 + $0x80] sm:$0xff]
      %v5575 = vld [vmem:[#allocation2 + $0x88] sm:$0xff]
      %v5576 = vld [vmem:[#allocation2 + $0x90] sm:$0xff]
      %v5577 = vld [vmem:[#allocation2 + $0x98] sm:$0xff]
      %v5578 = vld [vmem:[#allocation2 + $0xa0] sm:$0xff]
      %v5579 = vld [vmem:[#allocation2 + $0xa8] sm:$0xff]
      %v5580 = vld [vmem:[#allocation2 + $0xb0] sm:$0xff]
      %v5581 = vld [vmem:[#allocation2 + $0xb8] sm:$0xff]
      %v5582 = vld [vmem:[#allocation2 + $0xc0] sm:$0xff]
      %v5583 = vld [vmem:[#allocation2 + $0xc8] sm:$0xff]
      %v5584 = vld [vmem:[#allocation2 + $0xd0] sm:$0xff]
      %v5585 = vld [vmem:[#allocation2 + $0xd8] sm:$0xff]
      %v5586 = vld [vmem:[#allocation2 + $0xe0] sm:$0xff]
      %v5587 = vld [vmem:[#allocation2 + $0xe8] sm:$0xff]
      %v5588 = vld [vmem:[#allocation2 + $0xf0] sm:$0xff]
      %v5589 = vld [vmem:[#allocation2 + $0xf8] sm:$0xff]
      %5590 = vst [vmem:[%s177] sm:$0xff] %v5558
      %5591 = vst [vmem:[%s177 + $0x8] sm:$0xff] %v5559
      %5592 = vst [vmem:[%s177 + $0x10] sm:$0xff] %v5560
      %5593 = vst [vmem:[%s177 + $0x18] sm:$0xff] %v5561
      %5594 = vst [vmem:[%s177 + $0x20] sm:$0xff] %v5562
      %5595 = vst [vmem:[%s177 + $0x28] sm:$0xff] %v5563
      %5596 = vst [vmem:[%s177 + $0x30] sm:$0xff] %v5564
      %5597 = vst [vmem:[%s177 + $0x38] sm:$0xff] %v5565
      %5598 = vst [vmem:[%s177 + $0x40] sm:$0xff] %v5566
      %5599 = vst [vmem:[%s177 + $0x48] sm:$0xff] %v5567
      %5600 = vst [vmem:[%s177 + $0x50] sm:$0xff] %v5568
      %5601 = vst [vmem:[%s177 + $0x58] sm:$0xff] %v5569
      %5602 = vst [vmem:[%s177 + $0x60] sm:$0xff] %v5570
      %5603 = vst [vmem:[%s177 + $0x68] sm:$0xff] %v5571
      %5604 = vst [vmem:[%s177 + $0x70] sm:$0xff] %v5572
      %5605 = vst [vmem:[%s177 + $0x78] sm:$0xff] %v5573
      %5606 = vst [vmem:[%s177 + $0x80] sm:$0xff] %v5574
      %5607 = vst [vmem:[%s177 + $0x88] sm:$0xff] %v5575
      %5608 = vst [vmem:[%s177 + $0x90] sm:$0xff] %v5576
      %5609 = vst [vmem:[%s177 + $0x98] sm:$0xff] %v5577
      %5610 = vst [vmem:[%s177 + $0xa0] sm:$0xff] %v5578
      %5611 = vst [vmem:[%s177 + $0xa8] sm:$0xff] %v5579
      %5612 = vst [vmem:[%s177 + $0xb0] sm:$0xff] %v5580
      %5613 = vst [vmem:[%s177 + $0xb8] sm:$0xff] %v5581
      %5614 = vst [vmem:[%s177 + $0xc0] sm:$0xff] %v5582
      %5615 = vst [vmem:[%s177 + $0xc8] sm:$0xff] %v5583
      %5616 = vst [vmem:[%s177 + $0xd0] sm:$0xff] %v5584
      %5617 = vst [vmem:[%s177 + $0xd8] sm:$0xff] %v5585
      %5618 = vst [vmem:[%s177 + $0xe0] sm:$0xff] %v5586
      %5619 = vst [vmem:[%s177 + $0xe8] sm:$0xff] %v5587
      %5620 = vst [vmem:[%s177 + $0xf0] sm:$0xff] %v5588
      %5621 = vst [vmem:[%s177 + $0xf8] sm:$0xff] %v5589
      %v5622 = vadd.f32 %v5558, %v5559
      %v5623 = vadd.f32 %v5622, %v5560
      %v5624 = vadd.f32 %v5623, %v5561
      %v5625 = vadd.f32 %v5624, %v5562
      %v5626 = vadd.f32 %v5625, %v5563
      %v5627 = vadd.f32 %v5626, %v5564
      %v5628 = vadd.f32 %v5627, %v5565
      %v5629 = vadd.f32 %v5628, %v5566
      %v5630 = vadd.f32 %v5629, %v5567
      %v5631 = vadd.f32 %v5630, %v5568
      %v5632 = vadd.f32 %v5631, %v5569
      %v5633 = vadd.f32 %v5632, %v5570
      %v5634 = vadd.f32 %v5633, %v5571
      %v5635 = vadd.f32 %v5634, %v5572
      %v5636 = vadd.f32 %v5635, %v5573
      %v5637 = vadd.f32 %v5636, %v5574
      %v5638 = vadd.f32 %v5637, %v5575
      %v5639 = vadd.f32 %v5638, %v5576
      %v5640 = vadd.f32 %v5639, %v5577
      %v5641 = vadd.f32 %v5640, %v5578
      %v5642 = vadd.f32 %v5641, %v5579
      %v5643 = vadd.f32 %v5642, %v5580
      %v5644 = vadd.f32 %v5643, %v5581
      %v5645 = vadd.f32 %v5644, %v5582
      %v5646 = vadd.f32 %v5645, %v5583
      %v5647 = vadd.f32 %v5646, %v5584
      %v5648 = vadd.f32 %v5647, %v5585
      %v5649 = vadd.f32 %v5648, %v5586
      %v5650 = vadd.f32 %v5649, %v5587
      %v5651 = vadd.f32 %v5650, %v5588
      %v5652 = vadd.f32 %v5651, %v5589
      %v5653 = vrot.slane %v5652, 4
      %v5654 = vadd.f32 %v5652, %v5653
      %v5655 = vrot.slane %v5654, 2
      %v5656 = vadd.f32 %v5654, %v5655
      %v5657 = vrot.slane %v5656, 1
      %v5658 = vadd.f32 %v5656, %v5657
      %v5659 = vmul.f32 %v5558, %v5558
      %v5660 = vmul.f32 %v5559, %v5559
      %v5661 = vmul.f32 %v5560, %v5560
      %v5662 = vmul.f32 %v5561, %v5561
      %v5663 = vmul.f32 %v5562, %v5562
      %v5664 = vmul.f32 %v5563, %v5563
      %v5665 = vmul.f32 %v5564, %v5564
      %v5666 = vmul.f32 %v5565, %v5565
      %v5667 = vmul.f32 %v5566, %v5566
      %v5668 = vmul.f32 %v5567, %v5567
      %v5669 = vmul.f32 %v5568, %v5568
      %v5670 = vmul.f32 %v5569, %v5569
      %v5671 = vmul.f32 %v5570, %v5570
      %v5672 = vmul.f32 %v5571, %v5571
      %v5673 = vmul.f32 %v5572, %v5572
      %v5674 = vmul.f32 %v5573, %v5573
      %v5675 = vmul.f32 %v5574, %v5574
      %v5676 = vmul.f32 %v5575, %v5575
      %v5677 = vmul.f32 %v5576, %v5576
      %v5678 = vmul.f32 %v5577, %v5577
      %v5679 = vmul.f32 %v5578, %v5578
      %v5680 = vmul.f32 %v5579, %v5579
      %v5681 = vmul.f32 %v5580, %v5580
      %v5682 = vmul.f32 %v5581, %v5581
      %v5683 = vmul.f32 %v5582, %v5582
      %v5684 = vmul.f32 %v5583, %v5583
      %v5685 = vmul.f32 %v5584, %v5584
      %v5686 = vmul.f32 %v5585, %v5585
      %v5687 = vmul.f32 %v5586, %v5586
      %v5688 = vmul.f32 %v5587, %v5587
      %v5689 = vmul.f32 %v5588, %v5588
      %v5690 = vmul.f32 %v5589, %v5589
      %v5691 = vadd.f32 %v5659, %v5660
      %v5692 = vadd.f32 %v5691, %v5661
      %v5693 = vadd.f32 %v5692, %v5662
      %v5694 = vadd.f32 %v5693, %v5663
      %v5695 = vadd.f32 %v5694, %v5664
      %v5696 = vadd.f32 %v5695, %v5665
      %v5697 = vadd.f32 %v5696, %v5666
      %v5698 = vadd.f32 %v5697, %v5667
      %v5699 = vadd.f32 %v5698, %v5668
      %v5700 = vadd.f32 %v5699, %v5669
      %v5701 = vadd.f32 %v5700, %v5670
      %v5702 = vadd.f32 %v5701, %v5671
      %v5703 = vadd.f32 %v5702, %v5672
      %v5704 = vadd.f32 %v5703, %v5673
      %v5705 = vadd.f32 %v5704, %v5674
      %v5706 = vadd.f32 %v5705, %v5675
      %v5707 = vadd.f32 %v5706, %v5676
      %v5708 = vadd.f32 %v5707, %v5677
      %v5709 = vadd.f32 %v5708, %v5678
      %v5710 = vadd.f32 %v5709, %v5679
      %v5711 = vadd.f32 %v5710, %v5680
      %v5712 = vadd.f32 %v5711, %v5681
      %v5713 = vadd.f32 %v5712, %v5682
      %v5714 = vadd.f32 %v5713, %v5683
      %v5715 = vadd.f32 %v5714, %v5684
      %v5716 = vadd.f32 %v5715, %v5685
      %v5717 = vadd.f32 %v5716, %v5686
      %v5718 = vadd.f32 %v5717, %v5687
      %v5719 = vadd.f32 %v5718, %v5688
      %v5720 = vadd.f32 %v5719, %v5689
      %v5721 = vadd.f32 %v5720, %v5690
      %v5722 = vrot.slane %v5721, 4
      %v5723 = vadd.f32 %v5721, %v5722
      %v5724 = vrot.slane %v5723, 2
      %v5725 = vadd.f32 %v5723, %v5724
      %v5726 = vrot.slane %v5725, 1
      %v5727 = vadd.f32 %v5725, %v5726
      %vm5728 = vcmask 1040384
      %v5729 = vsel %vm5728, %v5658, %v5727
      %5730 = vst [vmem:[%s181] sm:$0x3] %v5729
      %p5731 = scmp.lt.s32.totalorder %s15, 1
      %s5732 = scalar_select %p5731, %s15, 1
      %s5733 = smul.addr %s5732, 32
      %s5734 = smul.addr %s5733, 8
      %s5735 = scalar_lea.vmem %s2, %s5734
      %p5736 = scmp.lt.s32.totalorder %s15, 1
      %s5737 = scalar_select %p5736, %s15, 1
      %s5738 = smul.addr %s5737, 2
      %s5739 = scalar_lea.vmem %s3, %s5738
      // Predicated region
      $region29: #{basic_conv2d.2} parent=27 // pred_check
        %p5740 = pneg %p80
      $region30: #{basic_conv2d.2} parent=27 // pred_check_branch
        %5742 = sbr.rel (%p5740) target = $region32
      $region31: #{basic_conv2d.2} parent=27 // pred_region
        _
      $region32: #{basic_conv2d.2} parent=27 // pred_fallthru
        _
      // Predicated region
      $region33: #{basic_conv2d.2} parent=27 // pred_check
        %p5743 = pneg %p106
      $region34: #{basic_conv2d.2} parent=27 // pred_check_branch
        %5745 = sbr.rel (%p5743) target = $region36
      $region35: #{basic_conv2d.2} parent=27 // pred_region
        _
      $region36: #{basic_conv2d.2} parent=27 // pred_fallthru
        _
    $region28: #{basic_conv2d.2} parent=5 // pred_fallthru
      _
    %p5746 = scmp.le.s32.totalorder 2, %s10
    // Predicated region
    $region37: #{basic_conv2d.2} parent=5 // pred_check
      %p5747 = pneg %p5746
    $region38: #{basic_conv2d.2} parent=5 // pred_check_branch
      %5749 = sbr.rel (%p5747) target = $region40
    $region39: #{basic_conv2d.2} parent=5 // pred_region
      %s5750 = ssub.s32 %s10, 2
      // Predicated region
      $region41: #{basic_conv2d.2} parent=39 // pred_check
        %p5751 = pneg %p86
      $region42: #{basic_conv2d.2} parent=39 // pred_check_branch
        %5753 = sbr.rel (%p5751) target = $region44
      $region43: #{basic_conv2d.2} parent=39 // pred_region
        %p5754 = scmp.lt.s32.totalorder %s16, 1
        %s5755 = scalar_select %p5754, %s16, 1
        %s5756 = smul.addr %s5755, 32
        %s5757 = smul.addr %s5756, 8
        %s5758 = scalar_lea.vmem %s2, %s5757
      $region44: #{basic_conv2d.2} parent=39 // pred_fallthru
        _
      // Predicated region
      $region45: #{basic_conv2d.2} parent=39 // pred_check
        %p5759 = pneg %p112
      $region46: #{basic_conv2d.2} parent=39 // pred_check_branch
        %5761 = sbr.rel (%p5759) target = $region48
      $region47: #{basic_conv2d.2} parent=39 // pred_region
        %p5762 = scmp.lt.s32.totalorder %s16, 1
        %s5763 = scalar_select %p5762, %s16, 1
        %s5764 = smul.addr %s5763, 2
        %s5765 = scalar_lea.vmem %s3, %s5764
      $region48: #{basic_conv2d.2} parent=39 // pred_fallthru
        _
    $region40: #{basic_conv2d.2} parent=5 // pred_fallthru
      _
  $region6: #{basic_conv2d.2} parent=0 // loop_footer
    %s14 = sadd.s32 1, %s10
  $region7: #{basic_conv2d.2} parent=0 // loop_footer_branch
    %9 = sbr.rel target = $region3
  $region8: #{basic_conv2d.2} parent=0 // loop_exit
    _

</llo_original>
